<compile_context>
chip_gen: v5e
topology: v5e:2x2
jax: 0.10.0
libtpu: 0.0.40
codegen_flags: <defaults>
</compile_context>

<pallas_src>
import functools

import jax
import jax.numpy as jnp
import numpy as np
from jax import lax
from jax.experimental import pallas as pl
from jax.experimental.pallas import tpu as pltpu


def _round_up(x, m):
    return (x + m - 1) // m * m


def _pick_d_tile(do, hw_rows, target_rows=256):
    """Largest D-tile <= target_rows/hw that divides Do and keeps the output
    block sublane-aligned; falls back to the whole D extent (block == array)."""
    cap = max(1, target_rows // max(hw_rows, 1))
    for td in range(min(cap, do), 0, -1):
        if do % td == 0 and (td * hw_rows) % 8 == 0:
            return td
    return do


def _conv3d_im2col_kernel(x_ref, w_ref, o_ref, col_ref, *,
                          ksize, stride, out_tile, cin, k_total):
    """Grid = (batch, d_tile). Computes one [M_tile, Cout_pad] output block."""
    kd_sz, kh_sz, kw_sz = ksize
    sd, sh, sw = stride
    td, ho, wo = out_tile
    m = td * ho * wo
    k_pad = col_ref.shape[1]
    cdt = col_ref.dtype

    d0 = pl.program_id(1) * (td * sd)  # input-D offset of this output tile

    # Tail columns of the im2col tile: column `k_total` is the constant-1
    # "bias" column (the matching weight row holds the bias); the remaining pad
    # columns are zeroed so uninitialized VMEM can never leak into the matmul.
    tail = lax.broadcasted_iota(jnp.int32, (m, k_pad - k_total), 1) == 0
    col_ref[:, k_total:] = tail.astype(cdt)

    def _ds(start, size, s):
        return pl.ds(start, size) if s == 1 else pl.ds(start, size, s)

    # Gather the kd*kh*kw taps into the im2col scratch: one (possibly strided)
    # VMEM read + one narrow lane-slice store per tap; each piece dies
    # immediately, so the register file stays small.
    tap = 0
    for kd in range(kd_sz):
        for kh in range(kh_sz):
            for kw in range(kw_sz):
                piece = x_ref[0,
                              _ds(d0 + kd, td, sd),
                              _ds(kh, ho, sh),
                              _ds(kw, wo, sw),
                              :]                       # [td, ho, wo, cin]
                col_ref[:, tap * cin:(tap + 1) * cin] = (
                    piece.reshape(m, cin).astype(cdt))
                tap += 1

    # One fat, lane-dense MXU matmul: [M, K_pad] @ [K_pad, Cout_pad], f32 acc.
    acc = jnp.dot(col_ref[...], w_ref[...], preferred_element_type=jnp.float32)
    o_ref[...] = acc.reshape(1, m, o_ref.shape[-1]).astype(o_ref.dtype)


def same_pad_conv3d(x_ncdhw, weight_oidhw, bias=None, stride=(1, 1, 1),
                    compute_dtype=None):
    """Forward pass of SamePadConv3d.

    x_ncdhw:       [N, Cin, D, H, W]       (PyTorch NCDHW)
    weight_oidhw:  [Cout, Cin, kd, kh, kw] (PyTorch Conv3d weight layout)
    bias:          [Cout] or None
    stride:        int or (sd, sh, sw)
    compute_dtype: dtype fed to the MXU (e.g. jnp.bfloat16 on v6e/v7x to halve
                   HBM traffic); accumulation is always f32.
    """
    if isinstance(stride, int):
        stride = (stride,) * 3
    sd, sh, sw = stride
    cout, cin, kd, kh, kw = weight_oidhw.shape
    pd, ph, pw = ((k - 1) // 2 for k in (kd, kh, kw))

    n, cin_x, d, h, w = x_ncdhw.shape
    assert cin_x == cin
    out_dtype = x_ncdhw.dtype
    if compute_dtype is None:
        compute_dtype = out_dtype

    # NCDHW -> NDHWC + replicate ("edge") padding on the spatial dims (glue).
    x_ndhwc = jnp.transpose(x_ncdhw, (0, 2, 3, 4, 1))
    x_pad = jnp.pad(x_ndhwc, ((0, 0), (pd, pd), (ph, ph), (pw, pw), (0, 0)),
                    mode="edge").astype(compute_dtype)
    dp, hp, wp = x_pad.shape[1:4]

    # PyTorch Conv3d output sizes: floor((dim + 2*pad - k)/stride) + 1.
    do = (dp - kd) // sd + 1
    ho = (hp - kh) // sh + 1
    wo = (wp - kw) // sw + 1

    # Weight -> single 2-D operand [K_pad, Cout_pad]; row `k_total` carries the
    # bias (matched by the constant-1 im2col column); pad rows/cols are zero.
    k_total = kd * kh * kw * cin
    k_pad = _round_up(k_total + 1, 128)
    cout_pad = _round_up(cout, 128)
    if bias is None:
        bias = jnp.zeros((cout,), weight_oidhw.dtype)
    w2d = jnp.transpose(weight_oidhw, (2, 3, 4, 1, 0)).reshape(k_total, cout)
    w2d = jnp.concatenate([w2d, bias.reshape(1, cout).astype(w2d.dtype)], 0)
    w2d = jnp.pad(w2d, ((0, k_pad - (k_total + 1)), (0, cout_pad - cout)))
    w2d = w2d.astype(compute_dtype)

    td = _pick_d_tile(do, ho * wo)
    n_dt = do // td
    m_tile = td * ho * wo

    kernel = functools.partial(
        _conv3d_im2col_kernel, ksize=(kd, kh, kw), stride=stride,
        out_tile=(td, ho, wo), cin=cin, k_total=k_total)

    out2d = pl.pallas_call(
        kernel,
        out_shape=jax.ShapeDtypeStruct((n, do * ho * wo, cout_pad), out_dtype),
        grid_spec=pltpu.PrefetchScalarGridSpec(
            num_scalar_prefetch=0,
            grid=(n, n_dt),
            in_specs=[
                # Whole padded volume of one batch element; index_map ignores
                # the D-tile index, so the block stays VMEM-resident (no
                # re-DMA) across that batch element's D-tiles.
                # TODO(synk): for large D*H*W, switch to a halo-windowed
                # (pl.Element) D-tile so VMEM stays bounded per generation.
                pl.BlockSpec((1, dp, hp, wp, cin),
                             lambda i, j: (i, 0, 0, 0, 0)),
                pl.BlockSpec((k_pad, cout_pad), lambda i, j: (0, 0)),
            ],
            out_specs=pl.BlockSpec((1, m_tile, cout_pad),
                                   lambda i, j: (i, j, 0)),
            scratch_shapes=[pltpu.VMEM((m_tile, k_pad), compute_dtype)],
        ),
        compiler_params=pltpu.CompilerParams(
            dimension_semantics=("parallel", "parallel"),
            vmem_limit_bytes=48 * 1024 * 1024),
    )(x_pad, w2d)

    # Drop channel padding, restore NCDHW.
    out = out2d[:, :, :cout].reshape(n, do, ho, wo, cout)
    return jnp.transpose(out, (0, 4, 1, 2, 3))


def _reference_conv3d(x_ncdhw, weight_oidhw, bias, stride):
    """Pure-JAX reference (lax conv) of SamePadConv3d for correctness check."""
    kd, kh, kw = weight_oidhw.shape[2:]
    pd, ph, pw = ((k - 1) // 2 for k in (kd, kh, kw))
    x_pad = jnp.pad(x_ncdhw, ((0, 0), (0, 0), (pd, pd), (ph, ph), (pw, pw)),
                    mode="edge")
    out = lax.conv_general_dilated(
        x_pad, weight_oidhw, window_strides=stride, padding="VALID",
        dimension_numbers=("NCDHW", "OIDHW", "NCDHW"))
    return out + bias.reshape(1, -1, 1, 1, 1)


if __name__ == "__main__":
    # Small shapes consistent with the module: N=2, Cin=4, Cout=8, D=H=W=8, k=3.
    N, CIN, COUT = 2, 4, 8
    D = H = W = 8
    K = 3
    STRIDE = (1, 1, 1)

    key = jax.random.PRNGKey(0)
    kx, kw_, kb = jax.random.split(key, 3)
    x = jax.random.normal(kx, (N, CIN, D, H, W), dtype=jnp.float32)
    fan_in = CIN * K * K * K
    weight = jax.random.normal(kw_, (COUT, CIN, K, K, K),
                               dtype=jnp.float32) / np.sqrt(fan_in)
    bias = jax.random.normal(kb, (COUT,), dtype=jnp.float32) * 0.1

    ref = jax.block_until_ready(_reference_conv3d(x, weight, bias, STRIDE))

    # f32 compute path (strict check).
    out = jax.block_until_ready(
        same_pad_conv3d(x, weight, bias, stride=STRIDE))
    assert out.shape == ref.shape, (out.shape, ref.shape)
    np.testing.assert_allclose(np.asarray(out), np.asarray(ref),
                               rtol=1e-4, atol=1e-4)

    # bf16 compute path (halved HBM traffic on v6e/v7x); f32 accumulation.
    out_bf16 = jax.block_until_ready(
        same_pad_conv3d(x, weight, bias, stride=STRIDE,
                        compute_dtype=jnp.bfloat16))
    np.testing.assert_allclose(np.asarray(out_bf16), np.asarray(ref),
                               rtol=5e-2, atol=1e-1)

    print("KERNEL_OK")
</pallas_src>

<mosaic_0001>
module attributes {stable_mosaic.version = 11 : i64} {
  func.func @_conv3d_im2col_kernel(%arg0: i32, %arg1: i32, %arg2: memref<1x10x10x10x4xf32, #tpu.memory_space<vmem>>, %arg3: memref<128x128xf32, #tpu.memory_space<vmem>>, %arg4: memref<1x256x128xf32, #tpu.memory_space<vmem>>, %arg5: memref<256x128xf32, #tpu.memory_space<vmem>>) attributes {dimension_semantics = [#tpu.dimension_semantics<parallel>, #tpu.dimension_semantics<parallel>], iteration_bounds = array<i64: 2, 2>, scalar_prefetch = 0 : i64, scratch_operands = 1 : i64, tpu.core_type = #tpu.core_type<tc>, window_params = [{transform_indices = @transform_0, window_bounds = array<i64: 1, 10, 10, 10, 4>}, {pipeline_mode = #tpu.pipeline_mode<synchronous>, transform_indices = @transform_1, window_bounds = array<i64: 128, 128>}, {transform_indices = @transform_2, window_bounds = array<i64: 1, 256, 128>}]} {
    %c4_i32 = arith.constant 4 : i32
    %0 = arith.muli %arg1, %c4_i32 : i32
    %1 = tpu.iota {dimensions = array<i32: 1>} : vector<256x20xi32>
    %c0_i32 = arith.constant 0 : i32
    %2 = vector.broadcast %c0_i32 : i32 to vector<256x20xi32>
    %3 = arith.cmpi eq, %1, %2 : vector<256x20xi32>
    %4 = arith.extui %3 : vector<256x20xi1> to vector<256x20xi32>
    %5 = arith.sitofp %4 : vector<256x20xi32> to vector<256x20xf32>
    %c0 = arith.constant 0 : index
    %c108 = arith.constant 108 : index
    %6 = vector.load %arg5[%c0, %c108] : memref<256x128xf32, #tpu.memory_space<vmem>>, vector<256x20xf32>
    tpu.vector_store %arg5[%c0, %c108], %5 {strides = array<i32>} : memref<256x128xf32, #tpu.memory_space<vmem>>, vector<256x20xf32>,
    %c0_i32_0 = arith.constant 0 : i32
    %7 = arith.addi %0, %c0_i32_0 : i32
    %c0_1 = arith.constant 0 : index
    %8 = arith.index_cast %7 : i32 to index
    %c0_2 = arith.constant 0 : index
    %c0_3 = arith.constant 0 : index
    %c0_4 = arith.constant 0 : index
    %9 = vector.load %arg2[%c0_1, %8, %c0_2, %c0_3, %c0_4] : memref<1x10x10x10x4xf32, #tpu.memory_space<vmem>>, vector<1x4x8x8x4xf32>
    %10 = vector.shape_cast %9 : vector<1x4x8x8x4xf32> to vector<4x8x8x4xf32>
    %11 = vector.shape_cast %10 : vector<4x8x8x4xf32> to vector<256x4xf32>
    %c0_5 = arith.constant 0 : index
    %c0_6 = arith.constant 0 : index
    %12 = vector.load %arg5[%c0_5, %c0_6] : memref<256x128xf32, #tpu.memory_space<vmem>>, vector<256x4xf32>
    tpu.vector_store %arg5[%c0_5, %c0_6], %11 {strides = array<i32>} : memref<256x128xf32, #tpu.memory_space<vmem>>, vector<256x4xf32>,
    %c0_i32_7 = arith.constant 0 : i32
    %13 = arith.addi %0, %c0_i32_7 : i32
    %c0_8 = arith.constant 0 : index
    %14 = arith.index_cast %13 : i32 to index
    %c0_9 = arith.constant 0 : index
    %c1 = arith.constant 1 : index
    %c0_10 = arith.constant 0 : index
    %15 = vector.load %arg2[%c0_8, %14, %c0_9, %c1, %c0_10] : memref<1x10x10x10x4xf32, #tpu.memory_space<vmem>>, vector<1x4x8x8x4xf32>
    %16 = vector.shape_cast %15 : vector<1x4x8x8x4xf32> to vector<4x8x8x4xf32>
    %17 = vector.shape_cast %16 : vector<4x8x8x4xf32> to vector<256x4xf32>
    %c0_11 = arith.constant 0 : index
    %c4 = arith.constant 4 : index
    %18 = vector.load %arg5[%c0_11, %c4] : memref<256x128xf32, #tpu.memory_space<vmem>>, vector<256x4xf32>
    tpu.vector_store %arg5[%c0_11, %c4], %17 {strides = array<i32>} : memref<256x128xf32, #tpu.memory_space<vmem>>, vector<256x4xf32>,
    %c0_i32_12 = arith.constant 0 : i32
    %19 = arith.addi %0, %c0_i32_12 : i32
    %c0_13 = arith.constant 0 : index
    %20 = arith.index_cast %19 : i32 to index
    %c0_14 = arith.constant 0 : index
    %c2 = arith.constant 2 : index
    %c0_15 = arith.constant 0 : index
    %21 = vector.load %arg2[%c0_13, %20, %c0_14, %c2, %c0_15] : memref<1x10x10x10x4xf32, #tpu.memory_space<vmem>>, vector<1x4x8x8x4xf32>
    %22 = vector.shape_cast %21 : vector<1x4x8x8x4xf32> to vector<4x8x8x4xf32>
    %23 = vector.shape_cast %22 : vector<4x8x8x4xf32> to vector<256x4xf32>
    %c0_16 = arith.constant 0 : index
    %c8 = arith.constant 8 : index
    %24 = vector.load %arg5[%c0_16, %c8] : memref<256x128xf32, #tpu.memory_space<vmem>>, vector<256x4xf32>
    tpu.vector_store %arg5[%c0_16, %c8], %23 {strides = array<i32>} : memref<256x128xf32, #tpu.memory_space<vmem>>, vector<256x4xf32>,
    %c0_i32_17 = arith.constant 0 : i32
    %25 = arith.addi %0, %c0_i32_17 : i32
    %c0_18 = arith.constant 0 : index
    %26 = arith.index_cast %25 : i32 to index
    %c1_19 = arith.constant 1 : index
    %c0_20 = arith.constant 0 : index
    %c0_21 = arith.constant 0 : index
    %27 = vector.load %arg2[%c0_18, %26, %c1_19, %c0_20, %c0_21] : memref<1x10x10x10x4xf32, #tpu.memory_space<vmem>>, vector<1x4x8x8x4xf32>
    %28 = vector.shape_cast %27 : vector<1x4x8x8x4xf32> to vector<4x8x8x4xf32>
    %29 = vector.shape_cast %28 : vector<4x8x8x4xf32> to vector<256x4xf32>
    %c0_22 = arith.constant 0 : index
    %c12 = arith.constant 12 : index
    %30 = vector.load %arg5[%c0_22, %c12] : memref<256x128xf32, #tpu.memory_space<vmem>>, vector<256x4xf32>
    tpu.vector_store %arg5[%c0_22, %c12], %29 {strides = array<i32>} : memref<256x128xf32, #tpu.memory_space<vmem>>, vector<256x4xf32>,
    %c0_i32_23 = arith.constant 0 : i32
    %31 = arith.addi %0, %c0_i32_23 : i32
    %c0_24 = arith.constant 0 : index
    %32 = arith.index_cast %31 : i32 to index
    %c1_25 = arith.constant 1 : index
    %c1_26 = arith.constant 1 : index
    %c0_27 = arith.constant 0 : index
    %33 = vector.load %arg2[%c0_24, %32, %c1_25, %c1_26, %c0_27] : memref<1x10x10x10x4xf32, #tpu.memory_space<vmem>>, vector<1x4x8x8x4xf32>
    %34 = vector.shape_cast %33 : vector<1x4x8x8x4xf32> to vector<4x8x8x4xf32>
    %35 = vector.shape_cast %34 : vector<4x8x8x4xf32> to vector<256x4xf32>
    %c0_28 = arith.constant 0 : index
    %c16 = arith.constant 16 : index
    %36 = vector.load %arg5[%c0_28, %c16] : memref<256x128xf32, #tpu.memory_space<vmem>>, vector<256x4xf32>
    tpu.vector_store %arg5[%c0_28, %c16], %35 {strides = array<i32>} : memref<256x128xf32, #tpu.memory_space<vmem>>, vector<256x4xf32>,
    %c0_i32_29 = arith.constant 0 : i32
    %37 = arith.addi %0, %c0_i32_29 : i32
    %c0_30 = arith.constant 0 : index
    %38 = arith.index_cast %37 : i32 to index
    %c1_31 = arith.constant 1 : index
    %c2_32 = arith.constant 2 : index
    %c0_33 = arith.constant 0 : index
    %39 = vector.load %arg2[%c0_30, %38, %c1_31, %c2_32, %c0_33] : memref<1x10x10x10x4xf32, #tpu.memory_space<vmem>>, vector<1x4x8x8x4xf32>
    %40 = vector.shape_cast %39 : vector<1x4x8x8x4xf32> to vector<4x8x8x4xf32>
    %41 = vector.shape_cast %40 : vector<4x8x8x4xf32> to vector<256x4xf32>
    %c0_34 = arith.constant 0 : index
    %c20 = arith.constant 20 : index
    %42 = vector.load %arg5[%c0_34, %c20] : memref<256x128xf32, #tpu.memory_space<vmem>>, vector<256x4xf32>
    tpu.vector_store %arg5[%c0_34, %c20], %41 {strides = array<i32>} : memref<256x128xf32, #tpu.memory_space<vmem>>, vector<256x4xf32>,
    %c0_i32_35 = arith.constant 0 : i32
    %43 = arith.addi %0, %c0_i32_35 : i32
    %c0_36 = arith.constant 0 : index
    %44 = arith.index_cast %43 : i32 to index
    %c2_37 = arith.constant 2 : index
    %c0_38 = arith.constant 0 : index
    %c0_39 = arith.constant 0 : index
    %45 = vector.load %arg2[%c0_36, %44, %c2_37, %c0_38, %c0_39] : memref<1x10x10x10x4xf32, #tpu.memory_space<vmem>>, vector<1x4x8x8x4xf32>
    %46 = vector.shape_cast %45 : vector<1x4x8x8x4xf32> to vector<4x8x8x4xf32>
    %47 = vector.shape_cast %46 : vector<4x8x8x4xf32> to vector<256x4xf32>
    %c0_40 = arith.constant 0 : index
    %c24 = arith.constant 24 : index
    %48 = vector.load %arg5[%c0_40, %c24] : memref<256x128xf32, #tpu.memory_space<vmem>>, vector<256x4xf32>
    tpu.vector_store %arg5[%c0_40, %c24], %47 {strides = array<i32>} : memref<256x128xf32, #tpu.memory_space<vmem>>, vector<256x4xf32>,
    %c0_i32_41 = arith.constant 0 : i32
    %49 = arith.addi %0, %c0_i32_41 : i32
    %c0_42 = arith.constant 0 : index
    %50 = arith.index_cast %49 : i32 to index
    %c2_43 = arith.constant 2 : index
    %c1_44 = arith.constant 1 : index
    %c0_45 = arith.constant 0 : index
    %51 = vector.load %arg2[%c0_42, %50, %c2_43, %c1_44, %c0_45] : memref<1x10x10x10x4xf32, #tpu.memory_space<vmem>>, vector<1x4x8x8x4xf32>
    %52 = vector.shape_cast %51 : vector<1x4x8x8x4xf32> to vector<4x8x8x4xf32>
    %53 = vector.shape_cast %52 : vector<4x8x8x4xf32> to vector<256x4xf32>
    %c0_46 = arith.constant 0 : index
    %c28 = arith.constant 28 : index
    %54 = vector.load %arg5[%c0_46, %c28] : memref<256x128xf32, #tpu.memory_space<vmem>>, vector<256x4xf32>
    tpu.vector_store %arg5[%c0_46, %c28], %53 {strides = array<i32>} : memref<256x128xf32, #tpu.memory_space<vmem>>, vector<256x4xf32>,
    %c0_i32_47 = arith.constant 0 : i32
    %55 = arith.addi %0, %c0_i32_47 : i32
    %c0_48 = arith.constant 0 : index
    %56 = arith.index_cast %55 : i32 to index
    %c2_49 = arith.constant 2 : index
    %c2_50 = arith.constant 2 : index
    %c0_51 = arith.constant 0 : index
    %57 = vector.load %arg2[%c0_48, %56, %c2_49, %c2_50, %c0_51] : memref<1x10x10x10x4xf32, #tpu.memory_space<vmem>>, vector<1x4x8x8x4xf32>
    %58 = vector.shape_cast %57 : vector<1x4x8x8x4xf32> to vector<4x8x8x4xf32>
    %59 = vector.shape_cast %58 : vector<4x8x8x4xf32> to vector<256x4xf32>
    %c0_52 = arith.constant 0 : index
    %c32 = arith.constant 32 : index
    %60 = vector.load %arg5[%c0_52, %c32] : memref<256x128xf32, #tpu.memory_space<vmem>>, vector<256x4xf32>
    tpu.vector_store %arg5[%c0_52, %c32], %59 {strides = array<i32>} : memref<256x128xf32, #tpu.memory_space<vmem>>, vector<256x4xf32>,
    %c1_i32 = arith.constant 1 : i32
    %61 = arith.addi %0, %c1_i32 : i32
    %c0_53 = arith.constant 0 : index
    %62 = arith.index_cast %61 : i32 to index
    %c0_54 = arith.constant 0 : index
    %c0_55 = arith.constant 0 : index
    %c0_56 = arith.constant 0 : index
    %63 = vector.load %arg2[%c0_53, %62, %c0_54, %c0_55, %c0_56] : memref<1x10x10x10x4xf32, #tpu.memory_space<vmem>>, vector<1x4x8x8x4xf32>
    %64 = vector.shape_cast %63 : vector<1x4x8x8x4xf32> to vector<4x8x8x4xf32>
    %65 = vector.shape_cast %64 : vector<4x8x8x4xf32> to vector<256x4xf32>
    %c0_57 = arith.constant 0 : index
    %c36 = arith.constant 36 : index
    %66 = vector.load %arg5[%c0_57, %c36] : memref<256x128xf32, #tpu.memory_space<vmem>>, vector<256x4xf32>
    tpu.vector_store %arg5[%c0_57, %c36], %65 {strides = array<i32>} : memref<256x128xf32, #tpu.memory_space<vmem>>, vector<256x4xf32>,
    %c1_i32_58 = arith.constant 1 : i32
    %67 = arith.addi %0, %c1_i32_58 : i32
    %c0_59 = arith.constant 0 : index
    %68 = arith.index_cast %67 : i32 to index
    %c0_60 = arith.constant 0 : index
    %c1_61 = arith.constant 1 : index
    %c0_62 = arith.constant 0 : index
    %69 = vector.load %arg2[%c0_59, %68, %c0_60, %c1_61, %c0_62] : memref<1x10x10x10x4xf32, #tpu.memory_space<vmem>>, vector<1x4x8x8x4xf32>
    %70 = vector.shape_cast %69 : vector<1x4x8x8x4xf32> to vector<4x8x8x4xf32>
    %71 = vector.shape_cast %70 : vector<4x8x8x4xf32> to vector<256x4xf32>
    %c0_63 = arith.constant 0 : index
    %c40 = arith.constant 40 : index
    %72 = vector.load %arg5[%c0_63, %c40] : memref<256x128xf32, #tpu.memory_space<vmem>>, vector<256x4xf32>
    tpu.vector_store %arg5[%c0_63, %c40], %71 {strides = array<i32>} : memref<256x128xf32, #tpu.memory_space<vmem>>, vector<256x4xf32>,
    %c1_i32_64 = arith.constant 1 : i32
    %73 = arith.addi %0, %c1_i32_64 : i32
    %c0_65 = arith.constant 0 : index
    %74 = arith.index_cast %73 : i32 to index
    %c0_66 = arith.constant 0 : index
    %c2_67 = arith.constant 2 : index
    %c0_68 = arith.constant 0 : index
    %75 = vector.load %arg2[%c0_65, %74, %c0_66, %c2_67, %c0_68] : memref<1x10x10x10x4xf32, #tpu.memory_space<vmem>>, vector<1x4x8x8x4xf32>
    %76 = vector.shape_cast %75 : vector<1x4x8x8x4xf32> to vector<4x8x8x4xf32>
    %77 = vector.shape_cast %76 : vector<4x8x8x4xf32> to vector<256x4xf32>
    %c0_69 = arith.constant 0 : index
    %c44 = arith.constant 44 : index
    %78 = vector.load %arg5[%c0_69, %c44] : memref<256x128xf32, #tpu.memory_space<vmem>>, vector<256x4xf32>
    tpu.vector_store %arg5[%c0_69, %c44], %77 {strides = array<i32>} : memref<256x128xf32, #tpu.memory_space<vmem>>, vector<256x4xf32>,
    %c1_i32_70 = arith.constant 1 : i32
    %79 = arith.addi %0, %c1_i32_70 : i32
    %c0_71 = arith.constant 0 : index
    %80 = arith.index_cast %79 : i32 to index
    %c1_72 = arith.constant 1 : index
    %c0_73 = arith.constant 0 : index
    %c0_74 = arith.constant 0 : index
    %81 = vector.load %arg2[%c0_71, %80, %c1_72, %c0_73, %c0_74] : memref<1x10x10x10x4xf32, #tpu.memory_space<vmem>>, vector<1x4x8x8x4xf32>
    %82 = vector.shape_cast %81 : vector<1x4x8x8x4xf32> to vector<4x8x8x4xf32>
    %83 = vector.shape_cast %82 : vector<4x8x8x4xf32> to vector<256x4xf32>
    %c0_75 = arith.constant 0 : index
    %c48 = arith.constant 48 : index
    %84 = vector.load %arg5[%c0_75, %c48] : memref<256x128xf32, #tpu.memory_space<vmem>>, vector<256x4xf32>
    tpu.vector_store %arg5[%c0_75, %c48], %83 {strides = array<i32>} : memref<256x128xf32, #tpu.memory_space<vmem>>, vector<256x4xf32>,
    %c1_i32_76 = arith.constant 1 : i32
    %85 = arith.addi %0, %c1_i32_76 : i32
    %c0_77 = arith.constant 0 : index
    %86 = arith.index_cast %85 : i32 to index
    %c1_78 = arith.constant 1 : index
    %c1_79 = arith.constant 1 : index
    %c0_80 = arith.constant 0 : index
    %87 = vector.load %arg2[%c0_77, %86, %c1_78, %c1_79, %c0_80] : memref<1x10x10x10x4xf32, #tpu.memory_space<vmem>>, vector<1x4x8x8x4xf32>
    %88 = vector.shape_cast %87 : vector<1x4x8x8x4xf32> to vector<4x8x8x4xf32>
    %89 = vector.shape_cast %88 : vector<4x8x8x4xf32> to vector<256x4xf32>
    %c0_81 = arith.constant 0 : index
    %c52 = arith.constant 52 : index
    %90 = vector.load %arg5[%c0_81, %c52] : memref<256x128xf32, #tpu.memory_space<vmem>>, vector<256x4xf32>
    tpu.vector_store %arg5[%c0_81, %c52], %89 {strides = array<i32>} : memref<256x128xf32, #tpu.memory_space<vmem>>, vector<256x4xf32>,
    %c1_i32_82 = arith.constant 1 : i32
    %91 = arith.addi %0, %c1_i32_82 : i32
    %c0_83 = arith.constant 0 : index
    %92 = arith.index_cast %91 : i32 to index
    %c1_84 = arith.constant 1 : index
    %c2_85 = arith.constant 2 : index
    %c0_86 = arith.constant 0 : index
    %93 = vector.load %arg2[%c0_83, %92, %c1_84, %c2_85, %c0_86] : memref<1x10x10x10x4xf32, #tpu.memory_space<vmem>>, vector<1x4x8x8x4xf32>
    %94 = vector.shape_cast %93 : vector<1x4x8x8x4xf32> to vector<4x8x8x4xf32>
    %95 = vector.shape_cast %94 : vector<4x8x8x4xf32> to vector<256x4xf32>
    %c0_87 = arith.constant 0 : index
    %c56 = arith.constant 56 : index
    %96 = vector.load %arg5[%c0_87, %c56] : memref<256x128xf32, #tpu.memory_space<vmem>>, vector<256x4xf32>
    tpu.vector_store %arg5[%c0_87, %c56], %95 {strides = array<i32>} : memref<256x128xf32, #tpu.memory_space<vmem>>, vector<256x4xf32>,
    %c1_i32_88 = arith.constant 1 : i32
    %97 = arith.addi %0, %c1_i32_88 : i32
    %c0_89 = arith.constant 0 : index
    %98 = arith.index_cast %97 : i32 to index
    %c2_90 = arith.constant 2 : index
    %c0_91 = arith.constant 0 : index
    %c0_92 = arith.constant 0 : index
    %99 = vector.load %arg2[%c0_89, %98, %c2_90, %c0_91, %c0_92] : memref<1x10x10x10x4xf32, #tpu.memory_space<vmem>>, vector<1x4x8x8x4xf32>
    %100 = vector.shape_cast %99 : vector<1x4x8x8x4xf32> to vector<4x8x8x4xf32>
    %101 = vector.shape_cast %100 : vector<4x8x8x4xf32> to vector<256x4xf32>
    %c0_93 = arith.constant 0 : index
    %c60 = arith.constant 60 : index
    %102 = vector.load %arg5[%c0_93, %c60] : memref<256x128xf32, #tpu.memory_space<vmem>>, vector<256x4xf32>
    tpu.vector_store %arg5[%c0_93, %c60], %101 {strides = array<i32>} : memref<256x128xf32, #tpu.memory_space<vmem>>, vector<256x4xf32>,
    %c1_i32_94 = arith.constant 1 : i32
    %103 = arith.addi %0, %c1_i32_94 : i32
    %c0_95 = arith.constant 0 : index
    %104 = arith.index_cast %103 : i32 to index
    %c2_96 = arith.constant 2 : index
    %c1_97 = arith.constant 1 : index
    %c0_98 = arith.constant 0 : index
    %105 = vector.load %arg2[%c0_95, %104, %c2_96, %c1_97, %c0_98] : memref<1x10x10x10x4xf32, #tpu.memory_space<vmem>>, vector<1x4x8x8x4xf32>
    %106 = vector.shape_cast %105 : vector<1x4x8x8x4xf32> to vector<4x8x8x4xf32>
    %107 = vector.shape_cast %106 : vector<4x8x8x4xf32> to vector<256x4xf32>
    %c0_99 = arith.constant 0 : index
    %c64 = arith.constant 64 : index
    %108 = vector.load %arg5[%c0_99, %c64] : memref<256x128xf32, #tpu.memory_space<vmem>>, vector<256x4xf32>
    tpu.vector_store %arg5[%c0_99, %c64], %107 {strides = array<i32>} : memref<256x128xf32, #tpu.memory_space<vmem>>, vector<256x4xf32>,
    %c1_i32_100 = arith.constant 1 : i32
    %109 = arith.addi %0, %c1_i32_100 : i32
    %c0_101 = arith.constant 0 : index
    %110 = arith.index_cast %109 : i32 to index
    %c2_102 = arith.constant 2 : index
    %c2_103 = arith.constant 2 : index
    %c0_104 = arith.constant 0 : index
    %111 = vector.load %arg2[%c0_101, %110, %c2_102, %c2_103, %c0_104] : memref<1x10x10x10x4xf32, #tpu.memory_space<vmem>>, vector<1x4x8x8x4xf32>
    %112 = vector.shape_cast %111 : vector<1x4x8x8x4xf32> to vector<4x8x8x4xf32>
    %113 = vector.shape_cast %112 : vector<4x8x8x4xf32> to vector<256x4xf32>
    %c0_105 = arith.constant 0 : index
    %c68 = arith.constant 68 : index
    %114 = vector.load %arg5[%c0_105, %c68] : memref<256x128xf32, #tpu.memory_space<vmem>>, vector<256x4xf32>
    tpu.vector_store %arg5[%c0_105, %c68], %113 {strides = array<i32>} : memref<256x128xf32, #tpu.memory_space<vmem>>, vector<256x4xf32>,
    %c2_i32 = arith.constant 2 : i32
    %115 = arith.addi %0, %c2_i32 : i32
    %c0_106 = arith.constant 0 : index
    %116 = arith.index_cast %115 : i32 to index
    %c0_107 = arith.constant 0 : index
    %c0_108 = arith.constant 0 : index
    %c0_109 = arith.constant 0 : index
    %117 = vector.load %arg2[%c0_106, %116, %c0_107, %c0_108, %c0_109] : memref<1x10x10x10x4xf32, #tpu.memory_space<vmem>>, vector<1x4x8x8x4xf32>
    %118 = vector.shape_cast %117 : vector<1x4x8x8x4xf32> to vector<4x8x8x4xf32>
    %119 = vector.shape_cast %118 : vector<4x8x8x4xf32> to vector<256x4xf32>
    %c0_110 = arith.constant 0 : index
    %c72 = arith.constant 72 : index
    %120 = vector.load %arg5[%c0_110, %c72] : memref<256x128xf32, #tpu.memory_space<vmem>>, vector<256x4xf32>
    tpu.vector_store %arg5[%c0_110, %c72], %119 {strides = array<i32>} : memref<256x128xf32, #tpu.memory_space<vmem>>, vector<256x4xf32>,
    %c2_i32_111 = arith.constant 2 : i32
    %121 = arith.addi %0, %c2_i32_111 : i32
    %c0_112 = arith.constant 0 : index
    %122 = arith.index_cast %121 : i32 to index
    %c0_113 = arith.constant 0 : index
    %c1_114 = arith.constant 1 : index
    %c0_115 = arith.constant 0 : index
    %123 = vector.load %arg2[%c0_112, %122, %c0_113, %c1_114, %c0_115] : memref<1x10x10x10x4xf32, #tpu.memory_space<vmem>>, vector<1x4x8x8x4xf32>
    %124 = vector.shape_cast %123 : vector<1x4x8x8x4xf32> to vector<4x8x8x4xf32>
    %125 = vector.shape_cast %124 : vector<4x8x8x4xf32> to vector<256x4xf32>
    %c0_116 = arith.constant 0 : index
    %c76 = arith.constant 76 : index
    %126 = vector.load %arg5[%c0_116, %c76] : memref<256x128xf32, #tpu.memory_space<vmem>>, vector<256x4xf32>
    tpu.vector_store %arg5[%c0_116, %c76], %125 {strides = array<i32>} : memref<256x128xf32, #tpu.memory_space<vmem>>, vector<256x4xf32>,
    %c2_i32_117 = arith.constant 2 : i32
    %127 = arith.addi %0, %c2_i32_117 : i32
    %c0_118 = arith.constant 0 : index
    %128 = arith.index_cast %127 : i32 to index
    %c0_119 = arith.constant 0 : index
    %c2_120 = arith.constant 2 : index
    %c0_121 = arith.constant 0 : index
    %129 = vector.load %arg2[%c0_118, %128, %c0_119, %c2_120, %c0_121] : memref<1x10x10x10x4xf32, #tpu.memory_space<vmem>>, vector<1x4x8x8x4xf32>
    %130 = vector.shape_cast %129 : vector<1x4x8x8x4xf32> to vector<4x8x8x4xf32>
    %131 = vector.shape_cast %130 : vector<4x8x8x4xf32> to vector<256x4xf32>
    %c0_122 = arith.constant 0 : index
    %c80 = arith.constant 80 : index
    %132 = vector.load %arg5[%c0_122, %c80] : memref<256x128xf32, #tpu.memory_space<vmem>>, vector<256x4xf32>
    tpu.vector_store %arg5[%c0_122, %c80], %131 {strides = array<i32>} : memref<256x128xf32, #tpu.memory_space<vmem>>, vector<256x4xf32>,
    %c2_i32_123 = arith.constant 2 : i32
    %133 = arith.addi %0, %c2_i32_123 : i32
    %c0_124 = arith.constant 0 : index
    %134 = arith.index_cast %133 : i32 to index
    %c1_125 = arith.constant 1 : index
    %c0_126 = arith.constant 0 : index
    %c0_127 = arith.constant 0 : index
    %135 = vector.load %arg2[%c0_124, %134, %c1_125, %c0_126, %c0_127] : memref<1x10x10x10x4xf32, #tpu.memory_space<vmem>>, vector<1x4x8x8x4xf32>
    %136 = vector.shape_cast %135 : vector<1x4x8x8x4xf32> to vector<4x8x8x4xf32>
    %137 = vector.shape_cast %136 : vector<4x8x8x4xf32> to vector<256x4xf32>
    %c0_128 = arith.constant 0 : index
    %c84 = arith.constant 84 : index
    %138 = vector.load %arg5[%c0_128, %c84] : memref<256x128xf32, #tpu.memory_space<vmem>>, vector<256x4xf32>
    tpu.vector_store %arg5[%c0_128, %c84], %137 {strides = array<i32>} : memref<256x128xf32, #tpu.memory_space<vmem>>, vector<256x4xf32>,
    %c2_i32_129 = arith.constant 2 : i32
    %139 = arith.addi %0, %c2_i32_129 : i32
    %c0_130 = arith.constant 0 : index
    %140 = arith.index_cast %139 : i32 to index
    %c1_131 = arith.constant 1 : index
    %c1_132 = arith.constant 1 : index
    %c0_133 = arith.constant 0 : index
    %141 = vector.load %arg2[%c0_130, %140, %c1_131, %c1_132, %c0_133] : memref<1x10x10x10x4xf32, #tpu.memory_space<vmem>>, vector<1x4x8x8x4xf32>
    %142 = vector.shape_cast %141 : vector<1x4x8x8x4xf32> to vector<4x8x8x4xf32>
    %143 = vector.shape_cast %142 : vector<4x8x8x4xf32> to vector<256x4xf32>
    %c0_134 = arith.constant 0 : index
    %c88 = arith.constant 88 : index
    %144 = vector.load %arg5[%c0_134, %c88] : memref<256x128xf32, #tpu.memory_space<vmem>>, vector<256x4xf32>
    tpu.vector_store %arg5[%c0_134, %c88], %143 {strides = array<i32>} : memref<256x128xf32, #tpu.memory_space<vmem>>, vector<256x4xf32>,
    %c2_i32_135 = arith.constant 2 : i32
    %145 = arith.addi %0, %c2_i32_135 : i32
    %c0_136 = arith.constant 0 : index
    %146 = arith.index_cast %145 : i32 to index
    %c1_137 = arith.constant 1 : index
    %c2_138 = arith.constant 2 : index
    %c0_139 = arith.constant 0 : index
    %147 = vector.load %arg2[%c0_136, %146, %c1_137, %c2_138, %c0_139] : memref<1x10x10x10x4xf32, #tpu.memory_space<vmem>>, vector<1x4x8x8x4xf32>
    %148 = vector.shape_cast %147 : vector<1x4x8x8x4xf32> to vector<4x8x8x4xf32>
    %149 = vector.shape_cast %148 : vector<4x8x8x4xf32> to vector<256x4xf32>
    %c0_140 = arith.constant 0 : index
    %c92 = arith.constant 92 : index
    %150 = vector.load %arg5[%c0_140, %c92] : memref<256x128xf32, #tpu.memory_space<vmem>>, vector<256x4xf32>
    tpu.vector_store %arg5[%c0_140, %c92], %149 {strides = array<i32>} : memref<256x128xf32, #tpu.memory_space<vmem>>, vector<256x4xf32>,
    %c2_i32_141 = arith.constant 2 : i32
    %151 = arith.addi %0, %c2_i32_141 : i32
    %c0_142 = arith.constant 0 : index
    %152 = arith.index_cast %151 : i32 to index
    %c2_143 = arith.constant 2 : index
    %c0_144 = arith.constant 0 : index
    %c0_145 = arith.constant 0 : index
    %153 = vector.load %arg2[%c0_142, %152, %c2_143, %c0_144, %c0_145] : memref<1x10x10x10x4xf32, #tpu.memory_space<vmem>>, vector<1x4x8x8x4xf32>
    %154 = vector.shape_cast %153 : vector<1x4x8x8x4xf32> to vector<4x8x8x4xf32>
    %155 = vector.shape_cast %154 : vector<4x8x8x4xf32> to vector<256x4xf32>
    %c0_146 = arith.constant 0 : index
    %c96 = arith.constant 96 : index
    %156 = vector.load %arg5[%c0_146, %c96] : memref<256x128xf32, #tpu.memory_space<vmem>>, vector<256x4xf32>
    tpu.vector_store %arg5[%c0_146, %c96], %155 {strides = array<i32>} : memref<256x128xf32, #tpu.memory_space<vmem>>, vector<256x4xf32>,
    %c2_i32_147 = arith.constant 2 : i32
    %157 = arith.addi %0, %c2_i32_147 : i32
    %c0_148 = arith.constant 0 : index
    %158 = arith.index_cast %157 : i32 to index
    %c2_149 = arith.constant 2 : index
    %c1_150 = arith.constant 1 : index
    %c0_151 = arith.constant 0 : index
    %159 = vector.load %arg2[%c0_148, %158, %c2_149, %c1_150, %c0_151] : memref<1x10x10x10x4xf32, #tpu.memory_space<vmem>>, vector<1x4x8x8x4xf32>
    %160 = vector.shape_cast %159 : vector<1x4x8x8x4xf32> to vector<4x8x8x4xf32>
    %161 = vector.shape_cast %160 : vector<4x8x8x4xf32> to vector<256x4xf32>
    %c0_152 = arith.constant 0 : index
    %c100 = arith.constant 100 : index
    %162 = vector.load %arg5[%c0_152, %c100] : memref<256x128xf32, #tpu.memory_space<vmem>>, vector<256x4xf32>
    tpu.vector_store %arg5[%c0_152, %c100], %161 {strides = array<i32>} : memref<256x128xf32, #tpu.memory_space<vmem>>, vector<256x4xf32>,
    %c2_i32_153 = arith.constant 2 : i32
    %163 = arith.addi %0, %c2_i32_153 : i32
    %c0_154 = arith.constant 0 : index
    %164 = arith.index_cast %163 : i32 to index
    %c2_155 = arith.constant 2 : index
    %c2_156 = arith.constant 2 : index
    %c0_157 = arith.constant 0 : index
    %165 = vector.load %arg2[%c0_154, %164, %c2_155, %c2_156, %c0_157] : memref<1x10x10x10x4xf32, #tpu.memory_space<vmem>>, vector<1x4x8x8x4xf32>
    %166 = vector.shape_cast %165 : vector<1x4x8x8x4xf32> to vector<4x8x8x4xf32>
    %167 = vector.shape_cast %166 : vector<4x8x8x4xf32> to vector<256x4xf32>
    %c0_158 = arith.constant 0 : index
    %c104 = arith.constant 104 : index
    %168 = vector.load %arg5[%c0_158, %c104] : memref<256x128xf32, #tpu.memory_space<vmem>>, vector<256x4xf32>
    tpu.vector_store %arg5[%c0_158, %c104], %167 {strides = array<i32>} : memref<256x128xf32, #tpu.memory_space<vmem>>, vector<256x4xf32>,
    %c0_159 = arith.constant 0 : index
    %c0_160 = arith.constant 0 : index
    %169 = vector.load %arg5[%c0_159, %c0_160] : memref<256x128xf32, #tpu.memory_space<vmem>>, vector<256x128xf32>
    %c0_161 = arith.constant 0 : index
    %c0_162 = arith.constant 0 : index
    %170 = vector.load %arg3[%c0_161, %c0_162] : memref<128x128xf32, #tpu.memory_space<vmem>>, vector<128x128xf32>
    %cst = arith.constant dense<0.000000e+00> : vector<256x128xf32>
    %171 = tpu.matmul %169, %170, %cst {dimension_numbers = #tpu.dot_dimension_numbers<[1], [0], [0], [1], [0, 0, 1, 1], [], []>} : vector<256x128xf32>, vector<128x128xf32>, vector<256x128xf32> -> vector<256x128xf32>
    %172 = vector.shape_cast %171 : vector<256x128xf32> to vector<1x256x128xf32>
    %c0_163 = arith.constant 0 : index
    %c0_164 = arith.constant 0 : index
    %c0_165 = arith.constant 0 : index
    %173 = vector.load %arg4[%c0_163, %c0_164, %c0_165] : memref<1x256x128xf32, #tpu.memory_space<vmem>>, vector<1x256x128xf32>
    tpu.vector_store %arg4[%c0_163, %c0_164, %c0_165], %172 {strides = array<i32>} : memref<1x256x128xf32, #tpu.memory_space<vmem>>, vector<1x256x128xf32>,
    return
  }
  func.func @transform_0(%arg0: i32, %arg1: i32) -> (i32, i32, i32, i32, i32) {
    %c0_i32 = arith.constant 0 : i32
    %c0_i32_0 = arith.constant 0 : i32
    %c0_i32_1 = arith.constant 0 : i32
    %c0_i32_2 = arith.constant 0 : i32
    %c0_i32_3 = arith.constant 0 : i32
    return %arg0, %c0_i32, %c0_i32_0, %c0_i32_1, %c0_i32_2 : i32, i32, i32, i32, i32
  }
  func.func @transform_1(%arg0: i32, %arg1: i32) -> (i32, i32) {
    %c0_i32 = arith.constant 0 : i32
    %c0_i32_0 = arith.constant 0 : i32
    %c0_i32_1 = arith.constant 0 : i32
    return %c0_i32, %c0_i32_0 : i32, i32
  }
  func.func @transform_2(%arg0: i32, %arg1: i32) -> (i32, i32, i32) {
    %c0_i32 = arith.constant 0 : i32
    %c0_i32_0 = arith.constant 0 : i32
    return %arg0, %arg1, %c0_i32 : i32, i32, i32
  }
}

</mosaic_0001>

<llo_original>
// kernel: tpu_custom_call.1
$region0: #{tpu_custom_call.1}
  #allocation0 [shape = 'u32[]', space=smem, size = 0x4, offset = 0x4, fixed_abs, tag = 'smem constant byte address 0x4 - core index']
  #allocation1 [shape = 'u32[72,128]{1,0:T(1,128)}', space=vmem, size = 0x9000, scoped, tag = 'internal scratch']
  #allocation2 [shape = 'f32[256,128]{1,0:T(8,128)}', space=vmem, size = 0x20000, scoped, tag = 'scratch operand']
  %s0 = inlined_call_operand.vmem [shape: f32[2,10,10,10,4], index: 0, kind: input, shape index: {}]
  %s1 = inlined_call_operand.vmem [shape: f32[128,128], index: 1, kind: input, shape index: {}]
  %s2 = inlined_call_operand.hbm [shape: f32[2,512,128], index: 2, kind: output, shape index: {}]
  %s3 = sld [smem:[#allocation0]]
  $region41: #{tpu_custom_call.1} parent=0
    _
  %s5 = ssub.s32 1, %s3
  %s6 = scalar_select 0, %s5, %s3
  $region1: #{tpu_custom_call.1} parent=0
    #allocation3 [shape = 'u8[262144]{0}', space=vmem, size = 0x40000, scoped, tag = 'output window, operand 0']
    #allocation4 [shape = 's32[2]{0}', space=sflag, size = 0x8, scoped, tag = 'scoped memory for tpu_custom_call.1']
    %7 = vsyncpa [#allocation4], 0
    %s8 = scalar_lea.sflag [#allocation4], 1
    %9 = vsyncpa %s8, 0
    loop: start=0, step=1, limit=6
    $region2: #{tpu_custom_call.1} parent=1 // loop_pre_header
      _
    $region3: #{tpu_custom_call.1} parent=1 // loop_header
      %s11 = sphi 0, %s15
      %p12 = scmp.ge.s32.totalorder %s11, 6
      %s18 = sphi 0, %s30
      %s19 = sphi 0, %s26
      %s20 = sphi 0, %s18
      %s21 = sphi 0, %s19
      %s22 = sphi 0, %s20
      %s23 = sphi 0, %s21
      %s33 = sphi 0, %s35
      %s36 = sphi 0, %s33
      %s37 = sphi 0, %s36
      %s53 = sphi 0, %s37
      %s57 = sphi 0, %s57
      %s59 = sphi 0, %s57
      %s60 = sphi 0, %s59
      %s74 = sphi 0, %s60
      %s82 = sphi 0, %s84
      %s85 = sphi 0, %s82
      %s86 = sphi 0, %s85
      %s102 = sphi 0, %s86
    $region4: #{tpu_custom_call.1} parent=1 // loop_header_branch
      %14 = sbr.rel (%p12) target = $region8
    $region5: #{tpu_custom_call.1} parent=1 // loop_body
      %s16 = ssub.s32 %s11, 1
      %s17 = ssub.s32 %s11, 2
      %s24 = sadd.s32 1, %s19
      %p25 = scmp.ge.s32.totalorder %s24, 2
      %s26 = scalar_select %p25, 0, %s24
      %s27 = sadd.s32 1, %s18
      %s28 = scalar_select %p25, %s27, %s18
      %p29 = scmp.ge.s32.totalorder %s28, 2
      %s30 = scalar_select %p29, 0, %s28
      %s31 = ssub.s32 %s18, %s30
      %p32 = scmp.eq.s32.totalorder %s31, 0
      %s34 = sadd.s32 %s33, 1
      %s35 = scalar_select %p32, %s33, %s34
      %p38 = pneg %p32
      %p39 = scmp.eq.s32.totalorder %s11, 3
      %p40 = por %p38, %p39
      %p41 = scmp.ne.s32.totalorder %s33, %s36
      %p42 = scmp.eq.s32.totalorder %s11, 0
      %p43 = por %p41, %p42
      %p44 = scmp.ne.s32.totalorder %s33, %s36
      %p45 = scmp.eq.s32.totalorder %s16, 3
      %p46 = por %p44, %p45
      %p47 = scmp.ne.s32.totalorder %s36, %s37
      %p48 = scmp.eq.s32.totalorder %s16, 0
      %p49 = por %p47, %p48
      %p50 = scmp.ne.s32.totalorder %s36, %s37
      %p51 = scmp.eq.s32.totalorder %s17, 3
      %p52 = por %p50, %p51
      %p54 = scmp.ne.s32.totalorder %s37, %s53
      %p55 = scmp.eq.s32.totalorder %s17, 0
      %p56 = por %p54, %p55
      %s58 = sadd.s32 %s57, 1
      %p61 = scmp.eq.s32.totalorder %s11, 3
      %p62 = scmp.ne.s32.totalorder %s57, %s59
      %p63 = scmp.eq.s32.totalorder %s11, 0
      %p64 = por %p62, %p63
      %p65 = scmp.ne.s32.totalorder %s57, %s59
      %p66 = scmp.eq.s32.totalorder %s16, 3
      %p67 = por %p65, %p66
      %p68 = scmp.ne.s32.totalorder %s59, %s60
      %p69 = scmp.eq.s32.totalorder %s16, 0
      %p70 = por %p68, %p69
      %p71 = scmp.ne.s32.totalorder %s59, %s60
      %p72 = scmp.eq.s32.totalorder %s17, 3
      %p73 = por %p71, %p72
      %p75 = scmp.ne.s32.totalorder %s60, %s74
      %p76 = scmp.eq.s32.totalorder %s17, 0
      %p77 = por %p75, %p76
      %s78 = ssub.s32 %s18, %s30
      %s79 = ssub.s32 %s19, %s26
      %s80 = sor.u32 %s78, %s79
      %p81 = scmp.eq.s32.totalorder %s80, 0
      %s83 = sadd.s32 %s82, 1
      %s84 = scalar_select %p81, %s82, %s83
      %p87 = pneg %p81
      %p88 = scmp.eq.s32.totalorder %s11, 3
      %p89 = por %p87, %p88
      %p90 = scmp.ne.s32.totalorder %s82, %s85
      %p91 = scmp.eq.s32.totalorder %s11, 0
      %p92 = por %p90, %p91
      %p93 = scmp.ne.s32.totalorder %s82, %s85
      %p94 = scmp.eq.s32.totalorder %s16, 3
      %p95 = por %p93, %p94
      %p96 = scmp.ne.s32.totalorder %s85, %s86
      %p97 = scmp.eq.s32.totalorder %s16, 0
      %p98 = por %p96, %p97
      %p99 = scmp.ne.s32.totalorder %s85, %s86
      %p100 = scmp.eq.s32.totalorder %s17, 3
      %p101 = por %p99, %p100
      %p103 = scmp.ne.s32.totalorder %s86, %s102
      %p104 = scmp.eq.s32.totalorder %s17, 0
      %p105 = por %p103, %p104
      %p106 = scmp.le.s32.totalorder 1, %s11
      %p107 = scmp.lt.s32.totalorder %s11, 5
      %p108 = pnand %p106, %p107
      %p109 = pneg %p108
      // Predicated region
      $region9: #{tpu_custom_call.1} parent=5 // pred_check
        _
      $region10: #{tpu_custom_call.1} parent=5 // pred_check_branch
        %111 = sbr.rel (%p108) target = $region12
      $region11: #{tpu_custom_call.1} parent=5 // pred_region
        %s112 = ssub.s32 %s11, 1
        // Predicated region
        $region13: #{tpu_custom_call.1} parent=11 // pred_check
          %p113 = pneg %p70
        $region14: #{tpu_custom_call.1} parent=11 // pred_check_branch
          %115 = sbr.rel (%p113) target = $region16
        $region15: #{tpu_custom_call.1} parent=11 // pred_region
          _
        $region16: #{tpu_custom_call.1} parent=11 // pred_fallthru
          _
      $region12: #{tpu_custom_call.1} parent=5 // pred_fallthru
        _
      %p116 = scmp.lt.s32.totalorder %s11, 4
      // Predicated region
      $region17: #{tpu_custom_call.1} parent=5 // pred_check
        %p117 = pneg %p116
      $region18: #{tpu_custom_call.1} parent=5 // pred_check_branch
        %119 = sbr.rel (%p117) target = $region20
      $region19: #{tpu_custom_call.1} parent=5 // pred_region
        // Predicated region
        $region21: #{tpu_custom_call.1} parent=19 // pred_check
          %p120 = pneg %p43
        $region22: #{tpu_custom_call.1} parent=19 // pred_check_branch
          %122 = sbr.rel (%p120) target = $region24
        $region23: #{tpu_custom_call.1} parent=19 // pred_region
          %p123 = scmp.lt.s32.totalorder %s18, 1
          %s124 = scalar_select %p123, %s18, 1
          %s125 = smul.addr %s124, 200
          %s126 = smul.addr %s125, 8
          %s127 = scalar_lea.vmem %s0, %s126
        $region24: #{tpu_custom_call.1} parent=19 // pred_fallthru
          _
      $region20: #{tpu_custom_call.1} parent=5 // pred_fallthru
        _
      %p128 = scmp.le.s32.totalorder 1, %s11
      %p129 = scmp.lt.s32.totalorder %s11, 5
      %p130 = pnand %p128, %p129
      %p131 = pneg %p130
      // Predicated region
      $region25: #{tpu_custom_call.1} parent=5 // pred_check
        _
      $region26: #{tpu_custom_call.1} parent=5 // pred_check_branch
        %133 = sbr.rel (%p130) target = $region28
      $region27: #{tpu_custom_call.1} parent=5 // pred_region
        %s134 = ssub.s32 %s11, 1
        %p135 = scmp.lt.s32.totalorder %s20, 1
        %s136 = scalar_select %p135, %s20, 1
        %s137 = smul.addr %s136, 200
        %s138 = smul.addr %s137, 8
        %s139 = scalar_lea.vmem %s0, %s138
        %p140 = pneg %p49
        %p141 = pneg %p46
        %p142 = pneg %p70
        %p143 = pneg %p67
        %p144 = pneg %p98
        %p145 = pneg %p95
        %s146 = sand.u32 %s85, 1
        %s147 = scalar_lea.sflag [#allocation4], %s146
        %s148 = sand.u32 %s85, 1
        %s149 = smul.addr %s148, 256
        %s150 = scalar_lea.vmem [#allocation3], %s149
        %p151 = scmp.lt.s32.totalorder %s20, 1
        %s152 = scalar_select %p151, %s20, 1
        %s153 = smul.addr %s152, 200
        %s154 = smul.addr %s153, 8
        %s155 = scalar_lea.vmem %s0, %s154
        %s156 = smul.u32 32, %s21
        %s157 = smul.u32 %s21, 4
        %v158 = vlaneseq
        %v159 = vand.u32 %v158, 127
        %vm160 = vcmp.eq.s32.totalorder %v159, 0
        %v161 = vsel %vm160, 1, 0
        %v162 = vcvt.s32.f32 %v161
        %164 = vrot.lane.b32.xlu0 %v162, 108
        %v165 = vpop.permute.xlu0 %164
        %vm167 = vcmask 1048416
        %168 = vst.msk [vmem:[#allocation2] sm:$0xff] %vm167, %v165
        %169 = vst.msk [vmem:[#allocation2 + $0x8] sm:$0xff] %vm167, %v165
        %170 = vst.msk [vmem:[#allocation2 + $0x10] sm:$0xff] %vm167, %v165
        %171 = vst.msk [vmem:[#allocation2 + $0x18] sm:$0xff] %vm167, %v165
        %172 = vst.msk [vmem:[#allocation2 + $0x20] sm:$0xff] %vm167, %v165
        %173 = vst.msk [vmem:[#allocation2 + $0x28] sm:$0xff] %vm167, %v165
        %174 = vst.msk [vmem:[#allocation2 + $0x30] sm:$0xff] %vm167, %v165
        %175 = vst.msk [vmem:[#allocation2 + $0x38] sm:$0xff] %vm167, %v165
        %176 = vst.msk [vmem:[#allocation2 + $0x40] sm:$0xff] %vm167, %v165
        %177 = vst.msk [vmem:[#allocation2 + $0x48] sm:$0xff] %vm167, %v165
        %178 = vst.msk [vmem:[#allocation2 + $0x50] sm:$0xff] %vm167, %v165
        %179 = vst.msk [vmem:[#allocation2 + $0x58] sm:$0xff] %vm167, %v165
        %180 = vst.msk [vmem:[#allocation2 + $0x60] sm:$0xff] %vm167, %v165
        %181 = vst.msk [vmem:[#allocation2 + $0x68] sm:$0xff] %vm167, %v165
        %182 = vst.msk [vmem:[#allocation2 + $0x70] sm:$0xff] %vm167, %v165
        %183 = vst.msk [vmem:[#allocation2 + $0x78] sm:$0xff] %vm167, %v165
        %184 = vst.msk [vmem:[#allocation2 + $0x80] sm:$0xff] %vm167, %v165
        %185 = vst.msk [vmem:[#allocation2 + $0x88] sm:$0xff] %vm167, %v165
        %186 = vst.msk [vmem:[#allocation2 + $0x90] sm:$0xff] %vm167, %v165
        %187 = vst.msk [vmem:[#allocation2 + $0x98] sm:$0xff] %vm167, %v165
        %188 = vst.msk [vmem:[#allocation2 + $0xa0] sm:$0xff] %vm167, %v165
        %189 = vst.msk [vmem:[#allocation2 + $0xa8] sm:$0xff] %vm167, %v165
        %190 = vst.msk [vmem:[#allocation2 + $0xb0] sm:$0xff] %vm167, %v165
        %191 = vst.msk [vmem:[#allocation2 + $0xb8] sm:$0xff] %vm167, %v165
        %192 = vst.msk [vmem:[#allocation2 + $0xc0] sm:$0xff] %vm167, %v165
        %193 = vst.msk [vmem:[#allocation2 + $0xc8] sm:$0xff] %vm167, %v165
        %194 = vst.msk [vmem:[#allocation2 + $0xd0] sm:$0xff] %vm167, %v165
        %195 = vst.msk [vmem:[#allocation2 + $0xd8] sm:$0xff] %vm167, %v165
        %196 = vst.msk [vmem:[#allocation2 + $0xe0] sm:$0xff] %vm167, %v165
        %197 = vst.msk [vmem:[#allocation2 + $0xe8] sm:$0xff] %vm167, %v165
        %198 = vst.msk [vmem:[#allocation2 + $0xf0] sm:$0xff] %vm167, %v165
        %199 = vst.msk [vmem:[#allocation2 + $0xf8] sm:$0xff] %vm167, %v165
        %s200 = smul.u32 %s157, 160
        %s201 = scalar_lea.vmem %s155, %s200
        %v202 = vld [vmem:[%s201] sm:$0xff]
        %v203 = vld [vmem:[%s201 + $0x10] sm:$0xff]
        %v204 = vld [vmem:[%s201 + $0x20] sm:$0xff]
        %v205 = vld [vmem:[%s201 + $0x30] sm:$0xff]
        %v206 = vld [vmem:[%s201 + $0x40] sm:$0xff]
        %v207 = vld [vmem:[%s201 + $0x50] sm:$0xff]
        %v208 = vld [vmem:[%s201 + $0x60] sm:$0xff]
        %v209 = vld [vmem:[%s201 + $0x70] sm:$0xff]
        %v210 = vld [vmem:[%s201 + $0xa0] sm:$0xff]
        %v211 = vld [vmem:[%s201 + $0xb0] sm:$0xff]
        %v212 = vld [vmem:[%s201 + $0xc0] sm:$0xff]
        %v213 = vld [vmem:[%s201 + $0xd0] sm:$0xff]
        %v214 = vld [vmem:[%s201 + $0xe0] sm:$0xff]
        %v215 = vld [vmem:[%s201 + $0xf0] sm:$0xff]
        %v216 = vld [vmem:[%s201 + $0x100] sm:$0xff]
        %v217 = vld [vmem:[%s201 + $0x110] sm:$0xff]
        %v218 = vld [vmem:[%s201 + $0x140] sm:$0xff]
        %v219 = vld [vmem:[%s201 + $0x150] sm:$0xff]
        %v220 = vld [vmem:[%s201 + $0x160] sm:$0xff]
        %v221 = vld [vmem:[%s201 + $0x170] sm:$0xff]
        %v222 = vld [vmem:[%s201 + $0x180] sm:$0xff]
        %v223 = vld [vmem:[%s201 + $0x190] sm:$0xff]
        %v224 = vld [vmem:[%s201 + $0x1a0] sm:$0xff]
        %v225 = vld [vmem:[%s201 + $0x1b0] sm:$0xff]
        %v226 = vld [vmem:[%s201 + $0x1e0] sm:$0xff]
        %v227 = vld [vmem:[%s201 + $0x1f0] sm:$0xff]
        %v228 = vld [vmem:[%s201 + $0x200] sm:$0xff]
        %v229 = vld [vmem:[%s201 + $0x210] sm:$0xff]
        %v230 = vld [vmem:[%s201 + $0x220] sm:$0xff]
        %v231 = vld [vmem:[%s201 + $0x230] sm:$0xff]
        %v232 = vld [vmem:[%s201 + $0x240] sm:$0xff]
        %v233 = vld [vmem:[%s201 + $0x250] sm:$0xff]
        %vm234 = vcmask 31744
        %235 = vst.msk [vmem:[#allocation2] sm:$0xff] %vm234, %v202
        %236 = vst.msk [vmem:[#allocation2 + $0x8] sm:$0xff] %vm234, %v203
        %237 = vst.msk [vmem:[#allocation2 + $0x10] sm:$0xff] %vm234, %v204
        %238 = vst.msk [vmem:[#allocation2 + $0x18] sm:$0xff] %vm234, %v205
        %239 = vst.msk [vmem:[#allocation2 + $0x20] sm:$0xff] %vm234, %v206
        %240 = vst.msk [vmem:[#allocation2 + $0x28] sm:$0xff] %vm234, %v207
        %241 = vst.msk [vmem:[#allocation2 + $0x30] sm:$0xff] %vm234, %v208
        %242 = vst.msk [vmem:[#allocation2 + $0x38] sm:$0xff] %vm234, %v209
        %243 = vst.msk [vmem:[#allocation2 + $0x40] sm:$0xff] %vm234, %v210
        %244 = vst.msk [vmem:[#allocation2 + $0x48] sm:$0xff] %vm234, %v211
        %245 = vst.msk [vmem:[#allocation2 + $0x50] sm:$0xff] %vm234, %v212
        %246 = vst.msk [vmem:[#allocation2 + $0x58] sm:$0xff] %vm234, %v213
        %247 = vst.msk [vmem:[#allocation2 + $0x60] sm:$0xff] %vm234, %v214
        %248 = vst.msk [vmem:[#allocation2 + $0x68] sm:$0xff] %vm234, %v215
        %249 = vst.msk [vmem:[#allocation2 + $0x70] sm:$0xff] %vm234, %v216
        %250 = vst.msk [vmem:[#allocation2 + $0x78] sm:$0xff] %vm234, %v217
        %251 = vst.msk [vmem:[#allocation2 + $0x80] sm:$0xff] %vm234, %v218
        %252 = vst.msk [vmem:[#allocation2 + $0x88] sm:$0xff] %vm234, %v219
        %253 = vst.msk [vmem:[#allocation2 + $0x90] sm:$0xff] %vm234, %v220
        %254 = vst.msk [vmem:[#allocation2 + $0x98] sm:$0xff] %vm234, %v221
        %255 = vst.msk [vmem:[#allocation2 + $0xa0] sm:$0xff] %vm234, %v222
        %256 = vst.msk [vmem:[#allocation2 + $0xa8] sm:$0xff] %vm234, %v223
        %257 = vst.msk [vmem:[#allocation2 + $0xb0] sm:$0xff] %vm234, %v224
        %258 = vst.msk [vmem:[#allocation2 + $0xb8] sm:$0xff] %vm234, %v225
        %259 = vst.msk [vmem:[#allocation2 + $0xc0] sm:$0xff] %vm234, %v226
        %260 = vst.msk [vmem:[#allocation2 + $0xc8] sm:$0xff] %vm234, %v227
        %261 = vst.msk [vmem:[#allocation2 + $0xd0] sm:$0xff] %vm234, %v228
        %262 = vst.msk [vmem:[#allocation2 + $0xd8] sm:$0xff] %vm234, %v229
        %263 = vst.msk [vmem:[#allocation2 + $0xe0] sm:$0xff] %vm234, %v230
        %264 = vst.msk [vmem:[#allocation2 + $0xe8] sm:$0xff] %vm234, %v231
        %265 = vst.msk [vmem:[#allocation2 + $0xf0] sm:$0xff] %vm234, %v232
        %266 = vst.msk [vmem:[#allocation2 + $0xf8] sm:$0xff] %vm234, %v233
        %v267 = vld [vmem:[%s201 + $0x1] sm:$0xff]
        %v268 = vld [vmem:[%s201 + $0x11] sm:$0xff]
        %v269 = vld [vmem:[%s201 + $0x21] sm:$0xff]
        %v270 = vld [vmem:[%s201 + $0x31] sm:$0xff]
        %v271 = vld [vmem:[%s201 + $0x41] sm:$0xff]
        %v272 = vld [vmem:[%s201 + $0x51] sm:$0xff]
        %v273 = vld [vmem:[%s201 + $0x61] sm:$0xff]
        %v274 = vld [vmem:[%s201 + $0x71] sm:$0xff]
        %v275 = vld [vmem:[%s201 + $0xa1] sm:$0xff]
        %v276 = vld [vmem:[%s201 + $0xb1] sm:$0xff]
        %v277 = vld [vmem:[%s201 + $0xc1] sm:$0xff]
        %v278 = vld [vmem:[%s201 + $0xd1] sm:$0xff]
        %v279 = vld [vmem:[%s201 + $0xe1] sm:$0xff]
        %v280 = vld [vmem:[%s201 + $0xf1] sm:$0xff]
        %v281 = vld [vmem:[%s201 + $0x101] sm:$0xff]
        %v282 = vld [vmem:[%s201 + $0x111] sm:$0xff]
        %v283 = vld [vmem:[%s201 + $0x141] sm:$0xff]
        %v284 = vld [vmem:[%s201 + $0x151] sm:$0xff]
        %v285 = vld [vmem:[%s201 + $0x161] sm:$0xff]
        %v286 = vld [vmem:[%s201 + $0x171] sm:$0xff]
        %v287 = vld [vmem:[%s201 + $0x181] sm:$0xff]
        %v288 = vld [vmem:[%s201 + $0x191] sm:$0xff]
        %v289 = vld [vmem:[%s201 + $0x1a1] sm:$0xff]
        %v290 = vld [vmem:[%s201 + $0x1b1] sm:$0xff]
        %v291 = vld [vmem:[%s201 + $0x1e1] sm:$0xff]
        %v292 = vld [vmem:[%s201 + $0x1f1] sm:$0xff]
        %v293 = vld [vmem:[%s201 + $0x201] sm:$0xff]
        %v294 = vld [vmem:[%s201 + $0x211] sm:$0xff]
        %v295 = vld [vmem:[%s201 + $0x221] sm:$0xff]
        %v296 = vld [vmem:[%s201 + $0x231] sm:$0xff]
        %v297 = vld [vmem:[%s201 + $0x241] sm:$0xff]
        %v298 = vld [vmem:[%s201 + $0x251] sm:$0xff]
        %331 = vrot.lane.b32.xlu0 %v267, 4
        %v332 = vpop.permute.xlu0 %331
        %333 = vrot.lane.b32.xlu0 %v268, 4
        %v334 = vpop.permute.xlu0 %333
        %335 = vrot.lane.b32.xlu0 %v269, 4
        %v336 = vpop.permute.xlu0 %335
        %337 = vrot.lane.b32.xlu0 %v270, 4
        %v338 = vpop.permute.xlu0 %337
        %339 = vrot.lane.b32.xlu0 %v271, 4
        %v340 = vpop.permute.xlu0 %339
        %341 = vrot.lane.b32.xlu0 %v272, 4
        %v342 = vpop.permute.xlu0 %341
        %343 = vrot.lane.b32.xlu0 %v273, 4
        %v344 = vpop.permute.xlu0 %343
        %345 = vrot.lane.b32.xlu0 %v274, 4
        %v346 = vpop.permute.xlu0 %345
        %347 = vrot.lane.b32.xlu0 %v275, 4
        %v348 = vpop.permute.xlu0 %347
        %349 = vrot.lane.b32.xlu0 %v276, 4
        %v350 = vpop.permute.xlu0 %349
        %351 = vrot.lane.b32.xlu0 %v277, 4
        %v352 = vpop.permute.xlu0 %351
        %353 = vrot.lane.b32.xlu0 %v278, 4
        %v354 = vpop.permute.xlu0 %353
        %355 = vrot.lane.b32.xlu0 %v279, 4
        %v356 = vpop.permute.xlu0 %355
        %357 = vrot.lane.b32.xlu0 %v280, 4
        %v358 = vpop.permute.xlu0 %357
        %359 = vrot.lane.b32.xlu0 %v281, 4
        %v360 = vpop.permute.xlu0 %359
        %361 = vrot.lane.b32.xlu0 %v282, 4
        %v362 = vpop.permute.xlu0 %361
        %363 = vrot.lane.b32.xlu0 %v283, 4
        %v364 = vpop.permute.xlu0 %363
        %365 = vrot.lane.b32.xlu0 %v284, 4
        %v366 = vpop.permute.xlu0 %365
        %367 = vrot.lane.b32.xlu0 %v285, 4
        %v368 = vpop.permute.xlu0 %367
        %369 = vrot.lane.b32.xlu0 %v286, 4
        %v370 = vpop.permute.xlu0 %369
        %371 = vrot.lane.b32.xlu0 %v287, 4
        %v372 = vpop.permute.xlu0 %371
        %373 = vrot.lane.b32.xlu0 %v288, 4
        %v374 = vpop.permute.xlu0 %373
        %375 = vrot.lane.b32.xlu0 %v289, 4
        %v376 = vpop.permute.xlu0 %375
        %377 = vrot.lane.b32.xlu0 %v290, 4
        %v378 = vpop.permute.xlu0 %377
        %379 = vrot.lane.b32.xlu0 %v291, 4
        %v380 = vpop.permute.xlu0 %379
        %381 = vrot.lane.b32.xlu0 %v292, 4
        %v382 = vpop.permute.xlu0 %381
        %383 = vrot.lane.b32.xlu0 %v293, 4
        %v384 = vpop.permute.xlu0 %383
        %385 = vrot.lane.b32.xlu0 %v294, 4
        %v386 = vpop.permute.xlu0 %385
        %387 = vrot.lane.b32.xlu0 %v295, 4
        %v388 = vpop.permute.xlu0 %387
        %389 = vrot.lane.b32.xlu0 %v296, 4
        %v390 = vpop.permute.xlu0 %389
        %391 = vrot.lane.b32.xlu0 %v297, 4
        %v392 = vpop.permute.xlu0 %391
        %393 = vrot.lane.b32.xlu0 %v298, 4
        %v394 = vpop.permute.xlu0 %393
        %vm427 = vcmask 64544
        %428 = vst.msk [vmem:[#allocation2] sm:$0xff] %vm427, %v332
        %429 = vst.msk [vmem:[#allocation2 + $0x8] sm:$0xff] %vm427, %v334
        %430 = vst.msk [vmem:[#allocation2 + $0x10] sm:$0xff] %vm427, %v336
        %431 = vst.msk [vmem:[#allocation2 + $0x18] sm:$0xff] %vm427, %v338
        %432 = vst.msk [vmem:[#allocation2 + $0x20] sm:$0xff] %vm427, %v340
        %433 = vst.msk [vmem:[#allocation2 + $0x28] sm:$0xff] %vm427, %v342
        %434 = vst.msk [vmem:[#allocation2 + $0x30] sm:$0xff] %vm427, %v344
        %435 = vst.msk [vmem:[#allocation2 + $0x38] sm:$0xff] %vm427, %v346
        %436 = vst.msk [vmem:[#allocation2 + $0x40] sm:$0xff] %vm427, %v348
        %437 = vst.msk [vmem:[#allocation2 + $0x48] sm:$0xff] %vm427, %v350
        %438 = vst.msk [vmem:[#allocation2 + $0x50] sm:$0xff] %vm427, %v352
        %439 = vst.msk [vmem:[#allocation2 + $0x58] sm:$0xff] %vm427, %v354
        %440 = vst.msk [vmem:[#allocation2 + $0x60] sm:$0xff] %vm427, %v356
        %441 = vst.msk [vmem:[#allocation2 + $0x68] sm:$0xff] %vm427, %v358
        %442 = vst.msk [vmem:[#allocation2 + $0x70] sm:$0xff] %vm427, %v360
        %443 = vst.msk [vmem:[#allocation2 + $0x78] sm:$0xff] %vm427, %v362
        %444 = vst.msk [vmem:[#allocation2 + $0x80] sm:$0xff] %vm427, %v364
        %445 = vst.msk [vmem:[#allocation2 + $0x88] sm:$0xff] %vm427, %v366
        %446 = vst.msk [vmem:[#allocation2 + $0x90] sm:$0xff] %vm427, %v368
        %447 = vst.msk [vmem:[#allocation2 + $0x98] sm:$0xff] %vm427, %v370
        %448 = vst.msk [vmem:[#allocation2 + $0xa0] sm:$0xff] %vm427, %v372
        %449 = vst.msk [vmem:[#allocation2 + $0xa8] sm:$0xff] %vm427, %v374
        %450 = vst.msk [vmem:[#allocation2 + $0xb0] sm:$0xff] %vm427, %v376
        %451 = vst.msk [vmem:[#allocation2 + $0xb8] sm:$0xff] %vm427, %v378
        %452 = vst.msk [vmem:[#allocation2 + $0xc0] sm:$0xff] %vm427, %v380
        %453 = vst.msk [vmem:[#allocation2 + $0xc8] sm:$0xff] %vm427, %v382
        %454 = vst.msk [vmem:[#allocation2 + $0xd0] sm:$0xff] %vm427, %v384
        %455 = vst.msk [vmem:[#allocation2 + $0xd8] sm:$0xff] %vm427, %v386
        %456 = vst.msk [vmem:[#allocation2 + $0xe0] sm:$0xff] %vm427, %v388
        %457 = vst.msk [vmem:[#allocation2 + $0xe8] sm:$0xff] %vm427, %v390
        %458 = vst.msk [vmem:[#allocation2 + $0xf0] sm:$0xff] %vm427, %v392
        %459 = vst.msk [vmem:[#allocation2 + $0xf8] sm:$0xff] %vm427, %v394
        %v460 = vld [vmem:[%s201 + $0x2] sm:$0xff]
        %v461 = vld [vmem:[%s201 + $0x12] sm:$0xff]
        %v462 = vld [vmem:[%s201 + $0x22] sm:$0xff]
        %v463 = vld [vmem:[%s201 + $0x32] sm:$0xff]
        %v464 = vld [vmem:[%s201 + $0x42] sm:$0xff]
        %v465 = vld [vmem:[%s201 + $0x52] sm:$0xff]
        %v466 = vld [vmem:[%s201 + $0x62] sm:$0xff]
        %v467 = vld [vmem:[%s201 + $0x72] sm:$0xff]
        %v468 = vld [vmem:[%s201 + $0xa2] sm:$0xff]
        %v469 = vld [vmem:[%s201 + $0xb2] sm:$0xff]
        %v470 = vld [vmem:[%s201 + $0xc2] sm:$0xff]
        %v471 = vld [vmem:[%s201 + $0xd2] sm:$0xff]
        %v472 = vld [vmem:[%s201 + $0xe2] sm:$0xff]
        %v473 = vld [vmem:[%s201 + $0xf2] sm:$0xff]
        %v474 = vld [vmem:[%s201 + $0x102] sm:$0xff]
        %v475 = vld [vmem:[%s201 + $0x112] sm:$0xff]
        %v476 = vld [vmem:[%s201 + $0x142] sm:$0xff]
        %v477 = vld [vmem:[%s201 + $0x152] sm:$0xff]
        %v478 = vld [vmem:[%s201 + $0x162] sm:$0xff]
        %v479 = vld [vmem:[%s201 + $0x172] sm:$0xff]
        %v480 = vld [vmem:[%s201 + $0x182] sm:$0xff]
        %v481 = vld [vmem:[%s201 + $0x192] sm:$0xff]
        %v482 = vld [vmem:[%s201 + $0x1a2] sm:$0xff]
        %v483 = vld [vmem:[%s201 + $0x1b2] sm:$0xff]
        %v484 = vld [vmem:[%s201 + $0x1e2] sm:$0xff]
        %v485 = vld [vmem:[%s201 + $0x1f2] sm:$0xff]
        %v486 = vld [vmem:[%s201 + $0x202] sm:$0xff]
        %v487 = vld [vmem:[%s201 + $0x212] sm:$0xff]
        %v488 = vld [vmem:[%s201 + $0x222] sm:$0xff]
        %v489 = vld [vmem:[%s201 + $0x232] sm:$0xff]
        %v490 = vld [vmem:[%s201 + $0x242] sm:$0xff]
        %v491 = vld [vmem:[%s201 + $0x252] sm:$0xff]
        %524 = vrot.lane.b32.xlu0 %v460, 8
        %v525 = vpop.permute.xlu0 %524
        %526 = vrot.lane.b32.xlu0 %v461, 8
        %v527 = vpop.permute.xlu0 %526
        %528 = vrot.lane.b32.xlu0 %v462, 8
        %v529 = vpop.permute.xlu0 %528
        %530 = vrot.lane.b32.xlu0 %v463, 8
        %v531 = vpop.permute.xlu0 %530
        %532 = vrot.lane.b32.xlu0 %v464, 8
        %v533 = vpop.permute.xlu0 %532
        %534 = vrot.lane.b32.xlu0 %v465, 8
        %v535 = vpop.permute.xlu0 %534
        %536 = vrot.lane.b32.xlu0 %v466, 8
        %v537 = vpop.permute.xlu0 %536
        %538 = vrot.lane.b32.xlu0 %v467, 8
        %v539 = vpop.permute.xlu0 %538
        %540 = vrot.lane.b32.xlu0 %v468, 8
        %v541 = vpop.permute.xlu0 %540
        %542 = vrot.lane.b32.xlu0 %v469, 8
        %v543 = vpop.permute.xlu0 %542
        %544 = vrot.lane.b32.xlu0 %v470, 8
        %v545 = vpop.permute.xlu0 %544
        %546 = vrot.lane.b32.xlu0 %v471, 8
        %v547 = vpop.permute.xlu0 %546
        %548 = vrot.lane.b32.xlu0 %v472, 8
        %v549 = vpop.permute.xlu0 %548
        %550 = vrot.lane.b32.xlu0 %v473, 8
        %v551 = vpop.permute.xlu0 %550
        %552 = vrot.lane.b32.xlu0 %v474, 8
        %v553 = vpop.permute.xlu0 %552
        %554 = vrot.lane.b32.xlu0 %v475, 8
        %v555 = vpop.permute.xlu0 %554
        %556 = vrot.lane.b32.xlu0 %v476, 8
        %v557 = vpop.permute.xlu0 %556
        %558 = vrot.lane.b32.xlu0 %v477, 8
        %v559 = vpop.permute.xlu0 %558
        %560 = vrot.lane.b32.xlu0 %v478, 8
        %v561 = vpop.permute.xlu0 %560
        %562 = vrot.lane.b32.xlu0 %v479, 8
        %v563 = vpop.permute.xlu0 %562
        %564 = vrot.lane.b32.xlu0 %v480, 8
        %v565 = vpop.permute.xlu0 %564
        %566 = vrot.lane.b32.xlu0 %v481, 8
        %v567 = vpop.permute.xlu0 %566
        %568 = vrot.lane.b32.xlu0 %v482, 8
        %v569 = vpop.permute.xlu0 %568
        %570 = vrot.lane.b32.xlu0 %v483, 8
        %v571 = vpop.permute.xlu0 %570
        %572 = vrot.lane.b32.xlu0 %v484, 8
        %v573 = vpop.permute.xlu0 %572
        %574 = vrot.lane.b32.xlu0 %v485, 8
        %v575 = vpop.permute.xlu0 %574
        %576 = vrot.lane.b32.xlu0 %v486, 8
        %v577 = vpop.permute.xlu0 %576
        %578 = vrot.lane.b32.xlu0 %v487, 8
        %v579 = vpop.permute.xlu0 %578
        %580 = vrot.lane.b32.xlu0 %v488, 8
        %v581 = vpop.permute.xlu0 %580
        %582 = vrot.lane.b32.xlu0 %v489, 8
        %v583 = vpop.permute.xlu0 %582
        %584 = vrot.lane.b32.xlu0 %v490, 8
        %v585 = vpop.permute.xlu0 %584
        %586 = vrot.lane.b32.xlu0 %v491, 8
        %v587 = vpop.permute.xlu0 %586
        %vm620 = vcmask 97344
        %621 = vst.msk [vmem:[#allocation2] sm:$0xff] %vm620, %v525
        %622 = vst.msk [vmem:[#allocation2 + $0x8] sm:$0xff] %vm620, %v527
        %623 = vst.msk [vmem:[#allocation2 + $0x10] sm:$0xff] %vm620, %v529
        %624 = vst.msk [vmem:[#allocation2 + $0x18] sm:$0xff] %vm620, %v531
        %625 = vst.msk [vmem:[#allocation2 + $0x20] sm:$0xff] %vm620, %v533
        %626 = vst.msk [vmem:[#allocation2 + $0x28] sm:$0xff] %vm620, %v535
        %627 = vst.msk [vmem:[#allocation2 + $0x30] sm:$0xff] %vm620, %v537
        %628 = vst.msk [vmem:[#allocation2 + $0x38] sm:$0xff] %vm620, %v539
        %629 = vst.msk [vmem:[#allocation2 + $0x40] sm:$0xff] %vm620, %v541
        %630 = vst.msk [vmem:[#allocation2 + $0x48] sm:$0xff] %vm620, %v543
        %631 = vst.msk [vmem:[#allocation2 + $0x50] sm:$0xff] %vm620, %v545
        %632 = vst.msk [vmem:[#allocation2 + $0x58] sm:$0xff] %vm620, %v547
        %633 = vst.msk [vmem:[#allocation2 + $0x60] sm:$0xff] %vm620, %v549
        %634 = vst.msk [vmem:[#allocation2 + $0x68] sm:$0xff] %vm620, %v551
        %635 = vst.msk [vmem:[#allocation2 + $0x70] sm:$0xff] %vm620, %v553
        %636 = vst.msk [vmem:[#allocation2 + $0x78] sm:$0xff] %vm620, %v555
        %637 = vst.msk [vmem:[#allocation2 + $0x80] sm:$0xff] %vm620, %v557
        %638 = vst.msk [vmem:[#allocation2 + $0x88] sm:$0xff] %vm620, %v559
        %639 = vst.msk [vmem:[#allocation2 + $0x90] sm:$0xff] %vm620, %v561
        %640 = vst.msk [vmem:[#allocation2 + $0x98] sm:$0xff] %vm620, %v563
        %641 = vst.msk [vmem:[#allocation2 + $0xa0] sm:$0xff] %vm620, %v565
        %642 = vst.msk [vmem:[#allocation2 + $0xa8] sm:$0xff] %vm620, %v567
        %643 = vst.msk [vmem:[#allocation2 + $0xb0] sm:$0xff] %vm620, %v569
        %644 = vst.msk [vmem:[#allocation2 + $0xb8] sm:$0xff] %vm620, %v571
        %645 = vst.msk [vmem:[#allocation2 + $0xc0] sm:$0xff] %vm620, %v573
        %646 = vst.msk [vmem:[#allocation2 + $0xc8] sm:$0xff] %vm620, %v575
        %647 = vst.msk [vmem:[#allocation2 + $0xd0] sm:$0xff] %vm620, %v577
        %648 = vst.msk [vmem:[#allocation2 + $0xd8] sm:$0xff] %vm620, %v579
        %649 = vst.msk [vmem:[#allocation2 + $0xe0] sm:$0xff] %vm620, %v581
        %650 = vst.msk [vmem:[#allocation2 + $0xe8] sm:$0xff] %vm620, %v583
        %651 = vst.msk [vmem:[#allocation2 + $0xf0] sm:$0xff] %vm620, %v585
        %652 = vst.msk [vmem:[#allocation2 + $0xf8] sm:$0xff] %vm620, %v587
        %s653 = sadd.s32 16, %s200
        %s654 = scalar_lea.vmem %s155, %s653
        %v655 = vld [vmem:[%s654] sm:$0xff]
        %v656 = vld [vmem:[%s654 + $0x10] sm:$0xff]
        %v657 = vld [vmem:[%s654 + $0x20] sm:$0xff]
        %v658 = vld [vmem:[%s654 + $0x30] sm:$0xff]
        %v659 = vld [vmem:[%s654 + $0x40] sm:$0xff]
        %v660 = vld [vmem:[%s654 + $0x50] sm:$0xff]
        %v661 = vld [vmem:[%s654 + $0x60] sm:$0xff]
        %v662 = vld [vmem:[%s654 + $0x70] sm:$0xff]
        %v663 = vld [vmem:[%s654 + $0xa0] sm:$0xff]
        %v664 = vld [vmem:[%s654 + $0xb0] sm:$0xff]
        %v665 = vld [vmem:[%s654 + $0xc0] sm:$0xff]
        %v666 = vld [vmem:[%s654 + $0xd0] sm:$0xff]
        %v667 = vld [vmem:[%s654 + $0xe0] sm:$0xff]
        %v668 = vld [vmem:[%s654 + $0xf0] sm:$0xff]
        %v669 = vld [vmem:[%s654 + $0x100] sm:$0xff]
        %v670 = vld [vmem:[%s654 + $0x110] sm:$0xff]
        %v671 = vld [vmem:[%s654 + $0x140] sm:$0xff]
        %v672 = vld [vmem:[%s654 + $0x150] sm:$0xff]
        %v673 = vld [vmem:[%s654 + $0x160] sm:$0xff]
        %v674 = vld [vmem:[%s654 + $0x170] sm:$0xff]
        %v675 = vld [vmem:[%s654 + $0x180] sm:$0xff]
        %v676 = vld [vmem:[%s654 + $0x190] sm:$0xff]
        %v677 = vld [vmem:[%s654 + $0x1a0] sm:$0xff]
        %v678 = vld [vmem:[%s654 + $0x1b0] sm:$0xff]
        %v679 = vld [vmem:[%s654 + $0x1e0] sm:$0xff]
        %v680 = vld [vmem:[%s654 + $0x1f0] sm:$0xff]
        %v681 = vld [vmem:[%s654 + $0x200] sm:$0xff]
        %v682 = vld [vmem:[%s654 + $0x210] sm:$0xff]
        %v683 = vld [vmem:[%s654 + $0x220] sm:$0xff]
        %v684 = vld [vmem:[%s654 + $0x230] sm:$0xff]
        %v685 = vld [vmem:[%s654 + $0x240] sm:$0xff]
        %v686 = vld [vmem:[%s654 + $0x250] sm:$0xff]
        %719 = vrot.lane.b32.xlu0 %v655, 12
        %v720 = vpop.permute.xlu0 %719
        %721 = vrot.lane.b32.xlu0 %v656, 12
        %v722 = vpop.permute.xlu0 %721
        %723 = vrot.lane.b32.xlu0 %v657, 12
        %v724 = vpop.permute.xlu0 %723
        %725 = vrot.lane.b32.xlu0 %v658, 12
        %v726 = vpop.permute.xlu0 %725
        %727 = vrot.lane.b32.xlu0 %v659, 12
        %v728 = vpop.permute.xlu0 %727
        %729 = vrot.lane.b32.xlu0 %v660, 12
        %v730 = vpop.permute.xlu0 %729
        %731 = vrot.lane.b32.xlu0 %v661, 12
        %v732 = vpop.permute.xlu0 %731
        %733 = vrot.lane.b32.xlu0 %v662, 12
        %v734 = vpop.permute.xlu0 %733
        %735 = vrot.lane.b32.xlu0 %v663, 12
        %v736 = vpop.permute.xlu0 %735
        %737 = vrot.lane.b32.xlu0 %v664, 12
        %v738 = vpop.permute.xlu0 %737
        %739 = vrot.lane.b32.xlu0 %v665, 12
        %v740 = vpop.permute.xlu0 %739
        %741 = vrot.lane.b32.xlu0 %v666, 12
        %v742 = vpop.permute.xlu0 %741
        %743 = vrot.lane.b32.xlu0 %v667, 12
        %v744 = vpop.permute.xlu0 %743
        %745 = vrot.lane.b32.xlu0 %v668, 12
        %v746 = vpop.permute.xlu0 %745
        %747 = vrot.lane.b32.xlu0 %v669, 12
        %v748 = vpop.permute.xlu0 %747
        %749 = vrot.lane.b32.xlu0 %v670, 12
        %v750 = vpop.permute.xlu0 %749
        %751 = vrot.lane.b32.xlu0 %v671, 12
        %v752 = vpop.permute.xlu0 %751
        %753 = vrot.lane.b32.xlu0 %v672, 12
        %v754 = vpop.permute.xlu0 %753
        %755 = vrot.lane.b32.xlu0 %v673, 12
        %v756 = vpop.permute.xlu0 %755
        %757 = vrot.lane.b32.xlu0 %v674, 12
        %v758 = vpop.permute.xlu0 %757
        %759 = vrot.lane.b32.xlu0 %v675, 12
        %v760 = vpop.permute.xlu0 %759
        %761 = vrot.lane.b32.xlu0 %v676, 12
        %v762 = vpop.permute.xlu0 %761
        %763 = vrot.lane.b32.xlu0 %v677, 12
        %v764 = vpop.permute.xlu0 %763
        %765 = vrot.lane.b32.xlu0 %v678, 12
        %v766 = vpop.permute.xlu0 %765
        %767 = vrot.lane.b32.xlu0 %v679, 12
        %v768 = vpop.permute.xlu0 %767
        %769 = vrot.lane.b32.xlu0 %v680, 12
        %v770 = vpop.permute.xlu0 %769
        %771 = vrot.lane.b32.xlu0 %v681, 12
        %v772 = vpop.permute.xlu0 %771
        %773 = vrot.lane.b32.xlu0 %v682, 12
        %v774 = vpop.permute.xlu0 %773
        %775 = vrot.lane.b32.xlu0 %v683, 12
        %v776 = vpop.permute.xlu0 %775
        %777 = vrot.lane.b32.xlu0 %v684, 12
        %v778 = vpop.permute.xlu0 %777
        %779 = vrot.lane.b32.xlu0 %v685, 12
        %v780 = vpop.permute.xlu0 %779
        %781 = vrot.lane.b32.xlu0 %v686, 12
        %v782 = vpop.permute.xlu0 %781
        %vm815 = vcmask 130144
        %816 = vst.msk [vmem:[#allocation2] sm:$0xff] %vm815, %v720
        %817 = vst.msk [vmem:[#allocation2 + $0x8] sm:$0xff] %vm815, %v722
        %818 = vst.msk [vmem:[#allocation2 + $0x10] sm:$0xff] %vm815, %v724
        %819 = vst.msk [vmem:[#allocation2 + $0x18] sm:$0xff] %vm815, %v726
        %820 = vst.msk [vmem:[#allocation2 + $0x20] sm:$0xff] %vm815, %v728
        %821 = vst.msk [vmem:[#allocation2 + $0x28] sm:$0xff] %vm815, %v730
        %822 = vst.msk [vmem:[#allocation2 + $0x30] sm:$0xff] %vm815, %v732
        %823 = vst.msk [vmem:[#allocation2 + $0x38] sm:$0xff] %vm815, %v734
        %824 = vst.msk [vmem:[#allocation2 + $0x40] sm:$0xff] %vm815, %v736
        %825 = vst.msk [vmem:[#allocation2 + $0x48] sm:$0xff] %vm815, %v738
        %826 = vst.msk [vmem:[#allocation2 + $0x50] sm:$0xff] %vm815, %v740
        %827 = vst.msk [vmem:[#allocation2 + $0x58] sm:$0xff] %vm815, %v742
        %828 = vst.msk [vmem:[#allocation2 + $0x60] sm:$0xff] %vm815, %v744
        %829 = vst.msk [vmem:[#allocation2 + $0x68] sm:$0xff] %vm815, %v746
        %830 = vst.msk [vmem:[#allocation2 + $0x70] sm:$0xff] %vm815, %v748
        %831 = vst.msk [vmem:[#allocation2 + $0x78] sm:$0xff] %vm815, %v750
        %832 = vst.msk [vmem:[#allocation2 + $0x80] sm:$0xff] %vm815, %v752
        %833 = vst.msk [vmem:[#allocation2 + $0x88] sm:$0xff] %vm815, %v754
        %834 = vst.msk [vmem:[#allocation2 + $0x90] sm:$0xff] %vm815, %v756
        %835 = vst.msk [vmem:[#allocation2 + $0x98] sm:$0xff] %vm815, %v758
        %836 = vst.msk [vmem:[#allocation2 + $0xa0] sm:$0xff] %vm815, %v760
        %837 = vst.msk [vmem:[#allocation2 + $0xa8] sm:$0xff] %vm815, %v762
        %838 = vst.msk [vmem:[#allocation2 + $0xb0] sm:$0xff] %vm815, %v764
        %839 = vst.msk [vmem:[#allocation2 + $0xb8] sm:$0xff] %vm815, %v766
        %840 = vst.msk [vmem:[#allocation2 + $0xc0] sm:$0xff] %vm815, %v768
        %841 = vst.msk [vmem:[#allocation2 + $0xc8] sm:$0xff] %vm815, %v770
        %842 = vst.msk [vmem:[#allocation2 + $0xd0] sm:$0xff] %vm815, %v772
        %843 = vst.msk [vmem:[#allocation2 + $0xd8] sm:$0xff] %vm815, %v774
        %844 = vst.msk [vmem:[#allocation2 + $0xe0] sm:$0xff] %vm815, %v776
        %845 = vst.msk [vmem:[#allocation2 + $0xe8] sm:$0xff] %vm815, %v778
        %846 = vst.msk [vmem:[#allocation2 + $0xf0] sm:$0xff] %vm815, %v780
        %847 = vst.msk [vmem:[#allocation2 + $0xf8] sm:$0xff] %vm815, %v782
        %v848 = vld [vmem:[%s654 + $0x1] sm:$0xff]
        %v849 = vld [vmem:[%s654 + $0x11] sm:$0xff]
        %v850 = vld [vmem:[%s654 + $0x21] sm:$0xff]
        %v851 = vld [vmem:[%s654 + $0x31] sm:$0xff]
        %v852 = vld [vmem:[%s654 + $0x41] sm:$0xff]
        %v853 = vld [vmem:[%s654 + $0x51] sm:$0xff]
        %v854 = vld [vmem:[%s654 + $0x61] sm:$0xff]
        %v855 = vld [vmem:[%s654 + $0x71] sm:$0xff]
        %v856 = vld [vmem:[%s654 + $0xa1] sm:$0xff]
        %v857 = vld [vmem:[%s654 + $0xb1] sm:$0xff]
        %v858 = vld [vmem:[%s654 + $0xc1] sm:$0xff]
        %v859 = vld [vmem:[%s654 + $0xd1] sm:$0xff]
        %v860 = vld [vmem:[%s654 + $0xe1] sm:$0xff]
        %v861 = vld [vmem:[%s654 + $0xf1] sm:$0xff]
        %v862 = vld [vmem:[%s654 + $0x101] sm:$0xff]
        %v863 = vld [vmem:[%s654 + $0x111] sm:$0xff]
        %v864 = vld [vmem:[%s654 + $0x141] sm:$0xff]
        %v865 = vld [vmem:[%s654 + $0x151] sm:$0xff]
        %v866 = vld [vmem:[%s654 + $0x161] sm:$0xff]
        %v867 = vld [vmem:[%s654 + $0x171] sm:$0xff]
        %v868 = vld [vmem:[%s654 + $0x181] sm:$0xff]
        %v869 = vld [vmem:[%s654 + $0x191] sm:$0xff]
        %v870 = vld [vmem:[%s654 + $0x1a1] sm:$0xff]
        %v871 = vld [vmem:[%s654 + $0x1b1] sm:$0xff]
        %v872 = vld [vmem:[%s654 + $0x1e1] sm:$0xff]
        %v873 = vld [vmem:[%s654 + $0x1f1] sm:$0xff]
        %v874 = vld [vmem:[%s654 + $0x201] sm:$0xff]
        %v875 = vld [vmem:[%s654 + $0x211] sm:$0xff]
        %v876 = vld [vmem:[%s654 + $0x221] sm:$0xff]
        %v877 = vld [vmem:[%s654 + $0x231] sm:$0xff]
        %v878 = vld [vmem:[%s654 + $0x241] sm:$0xff]
        %v879 = vld [vmem:[%s654 + $0x251] sm:$0xff]
        %912 = vrot.lane.b32.xlu0 %v848, 16
        %v913 = vpop.permute.xlu0 %912
        %914 = vrot.lane.b32.xlu0 %v849, 16
        %v915 = vpop.permute.xlu0 %914
        %916 = vrot.lane.b32.xlu0 %v850, 16
        %v917 = vpop.permute.xlu0 %916
        %918 = vrot.lane.b32.xlu0 %v851, 16
        %v919 = vpop.permute.xlu0 %918
        %920 = vrot.lane.b32.xlu0 %v852, 16
        %v921 = vpop.permute.xlu0 %920
        %922 = vrot.lane.b32.xlu0 %v853, 16
        %v923 = vpop.permute.xlu0 %922
        %924 = vrot.lane.b32.xlu0 %v854, 16
        %v925 = vpop.permute.xlu0 %924
        %926 = vrot.lane.b32.xlu0 %v855, 16
        %v927 = vpop.permute.xlu0 %926
        %928 = vrot.lane.b32.xlu0 %v856, 16
        %v929 = vpop.permute.xlu0 %928
        %930 = vrot.lane.b32.xlu0 %v857, 16
        %v931 = vpop.permute.xlu0 %930
        %932 = vrot.lane.b32.xlu0 %v858, 16
        %v933 = vpop.permute.xlu0 %932
        %934 = vrot.lane.b32.xlu0 %v859, 16
        %v935 = vpop.permute.xlu0 %934
        %936 = vrot.lane.b32.xlu0 %v860, 16
        %v937 = vpop.permute.xlu0 %936
        %938 = vrot.lane.b32.xlu0 %v861, 16
        %v939 = vpop.permute.xlu0 %938
        %940 = vrot.lane.b32.xlu0 %v862, 16
        %v941 = vpop.permute.xlu0 %940
        %942 = vrot.lane.b32.xlu0 %v863, 16
        %v943 = vpop.permute.xlu0 %942
        %944 = vrot.lane.b32.xlu0 %v864, 16
        %v945 = vpop.permute.xlu0 %944
        %946 = vrot.lane.b32.xlu0 %v865, 16
        %v947 = vpop.permute.xlu0 %946
        %948 = vrot.lane.b32.xlu0 %v866, 16
        %v949 = vpop.permute.xlu0 %948
        %950 = vrot.lane.b32.xlu0 %v867, 16
        %v951 = vpop.permute.xlu0 %950
        %952 = vrot.lane.b32.xlu0 %v868, 16
        %v953 = vpop.permute.xlu0 %952
        %954 = vrot.lane.b32.xlu0 %v869, 16
        %v955 = vpop.permute.xlu0 %954
        %956 = vrot.lane.b32.xlu0 %v870, 16
        %v957 = vpop.permute.xlu0 %956
        %958 = vrot.lane.b32.xlu0 %v871, 16
        %v959 = vpop.permute.xlu0 %958
        %960 = vrot.lane.b32.xlu0 %v872, 16
        %v961 = vpop.permute.xlu0 %960
        %962 = vrot.lane.b32.xlu0 %v873, 16
        %v963 = vpop.permute.xlu0 %962
        %964 = vrot.lane.b32.xlu0 %v874, 16
        %v965 = vpop.permute.xlu0 %964
        %966 = vrot.lane.b32.xlu0 %v875, 16
        %v967 = vpop.permute.xlu0 %966
        %968 = vrot.lane.b32.xlu0 %v876, 16
        %v969 = vpop.permute.xlu0 %968
        %970 = vrot.lane.b32.xlu0 %v877, 16
        %v971 = vpop.permute.xlu0 %970
        %972 = vrot.lane.b32.xlu0 %v878, 16
        %v973 = vpop.permute.xlu0 %972
        %974 = vrot.lane.b32.xlu0 %v879, 16
        %v975 = vpop.permute.xlu0 %974
        %vm1008 = vcmask 162944
        %1009 = vst.msk [vmem:[#allocation2] sm:$0xff] %vm1008, %v913
        %1010 = vst.msk [vmem:[#allocation2 + $0x8] sm:$0xff] %vm1008, %v915
        %1011 = vst.msk [vmem:[#allocation2 + $0x10] sm:$0xff] %vm1008, %v917
        %1012 = vst.msk [vmem:[#allocation2 + $0x18] sm:$0xff] %vm1008, %v919
        %1013 = vst.msk [vmem:[#allocation2 + $0x20] sm:$0xff] %vm1008, %v921
        %1014 = vst.msk [vmem:[#allocation2 + $0x28] sm:$0xff] %vm1008, %v923
        %1015 = vst.msk [vmem:[#allocation2 + $0x30] sm:$0xff] %vm1008, %v925
        %1016 = vst.msk [vmem:[#allocation2 + $0x38] sm:$0xff] %vm1008, %v927
        %1017 = vst.msk [vmem:[#allocation2 + $0x40] sm:$0xff] %vm1008, %v929
        %1018 = vst.msk [vmem:[#allocation2 + $0x48] sm:$0xff] %vm1008, %v931
        %1019 = vst.msk [vmem:[#allocation2 + $0x50] sm:$0xff] %vm1008, %v933
        %1020 = vst.msk [vmem:[#allocation2 + $0x58] sm:$0xff] %vm1008, %v935
        %1021 = vst.msk [vmem:[#allocation2 + $0x60] sm:$0xff] %vm1008, %v937
        %1022 = vst.msk [vmem:[#allocation2 + $0x68] sm:$0xff] %vm1008, %v939
        %1023 = vst.msk [vmem:[#allocation2 + $0x70] sm:$0xff] %vm1008, %v941
        %1024 = vst.msk [vmem:[#allocation2 + $0x78] sm:$0xff] %vm1008, %v943
        %1025 = vst.msk [vmem:[#allocation2 + $0x80] sm:$0xff] %vm1008, %v945
        %1026 = vst.msk [vmem:[#allocation2 + $0x88] sm:$0xff] %vm1008, %v947
        %1027 = vst.msk [vmem:[#allocation2 + $0x90] sm:$0xff] %vm1008, %v949
        %1028 = vst.msk [vmem:[#allocation2 + $0x98] sm:$0xff] %vm1008, %v951
        %1029 = vst.msk [vmem:[#allocation2 + $0xa0] sm:$0xff] %vm1008, %v953
        %1030 = vst.msk [vmem:[#allocation2 + $0xa8] sm:$0xff] %vm1008, %v955
        %1031 = vst.msk [vmem:[#allocation2 + $0xb0] sm:$0xff] %vm1008, %v957
        %1032 = vst.msk [vmem:[#allocation2 + $0xb8] sm:$0xff] %vm1008, %v959
        %1033 = vst.msk [vmem:[#allocation2 + $0xc0] sm:$0xff] %vm1008, %v961
        %1034 = vst.msk [vmem:[#allocation2 + $0xc8] sm:$0xff] %vm1008, %v963
        %1035 = vst.msk [vmem:[#allocation2 + $0xd0] sm:$0xff] %vm1008, %v965
        %1036 = vst.msk [vmem:[#allocation2 + $0xd8] sm:$0xff] %vm1008, %v967
        %1037 = vst.msk [vmem:[#allocation2 + $0xe0] sm:$0xff] %vm1008, %v969
        %1038 = vst.msk [vmem:[#allocation2 + $0xe8] sm:$0xff] %vm1008, %v971
        %1039 = vst.msk [vmem:[#allocation2 + $0xf0] sm:$0xff] %vm1008, %v973
        %1040 = vst.msk [vmem:[#allocation2 + $0xf8] sm:$0xff] %vm1008, %v975
        %v1041 = vld [vmem:[%s654 + $0x2] sm:$0xff]
        %v1042 = vld [vmem:[%s654 + $0x12] sm:$0xff]
        %v1043 = vld [vmem:[%s654 + $0x22] sm:$0xff]
        %v1044 = vld [vmem:[%s654 + $0x32] sm:$0xff]
        %v1045 = vld [vmem:[%s654 + $0x42] sm:$0xff]
        %v1046 = vld [vmem:[%s654 + $0x52] sm:$0xff]
        %v1047 = vld [vmem:[%s654 + $0x62] sm:$0xff]
        %v1048 = vld [vmem:[%s654 + $0x72] sm:$0xff]
        %v1049 = vld [vmem:[%s654 + $0xa2] sm:$0xff]
        %v1050 = vld [vmem:[%s654 + $0xb2] sm:$0xff]
        %v1051 = vld [vmem:[%s654 + $0xc2] sm:$0xff]
        %v1052 = vld [vmem:[%s654 + $0xd2] sm:$0xff]
        %v1053 = vld [vmem:[%s654 + $0xe2] sm:$0xff]
        %v1054 = vld [vmem:[%s654 + $0xf2] sm:$0xff]
        %v1055 = vld [vmem:[%s654 + $0x102] sm:$0xff]
        %v1056 = vld [vmem:[%s654 + $0x112] sm:$0xff]
        %v1057 = vld [vmem:[%s654 + $0x142] sm:$0xff]
        %v1058 = vld [vmem:[%s654 + $0x152] sm:$0xff]
        %v1059 = vld [vmem:[%s654 + $0x162] sm:$0xff]
        %v1060 = vld [vmem:[%s654 + $0x172] sm:$0xff]
        %v1061 = vld [vmem:[%s654 + $0x182] sm:$0xff]
        %v1062 = vld [vmem:[%s654 + $0x192] sm:$0xff]
        %v1063 = vld [vmem:[%s654 + $0x1a2] sm:$0xff]
        %v1064 = vld [vmem:[%s654 + $0x1b2] sm:$0xff]
        %v1065 = vld [vmem:[%s654 + $0x1e2] sm:$0xff]
        %v1066 = vld [vmem:[%s654 + $0x1f2] sm:$0xff]
        %v1067 = vld [vmem:[%s654 + $0x202] sm:$0xff]
        %v1068 = vld [vmem:[%s654 + $0x212] sm:$0xff]
        %v1069 = vld [vmem:[%s654 + $0x222] sm:$0xff]
        %v1070 = vld [vmem:[%s654 + $0x232] sm:$0xff]
        %v1071 = vld [vmem:[%s654 + $0x242] sm:$0xff]
        %v1072 = vld [vmem:[%s654 + $0x252] sm:$0xff]
        %1105 = vrot.lane.b32.xlu0 %v1041, 20
        %v1106 = vpop.permute.xlu0 %1105
        %1107 = vrot.lane.b32.xlu0 %v1042, 20
        %v1108 = vpop.permute.xlu0 %1107
        %1109 = vrot.lane.b32.xlu0 %v1043, 20
        %v1110 = vpop.permute.xlu0 %1109
        %1111 = vrot.lane.b32.xlu0 %v1044, 20
        %v1112 = vpop.permute.xlu0 %1111
        %1113 = vrot.lane.b32.xlu0 %v1045, 20
        %v1114 = vpop.permute.xlu0 %1113
        %1115 = vrot.lane.b32.xlu0 %v1046, 20
        %v1116 = vpop.permute.xlu0 %1115
        %1117 = vrot.lane.b32.xlu0 %v1047, 20
        %v1118 = vpop.permute.xlu0 %1117
        %1119 = vrot.lane.b32.xlu0 %v1048, 20
        %v1120 = vpop.permute.xlu0 %1119
        %1121 = vrot.lane.b32.xlu0 %v1049, 20
        %v1122 = vpop.permute.xlu0 %1121
        %1123 = vrot.lane.b32.xlu0 %v1050, 20
        %v1124 = vpop.permute.xlu0 %1123
        %1125 = vrot.lane.b32.xlu0 %v1051, 20
        %v1126 = vpop.permute.xlu0 %1125
        %1127 = vrot.lane.b32.xlu0 %v1052, 20
        %v1128 = vpop.permute.xlu0 %1127
        %1129 = vrot.lane.b32.xlu0 %v1053, 20
        %v1130 = vpop.permute.xlu0 %1129
        %1131 = vrot.lane.b32.xlu0 %v1054, 20
        %v1132 = vpop.permute.xlu0 %1131
        %1133 = vrot.lane.b32.xlu0 %v1055, 20
        %v1134 = vpop.permute.xlu0 %1133
        %1135 = vrot.lane.b32.xlu0 %v1056, 20
        %v1136 = vpop.permute.xlu0 %1135
        %1137 = vrot.lane.b32.xlu0 %v1057, 20
        %v1138 = vpop.permute.xlu0 %1137
        %1139 = vrot.lane.b32.xlu0 %v1058, 20
        %v1140 = vpop.permute.xlu0 %1139
        %1141 = vrot.lane.b32.xlu0 %v1059, 20
        %v1142 = vpop.permute.xlu0 %1141
        %1143 = vrot.lane.b32.xlu0 %v1060, 20
        %v1144 = vpop.permute.xlu0 %1143
        %1145 = vrot.lane.b32.xlu0 %v1061, 20
        %v1146 = vpop.permute.xlu0 %1145
        %1147 = vrot.lane.b32.xlu0 %v1062, 20
        %v1148 = vpop.permute.xlu0 %1147
        %1149 = vrot.lane.b32.xlu0 %v1063, 20
        %v1150 = vpop.permute.xlu0 %1149
        %1151 = vrot.lane.b32.xlu0 %v1064, 20
        %v1152 = vpop.permute.xlu0 %1151
        %1153 = vrot.lane.b32.xlu0 %v1065, 20
        %v1154 = vpop.permute.xlu0 %1153
        %1155 = vrot.lane.b32.xlu0 %v1066, 20
        %v1156 = vpop.permute.xlu0 %1155
        %1157 = vrot.lane.b32.xlu0 %v1067, 20
        %v1158 = vpop.permute.xlu0 %1157
        %1159 = vrot.lane.b32.xlu0 %v1068, 20
        %v1160 = vpop.permute.xlu0 %1159
        %1161 = vrot.lane.b32.xlu0 %v1069, 20
        %v1162 = vpop.permute.xlu0 %1161
        %1163 = vrot.lane.b32.xlu0 %v1070, 20
        %v1164 = vpop.permute.xlu0 %1163
        %1165 = vrot.lane.b32.xlu0 %v1071, 20
        %v1166 = vpop.permute.xlu0 %1165
        %1167 = vrot.lane.b32.xlu0 %v1072, 20
        %v1168 = vpop.permute.xlu0 %1167
        %vm1201 = vcmask 195744
        %1202 = vst.msk [vmem:[#allocation2] sm:$0xff] %vm1201, %v1106
        %1203 = vst.msk [vmem:[#allocation2 + $0x8] sm:$0xff] %vm1201, %v1108
        %1204 = vst.msk [vmem:[#allocation2 + $0x10] sm:$0xff] %vm1201, %v1110
        %1205 = vst.msk [vmem:[#allocation2 + $0x18] sm:$0xff] %vm1201, %v1112
        %1206 = vst.msk [vmem:[#allocation2 + $0x20] sm:$0xff] %vm1201, %v1114
        %1207 = vst.msk [vmem:[#allocation2 + $0x28] sm:$0xff] %vm1201, %v1116
        %1208 = vst.msk [vmem:[#allocation2 + $0x30] sm:$0xff] %vm1201, %v1118
        %1209 = vst.msk [vmem:[#allocation2 + $0x38] sm:$0xff] %vm1201, %v1120
        %1210 = vst.msk [vmem:[#allocation2 + $0x40] sm:$0xff] %vm1201, %v1122
        %1211 = vst.msk [vmem:[#allocation2 + $0x48] sm:$0xff] %vm1201, %v1124
        %1212 = vst.msk [vmem:[#allocation2 + $0x50] sm:$0xff] %vm1201, %v1126
        %1213 = vst.msk [vmem:[#allocation2 + $0x58] sm:$0xff] %vm1201, %v1128
        %1214 = vst.msk [vmem:[#allocation2 + $0x60] sm:$0xff] %vm1201, %v1130
        %1215 = vst.msk [vmem:[#allocation2 + $0x68] sm:$0xff] %vm1201, %v1132
        %1216 = vst.msk [vmem:[#allocation2 + $0x70] sm:$0xff] %vm1201, %v1134
        %1217 = vst.msk [vmem:[#allocation2 + $0x78] sm:$0xff] %vm1201, %v1136
        %1218 = vst.msk [vmem:[#allocation2 + $0x80] sm:$0xff] %vm1201, %v1138
        %1219 = vst.msk [vmem:[#allocation2 + $0x88] sm:$0xff] %vm1201, %v1140
        %1220 = vst.msk [vmem:[#allocation2 + $0x90] sm:$0xff] %vm1201, %v1142
        %1221 = vst.msk [vmem:[#allocation2 + $0x98] sm:$0xff] %vm1201, %v1144
        %1222 = vst.msk [vmem:[#allocation2 + $0xa0] sm:$0xff] %vm1201, %v1146
        %1223 = vst.msk [vmem:[#allocation2 + $0xa8] sm:$0xff] %vm1201, %v1148
        %1224 = vst.msk [vmem:[#allocation2 + $0xb0] sm:$0xff] %vm1201, %v1150
        %1225 = vst.msk [vmem:[#allocation2 + $0xb8] sm:$0xff] %vm1201, %v1152
        %1226 = vst.msk [vmem:[#allocation2 + $0xc0] sm:$0xff] %vm1201, %v1154
        %1227 = vst.msk [vmem:[#allocation2 + $0xc8] sm:$0xff] %vm1201, %v1156
        %1228 = vst.msk [vmem:[#allocation2 + $0xd0] sm:$0xff] %vm1201, %v1158
        %1229 = vst.msk [vmem:[#allocation2 + $0xd8] sm:$0xff] %vm1201, %v1160
        %1230 = vst.msk [vmem:[#allocation2 + $0xe0] sm:$0xff] %vm1201, %v1162
        %1231 = vst.msk [vmem:[#allocation2 + $0xe8] sm:$0xff] %vm1201, %v1164
        %1232 = vst.msk [vmem:[#allocation2 + $0xf0] sm:$0xff] %vm1201, %v1166
        %1233 = vst.msk [vmem:[#allocation2 + $0xf8] sm:$0xff] %vm1201, %v1168
        %s1234 = sadd.s32 32, %s200
        %s1235 = scalar_lea.vmem %s155, %s1234
        %v1236 = vld [vmem:[%s1235] sm:$0xff]
        %v1237 = vld [vmem:[%s1235 + $0x10] sm:$0xff]
        %v1238 = vld [vmem:[%s1235 + $0x20] sm:$0xff]
        %v1239 = vld [vmem:[%s1235 + $0x30] sm:$0xff]
        %v1240 = vld [vmem:[%s1235 + $0x40] sm:$0xff]
        %v1241 = vld [vmem:[%s1235 + $0x50] sm:$0xff]
        %v1242 = vld [vmem:[%s1235 + $0x60] sm:$0xff]
        %v1243 = vld [vmem:[%s1235 + $0x70] sm:$0xff]
        %v1244 = vld [vmem:[%s1235 + $0xa0] sm:$0xff]
        %v1245 = vld [vmem:[%s1235 + $0xb0] sm:$0xff]
        %v1246 = vld [vmem:[%s1235 + $0xc0] sm:$0xff]
        %v1247 = vld [vmem:[%s1235 + $0xd0] sm:$0xff]
        %v1248 = vld [vmem:[%s1235 + $0xe0] sm:$0xff]
        %v1249 = vld [vmem:[%s1235 + $0xf0] sm:$0xff]
        %v1250 = vld [vmem:[%s1235 + $0x100] sm:$0xff]
        %v1251 = vld [vmem:[%s1235 + $0x110] sm:$0xff]
        %v1252 = vld [vmem:[%s1235 + $0x140] sm:$0xff]
        %v1253 = vld [vmem:[%s1235 + $0x150] sm:$0xff]
        %v1254 = vld [vmem:[%s1235 + $0x160] sm:$0xff]
        %v1255 = vld [vmem:[%s1235 + $0x170] sm:$0xff]
        %v1256 = vld [vmem:[%s1235 + $0x180] sm:$0xff]
        %v1257 = vld [vmem:[%s1235 + $0x190] sm:$0xff]
        %v1258 = vld [vmem:[%s1235 + $0x1a0] sm:$0xff]
        %v1259 = vld [vmem:[%s1235 + $0x1b0] sm:$0xff]
        %v1260 = vld [vmem:[%s1235 + $0x1e0] sm:$0xff]
        %v1261 = vld [vmem:[%s1235 + $0x1f0] sm:$0xff]
        %v1262 = vld [vmem:[%s1235 + $0x200] sm:$0xff]
        %v1263 = vld [vmem:[%s1235 + $0x210] sm:$0xff]
        %v1264 = vld [vmem:[%s1235 + $0x220] sm:$0xff]
        %v1265 = vld [vmem:[%s1235 + $0x230] sm:$0xff]
        %v1266 = vld [vmem:[%s1235 + $0x240] sm:$0xff]
        %v1267 = vld [vmem:[%s1235 + $0x250] sm:$0xff]
        %1300 = vrot.lane.b32.xlu0 %v1236, 24
        %v1301 = vpop.permute.xlu0 %1300
        %1302 = vrot.lane.b32.xlu0 %v1237, 24
        %v1303 = vpop.permute.xlu0 %1302
        %1304 = vrot.lane.b32.xlu0 %v1238, 24
        %v1305 = vpop.permute.xlu0 %1304
        %1306 = vrot.lane.b32.xlu0 %v1239, 24
        %v1307 = vpop.permute.xlu0 %1306
        %1308 = vrot.lane.b32.xlu0 %v1240, 24
        %v1309 = vpop.permute.xlu0 %1308
        %1310 = vrot.lane.b32.xlu0 %v1241, 24
        %v1311 = vpop.permute.xlu0 %1310
        %1312 = vrot.lane.b32.xlu0 %v1242, 24
        %v1313 = vpop.permute.xlu0 %1312
        %1314 = vrot.lane.b32.xlu0 %v1243, 24
        %v1315 = vpop.permute.xlu0 %1314
        %1316 = vrot.lane.b32.xlu0 %v1244, 24
        %v1317 = vpop.permute.xlu0 %1316
        %1318 = vrot.lane.b32.xlu0 %v1245, 24
        %v1319 = vpop.permute.xlu0 %1318
        %1320 = vrot.lane.b32.xlu0 %v1246, 24
        %v1321 = vpop.permute.xlu0 %1320
        %1322 = vrot.lane.b32.xlu0 %v1247, 24
        %v1323 = vpop.permute.xlu0 %1322
        %1324 = vrot.lane.b32.xlu0 %v1248, 24
        %v1325 = vpop.permute.xlu0 %1324
        %1326 = vrot.lane.b32.xlu0 %v1249, 24
        %v1327 = vpop.permute.xlu0 %1326
        %1328 = vrot.lane.b32.xlu0 %v1250, 24
        %v1329 = vpop.permute.xlu0 %1328
        %1330 = vrot.lane.b32.xlu0 %v1251, 24
        %v1331 = vpop.permute.xlu0 %1330
        %1332 = vrot.lane.b32.xlu0 %v1252, 24
        %v1333 = vpop.permute.xlu0 %1332
        %1334 = vrot.lane.b32.xlu0 %v1253, 24
        %v1335 = vpop.permute.xlu0 %1334
        %1336 = vrot.lane.b32.xlu0 %v1254, 24
        %v1337 = vpop.permute.xlu0 %1336
        %1338 = vrot.lane.b32.xlu0 %v1255, 24
        %v1339 = vpop.permute.xlu0 %1338
        %1340 = vrot.lane.b32.xlu0 %v1256, 24
        %v1341 = vpop.permute.xlu0 %1340
        %1342 = vrot.lane.b32.xlu0 %v1257, 24
        %v1343 = vpop.permute.xlu0 %1342
        %1344 = vrot.lane.b32.xlu0 %v1258, 24
        %v1345 = vpop.permute.xlu0 %1344
        %1346 = vrot.lane.b32.xlu0 %v1259, 24
        %v1347 = vpop.permute.xlu0 %1346
        %1348 = vrot.lane.b32.xlu0 %v1260, 24
        %v1349 = vpop.permute.xlu0 %1348
        %1350 = vrot.lane.b32.xlu0 %v1261, 24
        %v1351 = vpop.permute.xlu0 %1350
        %1352 = vrot.lane.b32.xlu0 %v1262, 24
        %v1353 = vpop.permute.xlu0 %1352
        %1354 = vrot.lane.b32.xlu0 %v1263, 24
        %v1355 = vpop.permute.xlu0 %1354
        %1356 = vrot.lane.b32.xlu0 %v1264, 24
        %v1357 = vpop.permute.xlu0 %1356
        %1358 = vrot.lane.b32.xlu0 %v1265, 24
        %v1359 = vpop.permute.xlu0 %1358
        %1360 = vrot.lane.b32.xlu0 %v1266, 24
        %v1361 = vpop.permute.xlu0 %1360
        %1362 = vrot.lane.b32.xlu0 %v1267, 24
        %v1363 = vpop.permute.xlu0 %1362
        %vm1396 = vcmask 228544
        %1397 = vst.msk [vmem:[#allocation2] sm:$0xff] %vm1396, %v1301
        %1398 = vst.msk [vmem:[#allocation2 + $0x8] sm:$0xff] %vm1396, %v1303
        %1399 = vst.msk [vmem:[#allocation2 + $0x10] sm:$0xff] %vm1396, %v1305
        %1400 = vst.msk [vmem:[#allocation2 + $0x18] sm:$0xff] %vm1396, %v1307
        %1401 = vst.msk [vmem:[#allocation2 + $0x20] sm:$0xff] %vm1396, %v1309
        %1402 = vst.msk [vmem:[#allocation2 + $0x28] sm:$0xff] %vm1396, %v1311
        %1403 = vst.msk [vmem:[#allocation2 + $0x30] sm:$0xff] %vm1396, %v1313
        %1404 = vst.msk [vmem:[#allocation2 + $0x38] sm:$0xff] %vm1396, %v1315
        %1405 = vst.msk [vmem:[#allocation2 + $0x40] sm:$0xff] %vm1396, %v1317
        %1406 = vst.msk [vmem:[#allocation2 + $0x48] sm:$0xff] %vm1396, %v1319
        %1407 = vst.msk [vmem:[#allocation2 + $0x50] sm:$0xff] %vm1396, %v1321
        %1408 = vst.msk [vmem:[#allocation2 + $0x58] sm:$0xff] %vm1396, %v1323
        %1409 = vst.msk [vmem:[#allocation2 + $0x60] sm:$0xff] %vm1396, %v1325
        %1410 = vst.msk [vmem:[#allocation2 + $0x68] sm:$0xff] %vm1396, %v1327
        %1411 = vst.msk [vmem:[#allocation2 + $0x70] sm:$0xff] %vm1396, %v1329
        %1412 = vst.msk [vmem:[#allocation2 + $0x78] sm:$0xff] %vm1396, %v1331
        %1413 = vst.msk [vmem:[#allocation2 + $0x80] sm:$0xff] %vm1396, %v1333
        %1414 = vst.msk [vmem:[#allocation2 + $0x88] sm:$0xff] %vm1396, %v1335
        %1415 = vst.msk [vmem:[#allocation2 + $0x90] sm:$0xff] %vm1396, %v1337
        %1416 = vst.msk [vmem:[#allocation2 + $0x98] sm:$0xff] %vm1396, %v1339
        %1417 = vst.msk [vmem:[#allocation2 + $0xa0] sm:$0xff] %vm1396, %v1341
        %1418 = vst.msk [vmem:[#allocation2 + $0xa8] sm:$0xff] %vm1396, %v1343
        %1419 = vst.msk [vmem:[#allocation2 + $0xb0] sm:$0xff] %vm1396, %v1345
        %1420 = vst.msk [vmem:[#allocation2 + $0xb8] sm:$0xff] %vm1396, %v1347
        %1421 = vst.msk [vmem:[#allocation2 + $0xc0] sm:$0xff] %vm1396, %v1349
        %1422 = vst.msk [vmem:[#allocation2 + $0xc8] sm:$0xff] %vm1396, %v1351
        %1423 = vst.msk [vmem:[#allocation2 + $0xd0] sm:$0xff] %vm1396, %v1353
        %1424 = vst.msk [vmem:[#allocation2 + $0xd8] sm:$0xff] %vm1396, %v1355
        %1425 = vst.msk [vmem:[#allocation2 + $0xe0] sm:$0xff] %vm1396, %v1357
        %1426 = vst.msk [vmem:[#allocation2 + $0xe8] sm:$0xff] %vm1396, %v1359
        %1427 = vst.msk [vmem:[#allocation2 + $0xf0] sm:$0xff] %vm1396, %v1361
        %1428 = vst.msk [vmem:[#allocation2 + $0xf8] sm:$0xff] %vm1396, %v1363
        %v1429 = vld [vmem:[%s1235 + $0x1] sm:$0xff]
        %v1430 = vld [vmem:[%s1235 + $0x11] sm:$0xff]
        %v1431 = vld [vmem:[%s1235 + $0x21] sm:$0xff]
        %v1432 = vld [vmem:[%s1235 + $0x31] sm:$0xff]
        %v1433 = vld [vmem:[%s1235 + $0x41] sm:$0xff]
        %v1434 = vld [vmem:[%s1235 + $0x51] sm:$0xff]
        %v1435 = vld [vmem:[%s1235 + $0x61] sm:$0xff]
        %v1436 = vld [vmem:[%s1235 + $0x71] sm:$0xff]
        %v1437 = vld [vmem:[%s1235 + $0xa1] sm:$0xff]
        %v1438 = vld [vmem:[%s1235 + $0xb1] sm:$0xff]
        %v1439 = vld [vmem:[%s1235 + $0xc1] sm:$0xff]
        %v1440 = vld [vmem:[%s1235 + $0xd1] sm:$0xff]
        %v1441 = vld [vmem:[%s1235 + $0xe1] sm:$0xff]
        %v1442 = vld [vmem:[%s1235 + $0xf1] sm:$0xff]
        %v1443 = vld [vmem:[%s1235 + $0x101] sm:$0xff]
        %v1444 = vld [vmem:[%s1235 + $0x111] sm:$0xff]
        %v1445 = vld [vmem:[%s1235 + $0x141] sm:$0xff]
        %v1446 = vld [vmem:[%s1235 + $0x151] sm:$0xff]
        %v1447 = vld [vmem:[%s1235 + $0x161] sm:$0xff]
        %v1448 = vld [vmem:[%s1235 + $0x171] sm:$0xff]
        %v1449 = vld [vmem:[%s1235 + $0x181] sm:$0xff]
        %v1450 = vld [vmem:[%s1235 + $0x191] sm:$0xff]
        %v1451 = vld [vmem:[%s1235 + $0x1a1] sm:$0xff]
        %v1452 = vld [vmem:[%s1235 + $0x1b1] sm:$0xff]
        %v1453 = vld [vmem:[%s1235 + $0x1e1] sm:$0xff]
        %v1454 = vld [vmem:[%s1235 + $0x1f1] sm:$0xff]
        %v1455 = vld [vmem:[%s1235 + $0x201] sm:$0xff]
        %v1456 = vld [vmem:[%s1235 + $0x211] sm:$0xff]
        %v1457 = vld [vmem:[%s1235 + $0x221] sm:$0xff]
        %v1458 = vld [vmem:[%s1235 + $0x231] sm:$0xff]
        %v1459 = vld [vmem:[%s1235 + $0x241] sm:$0xff]
        %v1460 = vld [vmem:[%s1235 + $0x251] sm:$0xff]
        %1493 = vrot.lane.b32.xlu0 %v1429, 28
        %v1494 = vpop.permute.xlu0 %1493
        %1495 = vrot.lane.b32.xlu0 %v1430, 28
        %v1496 = vpop.permute.xlu0 %1495
        %1497 = vrot.lane.b32.xlu0 %v1431, 28
        %v1498 = vpop.permute.xlu0 %1497
        %1499 = vrot.lane.b32.xlu0 %v1432, 28
        %v1500 = vpop.permute.xlu0 %1499
        %1501 = vrot.lane.b32.xlu0 %v1433, 28
        %v1502 = vpop.permute.xlu0 %1501
        %1503 = vrot.lane.b32.xlu0 %v1434, 28
        %v1504 = vpop.permute.xlu0 %1503
        %1505 = vrot.lane.b32.xlu0 %v1435, 28
        %v1506 = vpop.permute.xlu0 %1505
        %1507 = vrot.lane.b32.xlu0 %v1436, 28
        %v1508 = vpop.permute.xlu0 %1507
        %1509 = vrot.lane.b32.xlu0 %v1437, 28
        %v1510 = vpop.permute.xlu0 %1509
        %1511 = vrot.lane.b32.xlu0 %v1438, 28
        %v1512 = vpop.permute.xlu0 %1511
        %1513 = vrot.lane.b32.xlu0 %v1439, 28
        %v1514 = vpop.permute.xlu0 %1513
        %1515 = vrot.lane.b32.xlu0 %v1440, 28
        %v1516 = vpop.permute.xlu0 %1515
        %1517 = vrot.lane.b32.xlu0 %v1441, 28
        %v1518 = vpop.permute.xlu0 %1517
        %1519 = vrot.lane.b32.xlu0 %v1442, 28
        %v1520 = vpop.permute.xlu0 %1519
        %1521 = vrot.lane.b32.xlu0 %v1443, 28
        %v1522 = vpop.permute.xlu0 %1521
        %1523 = vrot.lane.b32.xlu0 %v1444, 28
        %v1524 = vpop.permute.xlu0 %1523
        %1525 = vrot.lane.b32.xlu0 %v1445, 28
        %v1526 = vpop.permute.xlu0 %1525
        %1527 = vrot.lane.b32.xlu0 %v1446, 28
        %v1528 = vpop.permute.xlu0 %1527
        %1529 = vrot.lane.b32.xlu0 %v1447, 28
        %v1530 = vpop.permute.xlu0 %1529
        %1531 = vrot.lane.b32.xlu0 %v1448, 28
        %v1532 = vpop.permute.xlu0 %1531
        %1533 = vrot.lane.b32.xlu0 %v1449, 28
        %v1534 = vpop.permute.xlu0 %1533
        %1535 = vrot.lane.b32.xlu0 %v1450, 28
        %v1536 = vpop.permute.xlu0 %1535
        %1537 = vrot.lane.b32.xlu0 %v1451, 28
        %v1538 = vpop.permute.xlu0 %1537
        %1539 = vrot.lane.b32.xlu0 %v1452, 28
        %v1540 = vpop.permute.xlu0 %1539
        %1541 = vrot.lane.b32.xlu0 %v1453, 28
        %v1542 = vpop.permute.xlu0 %1541
        %1543 = vrot.lane.b32.xlu0 %v1454, 28
        %v1544 = vpop.permute.xlu0 %1543
        %1545 = vrot.lane.b32.xlu0 %v1455, 28
        %v1546 = vpop.permute.xlu0 %1545
        %1547 = vrot.lane.b32.xlu0 %v1456, 28
        %v1548 = vpop.permute.xlu0 %1547
        %1549 = vrot.lane.b32.xlu0 %v1457, 28
        %v1550 = vpop.permute.xlu0 %1549
        %1551 = vrot.lane.b32.xlu0 %v1458, 28
        %v1552 = vpop.permute.xlu0 %1551
        %1553 = vrot.lane.b32.xlu0 %v1459, 28
        %v1554 = vpop.permute.xlu0 %1553
        %1555 = vrot.lane.b32.xlu0 %v1460, 28
        %v1556 = vpop.permute.xlu0 %1555
        %vm1589 = vcmask 261344
        %1590 = vst.msk [vmem:[#allocation2] sm:$0xff] %vm1589, %v1494
        %1591 = vst.msk [vmem:[#allocation2 + $0x8] sm:$0xff] %vm1589, %v1496
        %1592 = vst.msk [vmem:[#allocation2 + $0x10] sm:$0xff] %vm1589, %v1498
        %1593 = vst.msk [vmem:[#allocation2 + $0x18] sm:$0xff] %vm1589, %v1500
        %1594 = vst.msk [vmem:[#allocation2 + $0x20] sm:$0xff] %vm1589, %v1502
        %1595 = vst.msk [vmem:[#allocation2 + $0x28] sm:$0xff] %vm1589, %v1504
        %1596 = vst.msk [vmem:[#allocation2 + $0x30] sm:$0xff] %vm1589, %v1506
        %1597 = vst.msk [vmem:[#allocation2 + $0x38] sm:$0xff] %vm1589, %v1508
        %1598 = vst.msk [vmem:[#allocation2 + $0x40] sm:$0xff] %vm1589, %v1510
        %1599 = vst.msk [vmem:[#allocation2 + $0x48] sm:$0xff] %vm1589, %v1512
        %1600 = vst.msk [vmem:[#allocation2 + $0x50] sm:$0xff] %vm1589, %v1514
        %1601 = vst.msk [vmem:[#allocation2 + $0x58] sm:$0xff] %vm1589, %v1516
        %1602 = vst.msk [vmem:[#allocation2 + $0x60] sm:$0xff] %vm1589, %v1518
        %1603 = vst.msk [vmem:[#allocation2 + $0x68] sm:$0xff] %vm1589, %v1520
        %1604 = vst.msk [vmem:[#allocation2 + $0x70] sm:$0xff] %vm1589, %v1522
        %1605 = vst.msk [vmem:[#allocation2 + $0x78] sm:$0xff] %vm1589, %v1524
        %1606 = vst.msk [vmem:[#allocation2 + $0x80] sm:$0xff] %vm1589, %v1526
        %1607 = vst.msk [vmem:[#allocation2 + $0x88] sm:$0xff] %vm1589, %v1528
        %1608 = vst.msk [vmem:[#allocation2 + $0x90] sm:$0xff] %vm1589, %v1530
        %1609 = vst.msk [vmem:[#allocation2 + $0x98] sm:$0xff] %vm1589, %v1532
        %1610 = vst.msk [vmem:[#allocation2 + $0xa0] sm:$0xff] %vm1589, %v1534
        %1611 = vst.msk [vmem:[#allocation2 + $0xa8] sm:$0xff] %vm1589, %v1536
        %1612 = vst.msk [vmem:[#allocation2 + $0xb0] sm:$0xff] %vm1589, %v1538
        %1613 = vst.msk [vmem:[#allocation2 + $0xb8] sm:$0xff] %vm1589, %v1540
        %1614 = vst.msk [vmem:[#allocation2 + $0xc0] sm:$0xff] %vm1589, %v1542
        %1615 = vst.msk [vmem:[#allocation2 + $0xc8] sm:$0xff] %vm1589, %v1544
        %1616 = vst.msk [vmem:[#allocation2 + $0xd0] sm:$0xff] %vm1589, %v1546
        %1617 = vst.msk [vmem:[#allocation2 + $0xd8] sm:$0xff] %vm1589, %v1548
        %1618 = vst.msk [vmem:[#allocation2 + $0xe0] sm:$0xff] %vm1589, %v1550
        %1619 = vst.msk [vmem:[#allocation2 + $0xe8] sm:$0xff] %vm1589, %v1552
        %1620 = vst.msk [vmem:[#allocation2 + $0xf0] sm:$0xff] %vm1589, %v1554
        %1621 = vst.msk [vmem:[#allocation2 + $0xf8] sm:$0xff] %vm1589, %v1556
        %v1622 = vld [vmem:[%s1235 + $0x2] sm:$0xff]
        %v1623 = vld [vmem:[%s1235 + $0x12] sm:$0xff]
        %v1624 = vld [vmem:[%s1235 + $0x22] sm:$0xff]
        %v1625 = vld [vmem:[%s1235 + $0x32] sm:$0xff]
        %v1626 = vld [vmem:[%s1235 + $0x42] sm:$0xff]
        %v1627 = vld [vmem:[%s1235 + $0x52] sm:$0xff]
        %v1628 = vld [vmem:[%s1235 + $0x62] sm:$0xff]
        %v1629 = vld [vmem:[%s1235 + $0x72] sm:$0xff]
        %v1630 = vld [vmem:[%s1235 + $0xa2] sm:$0xff]
        %v1631 = vld [vmem:[%s1235 + $0xb2] sm:$0xff]
        %v1632 = vld [vmem:[%s1235 + $0xc2] sm:$0xff]
        %v1633 = vld [vmem:[%s1235 + $0xd2] sm:$0xff]
        %v1634 = vld [vmem:[%s1235 + $0xe2] sm:$0xff]
        %v1635 = vld [vmem:[%s1235 + $0xf2] sm:$0xff]
        %v1636 = vld [vmem:[%s1235 + $0x102] sm:$0xff]
        %v1637 = vld [vmem:[%s1235 + $0x112] sm:$0xff]
        %v1638 = vld [vmem:[%s1235 + $0x142] sm:$0xff]
        %v1639 = vld [vmem:[%s1235 + $0x152] sm:$0xff]
        %v1640 = vld [vmem:[%s1235 + $0x162] sm:$0xff]
        %v1641 = vld [vmem:[%s1235 + $0x172] sm:$0xff]
        %v1642 = vld [vmem:[%s1235 + $0x182] sm:$0xff]
        %v1643 = vld [vmem:[%s1235 + $0x192] sm:$0xff]
        %v1644 = vld [vmem:[%s1235 + $0x1a2] sm:$0xff]
        %v1645 = vld [vmem:[%s1235 + $0x1b2] sm:$0xff]
        %v1646 = vld [vmem:[%s1235 + $0x1e2] sm:$0xff]
        %v1647 = vld [vmem:[%s1235 + $0x1f2] sm:$0xff]
        %v1648 = vld [vmem:[%s1235 + $0x202] sm:$0xff]
        %v1649 = vld [vmem:[%s1235 + $0x212] sm:$0xff]
        %v1650 = vld [vmem:[%s1235 + $0x222] sm:$0xff]
        %v1651 = vld [vmem:[%s1235 + $0x232] sm:$0xff]
        %v1652 = vld [vmem:[%s1235 + $0x242] sm:$0xff]
        %v1653 = vld [vmem:[%s1235 + $0x252] sm:$0xff]
        %1686 = vrot.lane.b32.xlu0 %v1622, 32
        %v1687 = vpop.permute.xlu0 %1686
        %1688 = vrot.lane.b32.xlu0 %v1623, 32
        %v1689 = vpop.permute.xlu0 %1688
        %1690 = vrot.lane.b32.xlu0 %v1624, 32
        %v1691 = vpop.permute.xlu0 %1690
        %1692 = vrot.lane.b32.xlu0 %v1625, 32
        %v1693 = vpop.permute.xlu0 %1692
        %1694 = vrot.lane.b32.xlu0 %v1626, 32
        %v1695 = vpop.permute.xlu0 %1694
        %1696 = vrot.lane.b32.xlu0 %v1627, 32
        %v1697 = vpop.permute.xlu0 %1696
        %1698 = vrot.lane.b32.xlu0 %v1628, 32
        %v1699 = vpop.permute.xlu0 %1698
        %1700 = vrot.lane.b32.xlu0 %v1629, 32
        %v1701 = vpop.permute.xlu0 %1700
        %1702 = vrot.lane.b32.xlu0 %v1630, 32
        %v1703 = vpop.permute.xlu0 %1702
        %1704 = vrot.lane.b32.xlu0 %v1631, 32
        %v1705 = vpop.permute.xlu0 %1704
        %1706 = vrot.lane.b32.xlu0 %v1632, 32
        %v1707 = vpop.permute.xlu0 %1706
        %1708 = vrot.lane.b32.xlu0 %v1633, 32
        %v1709 = vpop.permute.xlu0 %1708
        %1710 = vrot.lane.b32.xlu0 %v1634, 32
        %v1711 = vpop.permute.xlu0 %1710
        %1712 = vrot.lane.b32.xlu0 %v1635, 32
        %v1713 = vpop.permute.xlu0 %1712
        %1714 = vrot.lane.b32.xlu0 %v1636, 32
        %v1715 = vpop.permute.xlu0 %1714
        %1716 = vrot.lane.b32.xlu0 %v1637, 32
        %v1717 = vpop.permute.xlu0 %1716
        %1718 = vrot.lane.b32.xlu0 %v1638, 32
        %v1719 = vpop.permute.xlu0 %1718
        %1720 = vrot.lane.b32.xlu0 %v1639, 32
        %v1721 = vpop.permute.xlu0 %1720
        %1722 = vrot.lane.b32.xlu0 %v1640, 32
        %v1723 = vpop.permute.xlu0 %1722
        %1724 = vrot.lane.b32.xlu0 %v1641, 32
        %v1725 = vpop.permute.xlu0 %1724
        %1726 = vrot.lane.b32.xlu0 %v1642, 32
        %v1727 = vpop.permute.xlu0 %1726
        %1728 = vrot.lane.b32.xlu0 %v1643, 32
        %v1729 = vpop.permute.xlu0 %1728
        %1730 = vrot.lane.b32.xlu0 %v1644, 32
        %v1731 = vpop.permute.xlu0 %1730
        %1732 = vrot.lane.b32.xlu0 %v1645, 32
        %v1733 = vpop.permute.xlu0 %1732
        %1734 = vrot.lane.b32.xlu0 %v1646, 32
        %v1735 = vpop.permute.xlu0 %1734
        %1736 = vrot.lane.b32.xlu0 %v1647, 32
        %v1737 = vpop.permute.xlu0 %1736
        %1738 = vrot.lane.b32.xlu0 %v1648, 32
        %v1739 = vpop.permute.xlu0 %1738
        %1740 = vrot.lane.b32.xlu0 %v1649, 32
        %v1741 = vpop.permute.xlu0 %1740
        %1742 = vrot.lane.b32.xlu0 %v1650, 32
        %v1743 = vpop.permute.xlu0 %1742
        %1744 = vrot.lane.b32.xlu0 %v1651, 32
        %v1745 = vpop.permute.xlu0 %1744
        %1746 = vrot.lane.b32.xlu0 %v1652, 32
        %v1747 = vpop.permute.xlu0 %1746
        %1748 = vrot.lane.b32.xlu0 %v1653, 32
        %v1749 = vpop.permute.xlu0 %1748
        %vm1782 = vcmask 294144
        %1783 = vst.msk [vmem:[#allocation2] sm:$0xff] %vm1782, %v1687
        %1784 = vst.msk [vmem:[#allocation2 + $0x8] sm:$0xff] %vm1782, %v1689
        %1785 = vst.msk [vmem:[#allocation2 + $0x10] sm:$0xff] %vm1782, %v1691
        %1786 = vst.msk [vmem:[#allocation2 + $0x18] sm:$0xff] %vm1782, %v1693
        %1787 = vst.msk [vmem:[#allocation2 + $0x20] sm:$0xff] %vm1782, %v1695
        %1788 = vst.msk [vmem:[#allocation2 + $0x28] sm:$0xff] %vm1782, %v1697
        %1789 = vst.msk [vmem:[#allocation2 + $0x30] sm:$0xff] %vm1782, %v1699
        %1790 = vst.msk [vmem:[#allocation2 + $0x38] sm:$0xff] %vm1782, %v1701
        %1791 = vst.msk [vmem:[#allocation2 + $0x40] sm:$0xff] %vm1782, %v1703
        %1792 = vst.msk [vmem:[#allocation2 + $0x48] sm:$0xff] %vm1782, %v1705
        %1793 = vst.msk [vmem:[#allocation2 + $0x50] sm:$0xff] %vm1782, %v1707
        %1794 = vst.msk [vmem:[#allocation2 + $0x58] sm:$0xff] %vm1782, %v1709
        %1795 = vst.msk [vmem:[#allocation2 + $0x60] sm:$0xff] %vm1782, %v1711
        %1796 = vst.msk [vmem:[#allocation2 + $0x68] sm:$0xff] %vm1782, %v1713
        %1797 = vst.msk [vmem:[#allocation2 + $0x70] sm:$0xff] %vm1782, %v1715
        %1798 = vst.msk [vmem:[#allocation2 + $0x78] sm:$0xff] %vm1782, %v1717
        %1799 = vst.msk [vmem:[#allocation2 + $0x80] sm:$0xff] %vm1782, %v1719
        %1800 = vst.msk [vmem:[#allocation2 + $0x88] sm:$0xff] %vm1782, %v1721
        %1801 = vst.msk [vmem:[#allocation2 + $0x90] sm:$0xff] %vm1782, %v1723
        %1802 = vst.msk [vmem:[#allocation2 + $0x98] sm:$0xff] %vm1782, %v1725
        %1803 = vst.msk [vmem:[#allocation2 + $0xa0] sm:$0xff] %vm1782, %v1727
        %1804 = vst.msk [vmem:[#allocation2 + $0xa8] sm:$0xff] %vm1782, %v1729
        %1805 = vst.msk [vmem:[#allocation2 + $0xb0] sm:$0xff] %vm1782, %v1731
        %1806 = vst.msk [vmem:[#allocation2 + $0xb8] sm:$0xff] %vm1782, %v1733
        %1807 = vst.msk [vmem:[#allocation2 + $0xc0] sm:$0xff] %vm1782, %v1735
        %1808 = vst.msk [vmem:[#allocation2 + $0xc8] sm:$0xff] %vm1782, %v1737
        %1809 = vst.msk [vmem:[#allocation2 + $0xd0] sm:$0xff] %vm1782, %v1739
        %1810 = vst.msk [vmem:[#allocation2 + $0xd8] sm:$0xff] %vm1782, %v1741
        %1811 = vst.msk [vmem:[#allocation2 + $0xe0] sm:$0xff] %vm1782, %v1743
        %1812 = vst.msk [vmem:[#allocation2 + $0xe8] sm:$0xff] %vm1782, %v1745
        %1813 = vst.msk [vmem:[#allocation2 + $0xf0] sm:$0xff] %vm1782, %v1747
        %1814 = vst.msk [vmem:[#allocation2 + $0xf8] sm:$0xff] %vm1782, %v1749
        %s1815 = sadd.s32 %s157, 1
        %s1816 = smul.u32 %s1815, 160
        %s1817 = scalar_lea.vmem %s155, %s1816
        %v1818 = vld [vmem:[%s1817] sm:$0xff]
        %v1819 = vld [vmem:[%s1817 + $0x10] sm:$0xff]
        %v1820 = vld [vmem:[%s1817 + $0x20] sm:$0xff]
        %v1821 = vld [vmem:[%s1817 + $0x30] sm:$0xff]
        %v1822 = vld [vmem:[%s1817 + $0x40] sm:$0xff]
        %v1823 = vld [vmem:[%s1817 + $0x50] sm:$0xff]
        %v1824 = vld [vmem:[%s1817 + $0x60] sm:$0xff]
        %v1825 = vld [vmem:[%s1817 + $0x70] sm:$0xff]
        %v1826 = vld [vmem:[%s1817 + $0xa0] sm:$0xff]
        %v1827 = vld [vmem:[%s1817 + $0xb0] sm:$0xff]
        %v1828 = vld [vmem:[%s1817 + $0xc0] sm:$0xff]
        %v1829 = vld [vmem:[%s1817 + $0xd0] sm:$0xff]
        %v1830 = vld [vmem:[%s1817 + $0xe0] sm:$0xff]
        %v1831 = vld [vmem:[%s1817 + $0xf0] sm:$0xff]
        %v1832 = vld [vmem:[%s1817 + $0x100] sm:$0xff]
        %v1833 = vld [vmem:[%s1817 + $0x110] sm:$0xff]
        %v1834 = vld [vmem:[%s1817 + $0x140] sm:$0xff]
        %v1835 = vld [vmem:[%s1817 + $0x150] sm:$0xff]
        %v1836 = vld [vmem:[%s1817 + $0x160] sm:$0xff]
        %v1837 = vld [vmem:[%s1817 + $0x170] sm:$0xff]
        %v1838 = vld [vmem:[%s1817 + $0x180] sm:$0xff]
        %v1839 = vld [vmem:[%s1817 + $0x190] sm:$0xff]
        %v1840 = vld [vmem:[%s1817 + $0x1a0] sm:$0xff]
        %v1841 = vld [vmem:[%s1817 + $0x1b0] sm:$0xff]
        %v1842 = vld [vmem:[%s1817 + $0x1e0] sm:$0xff]
        %v1843 = vld [vmem:[%s1817 + $0x1f0] sm:$0xff]
        %v1844 = vld [vmem:[%s1817 + $0x200] sm:$0xff]
        %v1845 = vld [vmem:[%s1817 + $0x210] sm:$0xff]
        %v1846 = vld [vmem:[%s1817 + $0x220] sm:$0xff]
        %v1847 = vld [vmem:[%s1817 + $0x230] sm:$0xff]
        %v1848 = vld [vmem:[%s1817 + $0x240] sm:$0xff]
        %v1849 = vld [vmem:[%s1817 + $0x250] sm:$0xff]
        %1882 = vrot.lane.b32.xlu0 %v1818, 36
        %v1883 = vpop.permute.xlu0 %1882
        %1884 = vrot.lane.b32.xlu0 %v1819, 36
        %v1885 = vpop.permute.xlu0 %1884
        %1886 = vrot.lane.b32.xlu0 %v1820, 36
        %v1887 = vpop.permute.xlu0 %1886
        %1888 = vrot.lane.b32.xlu0 %v1821, 36
        %v1889 = vpop.permute.xlu0 %1888
        %1890 = vrot.lane.b32.xlu0 %v1822, 36
        %v1891 = vpop.permute.xlu0 %1890
        %1892 = vrot.lane.b32.xlu0 %v1823, 36
        %v1893 = vpop.permute.xlu0 %1892
        %1894 = vrot.lane.b32.xlu0 %v1824, 36
        %v1895 = vpop.permute.xlu0 %1894
        %1896 = vrot.lane.b32.xlu0 %v1825, 36
        %v1897 = vpop.permute.xlu0 %1896
        %1898 = vrot.lane.b32.xlu0 %v1826, 36
        %v1899 = vpop.permute.xlu0 %1898
        %1900 = vrot.lane.b32.xlu0 %v1827, 36
        %v1901 = vpop.permute.xlu0 %1900
        %1902 = vrot.lane.b32.xlu0 %v1828, 36
        %v1903 = vpop.permute.xlu0 %1902
        %1904 = vrot.lane.b32.xlu0 %v1829, 36
        %v1905 = vpop.permute.xlu0 %1904
        %1906 = vrot.lane.b32.xlu0 %v1830, 36
        %v1907 = vpop.permute.xlu0 %1906
        %1908 = vrot.lane.b32.xlu0 %v1831, 36
        %v1909 = vpop.permute.xlu0 %1908
        %1910 = vrot.lane.b32.xlu0 %v1832, 36
        %v1911 = vpop.permute.xlu0 %1910
        %1912 = vrot.lane.b32.xlu0 %v1833, 36
        %v1913 = vpop.permute.xlu0 %1912
        %1914 = vrot.lane.b32.xlu0 %v1834, 36
        %v1915 = vpop.permute.xlu0 %1914
        %1916 = vrot.lane.b32.xlu0 %v1835, 36
        %v1917 = vpop.permute.xlu0 %1916
        %1918 = vrot.lane.b32.xlu0 %v1836, 36
        %v1919 = vpop.permute.xlu0 %1918
        %1920 = vrot.lane.b32.xlu0 %v1837, 36
        %v1921 = vpop.permute.xlu0 %1920
        %1922 = vrot.lane.b32.xlu0 %v1838, 36
        %v1923 = vpop.permute.xlu0 %1922
        %1924 = vrot.lane.b32.xlu0 %v1839, 36
        %v1925 = vpop.permute.xlu0 %1924
        %1926 = vrot.lane.b32.xlu0 %v1840, 36
        %v1927 = vpop.permute.xlu0 %1926
        %1928 = vrot.lane.b32.xlu0 %v1841, 36
        %v1929 = vpop.permute.xlu0 %1928
        %1930 = vrot.lane.b32.xlu0 %v1842, 36
        %v1931 = vpop.permute.xlu0 %1930
        %1932 = vrot.lane.b32.xlu0 %v1843, 36
        %v1933 = vpop.permute.xlu0 %1932
        %1934 = vrot.lane.b32.xlu0 %v1844, 36
        %v1935 = vpop.permute.xlu0 %1934
        %1936 = vrot.lane.b32.xlu0 %v1845, 36
        %v1937 = vpop.permute.xlu0 %1936
        %1938 = vrot.lane.b32.xlu0 %v1846, 36
        %v1939 = vpop.permute.xlu0 %1938
        %1940 = vrot.lane.b32.xlu0 %v1847, 36
        %v1941 = vpop.permute.xlu0 %1940
        %1942 = vrot.lane.b32.xlu0 %v1848, 36
        %v1943 = vpop.permute.xlu0 %1942
        %1944 = vrot.lane.b32.xlu0 %v1849, 36
        %v1945 = vpop.permute.xlu0 %1944
        %vm1978 = vcmask 326944
        %1979 = vst.msk [vmem:[#allocation2] sm:$0xff] %vm1978, %v1883
        %1980 = vst.msk [vmem:[#allocation2 + $0x8] sm:$0xff] %vm1978, %v1885
        %1981 = vst.msk [vmem:[#allocation2 + $0x10] sm:$0xff] %vm1978, %v1887
        %1982 = vst.msk [vmem:[#allocation2 + $0x18] sm:$0xff] %vm1978, %v1889
        %1983 = vst.msk [vmem:[#allocation2 + $0x20] sm:$0xff] %vm1978, %v1891
        %1984 = vst.msk [vmem:[#allocation2 + $0x28] sm:$0xff] %vm1978, %v1893
        %1985 = vst.msk [vmem:[#allocation2 + $0x30] sm:$0xff] %vm1978, %v1895
        %1986 = vst.msk [vmem:[#allocation2 + $0x38] sm:$0xff] %vm1978, %v1897
        %1987 = vst.msk [vmem:[#allocation2 + $0x40] sm:$0xff] %vm1978, %v1899
        %1988 = vst.msk [vmem:[#allocation2 + $0x48] sm:$0xff] %vm1978, %v1901
        %1989 = vst.msk [vmem:[#allocation2 + $0x50] sm:$0xff] %vm1978, %v1903
        %1990 = vst.msk [vmem:[#allocation2 + $0x58] sm:$0xff] %vm1978, %v1905
        %1991 = vst.msk [vmem:[#allocation2 + $0x60] sm:$0xff] %vm1978, %v1907
        %1992 = vst.msk [vmem:[#allocation2 + $0x68] sm:$0xff] %vm1978, %v1909
        %1993 = vst.msk [vmem:[#allocation2 + $0x70] sm:$0xff] %vm1978, %v1911
        %1994 = vst.msk [vmem:[#allocation2 + $0x78] sm:$0xff] %vm1978, %v1913
        %1995 = vst.msk [vmem:[#allocation2 + $0x80] sm:$0xff] %vm1978, %v1915
        %1996 = vst.msk [vmem:[#allocation2 + $0x88] sm:$0xff] %vm1978, %v1917
        %1997 = vst.msk [vmem:[#allocation2 + $0x90] sm:$0xff] %vm1978, %v1919
        %1998 = vst.msk [vmem:[#allocation2 + $0x98] sm:$0xff] %vm1978, %v1921
        %1999 = vst.msk [vmem:[#allocation2 + $0xa0] sm:$0xff] %vm1978, %v1923
        %2000 = vst.msk [vmem:[#allocation2 + $0xa8] sm:$0xff] %vm1978, %v1925
        %2001 = vst.msk [vmem:[#allocation2 + $0xb0] sm:$0xff] %vm1978, %v1927
        %2002 = vst.msk [vmem:[#allocation2 + $0xb8] sm:$0xff] %vm1978, %v1929
        %2003 = vst.msk [vmem:[#allocation2 + $0xc0] sm:$0xff] %vm1978, %v1931
        %2004 = vst.msk [vmem:[#allocation2 + $0xc8] sm:$0xff] %vm1978, %v1933
        %2005 = vst.msk [vmem:[#allocation2 + $0xd0] sm:$0xff] %vm1978, %v1935
        %2006 = vst.msk [vmem:[#allocation2 + $0xd8] sm:$0xff] %vm1978, %v1937
        %2007 = vst.msk [vmem:[#allocation2 + $0xe0] sm:$0xff] %vm1978, %v1939
        %2008 = vst.msk [vmem:[#allocation2 + $0xe8] sm:$0xff] %vm1978, %v1941
        %2009 = vst.msk [vmem:[#allocation2 + $0xf0] sm:$0xff] %vm1978, %v1943
        %2010 = vst.msk [vmem:[#allocation2 + $0xf8] sm:$0xff] %vm1978, %v1945
        %v2011 = vld [vmem:[%s1817 + $0x1] sm:$0xff]
        %v2012 = vld [vmem:[%s1817 + $0x11] sm:$0xff]
        %v2013 = vld [vmem:[%s1817 + $0x21] sm:$0xff]
        %v2014 = vld [vmem:[%s1817 + $0x31] sm:$0xff]
        %v2015 = vld [vmem:[%s1817 + $0x41] sm:$0xff]
        %v2016 = vld [vmem:[%s1817 + $0x51] sm:$0xff]
        %v2017 = vld [vmem:[%s1817 + $0x61] sm:$0xff]
        %v2018 = vld [vmem:[%s1817 + $0x71] sm:$0xff]
        %v2019 = vld [vmem:[%s1817 + $0xa1] sm:$0xff]
        %v2020 = vld [vmem:[%s1817 + $0xb1] sm:$0xff]
        %v2021 = vld [vmem:[%s1817 + $0xc1] sm:$0xff]
        %v2022 = vld [vmem:[%s1817 + $0xd1] sm:$0xff]
        %v2023 = vld [vmem:[%s1817 + $0xe1] sm:$0xff]
        %v2024 = vld [vmem:[%s1817 + $0xf1] sm:$0xff]
        %v2025 = vld [vmem:[%s1817 + $0x101] sm:$0xff]
        %v2026 = vld [vmem:[%s1817 + $0x111] sm:$0xff]
        %v2027 = vld [vmem:[%s1817 + $0x141] sm:$0xff]
        %v2028 = vld [vmem:[%s1817 + $0x151] sm:$0xff]
        %v2029 = vld [vmem:[%s1817 + $0x161] sm:$0xff]
        %v2030 = vld [vmem:[%s1817 + $0x171] sm:$0xff]
        %v2031 = vld [vmem:[%s1817 + $0x181] sm:$0xff]
        %v2032 = vld [vmem:[%s1817 + $0x191] sm:$0xff]
        %v2033 = vld [vmem:[%s1817 + $0x1a1] sm:$0xff]
        %v2034 = vld [vmem:[%s1817 + $0x1b1] sm:$0xff]
        %v2035 = vld [vmem:[%s1817 + $0x1e1] sm:$0xff]
        %v2036 = vld [vmem:[%s1817 + $0x1f1] sm:$0xff]
        %v2037 = vld [vmem:[%s1817 + $0x201] sm:$0xff]
        %v2038 = vld [vmem:[%s1817 + $0x211] sm:$0xff]
        %v2039 = vld [vmem:[%s1817 + $0x221] sm:$0xff]
        %v2040 = vld [vmem:[%s1817 + $0x231] sm:$0xff]
        %v2041 = vld [vmem:[%s1817 + $0x241] sm:$0xff]
        %v2042 = vld [vmem:[%s1817 + $0x251] sm:$0xff]
        %2075 = vrot.lane.b32.xlu0 %v2011, 40
        %v2076 = vpop.permute.xlu0 %2075
        %2077 = vrot.lane.b32.xlu0 %v2012, 40
        %v2078 = vpop.permute.xlu0 %2077
        %2079 = vrot.lane.b32.xlu0 %v2013, 40
        %v2080 = vpop.permute.xlu0 %2079
        %2081 = vrot.lane.b32.xlu0 %v2014, 40
        %v2082 = vpop.permute.xlu0 %2081
        %2083 = vrot.lane.b32.xlu0 %v2015, 40
        %v2084 = vpop.permute.xlu0 %2083
        %2085 = vrot.lane.b32.xlu0 %v2016, 40
        %v2086 = vpop.permute.xlu0 %2085
        %2087 = vrot.lane.b32.xlu0 %v2017, 40
        %v2088 = vpop.permute.xlu0 %2087
        %2089 = vrot.lane.b32.xlu0 %v2018, 40
        %v2090 = vpop.permute.xlu0 %2089
        %2091 = vrot.lane.b32.xlu0 %v2019, 40
        %v2092 = vpop.permute.xlu0 %2091
        %2093 = vrot.lane.b32.xlu0 %v2020, 40
        %v2094 = vpop.permute.xlu0 %2093
        %2095 = vrot.lane.b32.xlu0 %v2021, 40
        %v2096 = vpop.permute.xlu0 %2095
        %2097 = vrot.lane.b32.xlu0 %v2022, 40
        %v2098 = vpop.permute.xlu0 %2097
        %2099 = vrot.lane.b32.xlu0 %v2023, 40
        %v2100 = vpop.permute.xlu0 %2099
        %2101 = vrot.lane.b32.xlu0 %v2024, 40
        %v2102 = vpop.permute.xlu0 %2101
        %2103 = vrot.lane.b32.xlu0 %v2025, 40
        %v2104 = vpop.permute.xlu0 %2103
        %2105 = vrot.lane.b32.xlu0 %v2026, 40
        %v2106 = vpop.permute.xlu0 %2105
        %2107 = vrot.lane.b32.xlu0 %v2027, 40
        %v2108 = vpop.permute.xlu0 %2107
        %2109 = vrot.lane.b32.xlu0 %v2028, 40
        %v2110 = vpop.permute.xlu0 %2109
        %2111 = vrot.lane.b32.xlu0 %v2029, 40
        %v2112 = vpop.permute.xlu0 %2111
        %2113 = vrot.lane.b32.xlu0 %v2030, 40
        %v2114 = vpop.permute.xlu0 %2113
        %2115 = vrot.lane.b32.xlu0 %v2031, 40
        %v2116 = vpop.permute.xlu0 %2115
        %2117 = vrot.lane.b32.xlu0 %v2032, 40
        %v2118 = vpop.permute.xlu0 %2117
        %2119 = vrot.lane.b32.xlu0 %v2033, 40
        %v2120 = vpop.permute.xlu0 %2119
        %2121 = vrot.lane.b32.xlu0 %v2034, 40
        %v2122 = vpop.permute.xlu0 %2121
        %2123 = vrot.lane.b32.xlu0 %v2035, 40
        %v2124 = vpop.permute.xlu0 %2123
        %2125 = vrot.lane.b32.xlu0 %v2036, 40
        %v2126 = vpop.permute.xlu0 %2125
        %2127 = vrot.lane.b32.xlu0 %v2037, 40
        %v2128 = vpop.permute.xlu0 %2127
        %2129 = vrot.lane.b32.xlu0 %v2038, 40
        %v2130 = vpop.permute.xlu0 %2129
        %2131 = vrot.lane.b32.xlu0 %v2039, 40
        %v2132 = vpop.permute.xlu0 %2131
        %2133 = vrot.lane.b32.xlu0 %v2040, 40
        %v2134 = vpop.permute.xlu0 %2133
        %2135 = vrot.lane.b32.xlu0 %v2041, 40
        %v2136 = vpop.permute.xlu0 %2135
        %2137 = vrot.lane.b32.xlu0 %v2042, 40
        %v2138 = vpop.permute.xlu0 %2137
        %vm2171 = vcmask 359744
        %2172 = vst.msk [vmem:[#allocation2] sm:$0xff] %vm2171, %v2076
        %2173 = vst.msk [vmem:[#allocation2 + $0x8] sm:$0xff] %vm2171, %v2078
        %2174 = vst.msk [vmem:[#allocation2 + $0x10] sm:$0xff] %vm2171, %v2080
        %2175 = vst.msk [vmem:[#allocation2 + $0x18] sm:$0xff] %vm2171, %v2082
        %2176 = vst.msk [vmem:[#allocation2 + $0x20] sm:$0xff] %vm2171, %v2084
        %2177 = vst.msk [vmem:[#allocation2 + $0x28] sm:$0xff] %vm2171, %v2086
        %2178 = vst.msk [vmem:[#allocation2 + $0x30] sm:$0xff] %vm2171, %v2088
        %2179 = vst.msk [vmem:[#allocation2 + $0x38] sm:$0xff] %vm2171, %v2090
        %2180 = vst.msk [vmem:[#allocation2 + $0x40] sm:$0xff] %vm2171, %v2092
        %2181 = vst.msk [vmem:[#allocation2 + $0x48] sm:$0xff] %vm2171, %v2094
        %2182 = vst.msk [vmem:[#allocation2 + $0x50] sm:$0xff] %vm2171, %v2096
        %2183 = vst.msk [vmem:[#allocation2 + $0x58] sm:$0xff] %vm2171, %v2098
        %2184 = vst.msk [vmem:[#allocation2 + $0x60] sm:$0xff] %vm2171, %v2100
        %2185 = vst.msk [vmem:[#allocation2 + $0x68] sm:$0xff] %vm2171, %v2102
        %2186 = vst.msk [vmem:[#allocation2 + $0x70] sm:$0xff] %vm2171, %v2104
        %2187 = vst.msk [vmem:[#allocation2 + $0x78] sm:$0xff] %vm2171, %v2106
        %2188 = vst.msk [vmem:[#allocation2 + $0x80] sm:$0xff] %vm2171, %v2108
        %2189 = vst.msk [vmem:[#allocation2 + $0x88] sm:$0xff] %vm2171, %v2110
        %2190 = vst.msk [vmem:[#allocation2 + $0x90] sm:$0xff] %vm2171, %v2112
        %2191 = vst.msk [vmem:[#allocation2 + $0x98] sm:$0xff] %vm2171, %v2114
        %2192 = vst.msk [vmem:[#allocation2 + $0xa0] sm:$0xff] %vm2171, %v2116
        %2193 = vst.msk [vmem:[#allocation2 + $0xa8] sm:$0xff] %vm2171, %v2118
        %2194 = vst.msk [vmem:[#allocation2 + $0xb0] sm:$0xff] %vm2171, %v2120
        %2195 = vst.msk [vmem:[#allocation2 + $0xb8] sm:$0xff] %vm2171, %v2122
        %2196 = vst.msk [vmem:[#allocation2 + $0xc0] sm:$0xff] %vm2171, %v2124
        %2197 = vst.msk [vmem:[#allocation2 + $0xc8] sm:$0xff] %vm2171, %v2126
        %2198 = vst.msk [vmem:[#allocation2 + $0xd0] sm:$0xff] %vm2171, %v2128
        %2199 = vst.msk [vmem:[#allocation2 + $0xd8] sm:$0xff] %vm2171, %v2130
        %2200 = vst.msk [vmem:[#allocation2 + $0xe0] sm:$0xff] %vm2171, %v2132
        %2201 = vst.msk [vmem:[#allocation2 + $0xe8] sm:$0xff] %vm2171, %v2134
        %2202 = vst.msk [vmem:[#allocation2 + $0xf0] sm:$0xff] %vm2171, %v2136
        %2203 = vst.msk [vmem:[#allocation2 + $0xf8] sm:$0xff] %vm2171, %v2138
        %v2204 = vld [vmem:[%s1817 + $0x2] sm:$0xff]
        %v2205 = vld [vmem:[%s1817 + $0x12] sm:$0xff]
        %v2206 = vld [vmem:[%s1817 + $0x22] sm:$0xff]
        %v2207 = vld [vmem:[%s1817 + $0x32] sm:$0xff]
        %v2208 = vld [vmem:[%s1817 + $0x42] sm:$0xff]
        %v2209 = vld [vmem:[%s1817 + $0x52] sm:$0xff]
        %v2210 = vld [vmem:[%s1817 + $0x62] sm:$0xff]
        %v2211 = vld [vmem:[%s1817 + $0x72] sm:$0xff]
        %v2212 = vld [vmem:[%s1817 + $0xa2] sm:$0xff]
        %v2213 = vld [vmem:[%s1817 + $0xb2] sm:$0xff]
        %v2214 = vld [vmem:[%s1817 + $0xc2] sm:$0xff]
        %v2215 = vld [vmem:[%s1817 + $0xd2] sm:$0xff]
        %v2216 = vld [vmem:[%s1817 + $0xe2] sm:$0xff]
        %v2217 = vld [vmem:[%s1817 + $0xf2] sm:$0xff]
        %v2218 = vld [vmem:[%s1817 + $0x102] sm:$0xff]
        %v2219 = vld [vmem:[%s1817 + $0x112] sm:$0xff]
        %v2220 = vld [vmem:[%s1817 + $0x142] sm:$0xff]
        %v2221 = vld [vmem:[%s1817 + $0x152] sm:$0xff]
        %v2222 = vld [vmem:[%s1817 + $0x162] sm:$0xff]
        %v2223 = vld [vmem:[%s1817 + $0x172] sm:$0xff]
        %v2224 = vld [vmem:[%s1817 + $0x182] sm:$0xff]
        %v2225 = vld [vmem:[%s1817 + $0x192] sm:$0xff]
        %v2226 = vld [vmem:[%s1817 + $0x1a2] sm:$0xff]
        %v2227 = vld [vmem:[%s1817 + $0x1b2] sm:$0xff]
        %v2228 = vld [vmem:[%s1817 + $0x1e2] sm:$0xff]
        %v2229 = vld [vmem:[%s1817 + $0x1f2] sm:$0xff]
        %v2230 = vld [vmem:[%s1817 + $0x202] sm:$0xff]
        %v2231 = vld [vmem:[%s1817 + $0x212] sm:$0xff]
        %v2232 = vld [vmem:[%s1817 + $0x222] sm:$0xff]
        %v2233 = vld [vmem:[%s1817 + $0x232] sm:$0xff]
        %v2234 = vld [vmem:[%s1817 + $0x242] sm:$0xff]
        %v2235 = vld [vmem:[%s1817 + $0x252] sm:$0xff]
        %2268 = vrot.lane.b32.xlu0 %v2204, 44
        %v2269 = vpop.permute.xlu0 %2268
        %2270 = vrot.lane.b32.xlu0 %v2205, 44
        %v2271 = vpop.permute.xlu0 %2270
        %2272 = vrot.lane.b32.xlu0 %v2206, 44
        %v2273 = vpop.permute.xlu0 %2272
        %2274 = vrot.lane.b32.xlu0 %v2207, 44
        %v2275 = vpop.permute.xlu0 %2274
        %2276 = vrot.lane.b32.xlu0 %v2208, 44
        %v2277 = vpop.permute.xlu0 %2276
        %2278 = vrot.lane.b32.xlu0 %v2209, 44
        %v2279 = vpop.permute.xlu0 %2278
        %2280 = vrot.lane.b32.xlu0 %v2210, 44
        %v2281 = vpop.permute.xlu0 %2280
        %2282 = vrot.lane.b32.xlu0 %v2211, 44
        %v2283 = vpop.permute.xlu0 %2282
        %2284 = vrot.lane.b32.xlu0 %v2212, 44
        %v2285 = vpop.permute.xlu0 %2284
        %2286 = vrot.lane.b32.xlu0 %v2213, 44
        %v2287 = vpop.permute.xlu0 %2286
        %2288 = vrot.lane.b32.xlu0 %v2214, 44
        %v2289 = vpop.permute.xlu0 %2288
        %2290 = vrot.lane.b32.xlu0 %v2215, 44
        %v2291 = vpop.permute.xlu0 %2290
        %2292 = vrot.lane.b32.xlu0 %v2216, 44
        %v2293 = vpop.permute.xlu0 %2292
        %2294 = vrot.lane.b32.xlu0 %v2217, 44
        %v2295 = vpop.permute.xlu0 %2294
        %2296 = vrot.lane.b32.xlu0 %v2218, 44
        %v2297 = vpop.permute.xlu0 %2296
        %2298 = vrot.lane.b32.xlu0 %v2219, 44
        %v2299 = vpop.permute.xlu0 %2298
        %2300 = vrot.lane.b32.xlu0 %v2220, 44
        %v2301 = vpop.permute.xlu0 %2300
        %2302 = vrot.lane.b32.xlu0 %v2221, 44
        %v2303 = vpop.permute.xlu0 %2302
        %2304 = vrot.lane.b32.xlu0 %v2222, 44
        %v2305 = vpop.permute.xlu0 %2304
        %2306 = vrot.lane.b32.xlu0 %v2223, 44
        %v2307 = vpop.permute.xlu0 %2306
        %2308 = vrot.lane.b32.xlu0 %v2224, 44
        %v2309 = vpop.permute.xlu0 %2308
        %2310 = vrot.lane.b32.xlu0 %v2225, 44
        %v2311 = vpop.permute.xlu0 %2310
        %2312 = vrot.lane.b32.xlu0 %v2226, 44
        %v2313 = vpop.permute.xlu0 %2312
        %2314 = vrot.lane.b32.xlu0 %v2227, 44
        %v2315 = vpop.permute.xlu0 %2314
        %2316 = vrot.lane.b32.xlu0 %v2228, 44
        %v2317 = vpop.permute.xlu0 %2316
        %2318 = vrot.lane.b32.xlu0 %v2229, 44
        %v2319 = vpop.permute.xlu0 %2318
        %2320 = vrot.lane.b32.xlu0 %v2230, 44
        %v2321 = vpop.permute.xlu0 %2320
        %2322 = vrot.lane.b32.xlu0 %v2231, 44
        %v2323 = vpop.permute.xlu0 %2322
        %2324 = vrot.lane.b32.xlu0 %v2232, 44
        %v2325 = vpop.permute.xlu0 %2324
        %2326 = vrot.lane.b32.xlu0 %v2233, 44
        %v2327 = vpop.permute.xlu0 %2326
        %2328 = vrot.lane.b32.xlu0 %v2234, 44
        %v2329 = vpop.permute.xlu0 %2328
        %2330 = vrot.lane.b32.xlu0 %v2235, 44
        %v2331 = vpop.permute.xlu0 %2330
        %vm2364 = vcmask 392544
        %2365 = vst.msk [vmem:[#allocation2] sm:$0xff] %vm2364, %v2269
        %2366 = vst.msk [vmem:[#allocation2 + $0x8] sm:$0xff] %vm2364, %v2271
        %2367 = vst.msk [vmem:[#allocation2 + $0x10] sm:$0xff] %vm2364, %v2273
        %2368 = vst.msk [vmem:[#allocation2 + $0x18] sm:$0xff] %vm2364, %v2275
        %2369 = vst.msk [vmem:[#allocation2 + $0x20] sm:$0xff] %vm2364, %v2277
        %2370 = vst.msk [vmem:[#allocation2 + $0x28] sm:$0xff] %vm2364, %v2279
        %2371 = vst.msk [vmem:[#allocation2 + $0x30] sm:$0xff] %vm2364, %v2281
        %2372 = vst.msk [vmem:[#allocation2 + $0x38] sm:$0xff] %vm2364, %v2283
        %2373 = vst.msk [vmem:[#allocation2 + $0x40] sm:$0xff] %vm2364, %v2285
        %2374 = vst.msk [vmem:[#allocation2 + $0x48] sm:$0xff] %vm2364, %v2287
        %2375 = vst.msk [vmem:[#allocation2 + $0x50] sm:$0xff] %vm2364, %v2289
        %2376 = vst.msk [vmem:[#allocation2 + $0x58] sm:$0xff] %vm2364, %v2291
        %2377 = vst.msk [vmem:[#allocation2 + $0x60] sm:$0xff] %vm2364, %v2293
        %2378 = vst.msk [vmem:[#allocation2 + $0x68] sm:$0xff] %vm2364, %v2295
        %2379 = vst.msk [vmem:[#allocation2 + $0x70] sm:$0xff] %vm2364, %v2297
        %2380 = vst.msk [vmem:[#allocation2 + $0x78] sm:$0xff] %vm2364, %v2299
        %2381 = vst.msk [vmem:[#allocation2 + $0x80] sm:$0xff] %vm2364, %v2301
        %2382 = vst.msk [vmem:[#allocation2 + $0x88] sm:$0xff] %vm2364, %v2303
        %2383 = vst.msk [vmem:[#allocation2 + $0x90] sm:$0xff] %vm2364, %v2305
        %2384 = vst.msk [vmem:[#allocation2 + $0x98] sm:$0xff] %vm2364, %v2307
        %2385 = vst.msk [vmem:[#allocation2 + $0xa0] sm:$0xff] %vm2364, %v2309
        %2386 = vst.msk [vmem:[#allocation2 + $0xa8] sm:$0xff] %vm2364, %v2311
        %2387 = vst.msk [vmem:[#allocation2 + $0xb0] sm:$0xff] %vm2364, %v2313
        %2388 = vst.msk [vmem:[#allocation2 + $0xb8] sm:$0xff] %vm2364, %v2315
        %2389 = vst.msk [vmem:[#allocation2 + $0xc0] sm:$0xff] %vm2364, %v2317
        %2390 = vst.msk [vmem:[#allocation2 + $0xc8] sm:$0xff] %vm2364, %v2319
        %2391 = vst.msk [vmem:[#allocation2 + $0xd0] sm:$0xff] %vm2364, %v2321
        %2392 = vst.msk [vmem:[#allocation2 + $0xd8] sm:$0xff] %vm2364, %v2323
        %2393 = vst.msk [vmem:[#allocation2 + $0xe0] sm:$0xff] %vm2364, %v2325
        %2394 = vst.msk [vmem:[#allocation2 + $0xe8] sm:$0xff] %vm2364, %v2327
        %2395 = vst.msk [vmem:[#allocation2 + $0xf0] sm:$0xff] %vm2364, %v2329
        %2396 = vst.msk [vmem:[#allocation2 + $0xf8] sm:$0xff] %vm2364, %v2331
        %s2397 = sadd.s32 16, %s1816
        %s2398 = scalar_lea.vmem %s155, %s2397
        %v2399 = vld [vmem:[%s2398] sm:$0xff]
        %v2400 = vld [vmem:[%s2398 + $0x10] sm:$0xff]
        %v2401 = vld [vmem:[%s2398 + $0x20] sm:$0xff]
        %v2402 = vld [vmem:[%s2398 + $0x30] sm:$0xff]
        %v2403 = vld [vmem:[%s2398 + $0x40] sm:$0xff]
        %v2404 = vld [vmem:[%s2398 + $0x50] sm:$0xff]
        %v2405 = vld [vmem:[%s2398 + $0x60] sm:$0xff]
        %v2406 = vld [vmem:[%s2398 + $0x70] sm:$0xff]
        %v2407 = vld [vmem:[%s2398 + $0xa0] sm:$0xff]
        %v2408 = vld [vmem:[%s2398 + $0xb0] sm:$0xff]
        %v2409 = vld [vmem:[%s2398 + $0xc0] sm:$0xff]
        %v2410 = vld [vmem:[%s2398 + $0xd0] sm:$0xff]
        %v2411 = vld [vmem:[%s2398 + $0xe0] sm:$0xff]
        %v2412 = vld [vmem:[%s2398 + $0xf0] sm:$0xff]
        %v2413 = vld [vmem:[%s2398 + $0x100] sm:$0xff]
        %v2414 = vld [vmem:[%s2398 + $0x110] sm:$0xff]
        %v2415 = vld [vmem:[%s2398 + $0x140] sm:$0xff]
        %v2416 = vld [vmem:[%s2398 + $0x150] sm:$0xff]
        %v2417 = vld [vmem:[%s2398 + $0x160] sm:$0xff]
        %v2418 = vld [vmem:[%s2398 + $0x170] sm:$0xff]
        %v2419 = vld [vmem:[%s2398 + $0x180] sm:$0xff]
        %v2420 = vld [vmem:[%s2398 + $0x190] sm:$0xff]
        %v2421 = vld [vmem:[%s2398 + $0x1a0] sm:$0xff]
        %v2422 = vld [vmem:[%s2398 + $0x1b0] sm:$0xff]
        %v2423 = vld [vmem:[%s2398 + $0x1e0] sm:$0xff]
        %v2424 = vld [vmem:[%s2398 + $0x1f0] sm:$0xff]
        %v2425 = vld [vmem:[%s2398 + $0x200] sm:$0xff]
        %v2426 = vld [vmem:[%s2398 + $0x210] sm:$0xff]
        %v2427 = vld [vmem:[%s2398 + $0x220] sm:$0xff]
        %v2428 = vld [vmem:[%s2398 + $0x230] sm:$0xff]
        %v2429 = vld [vmem:[%s2398 + $0x240] sm:$0xff]
        %v2430 = vld [vmem:[%s2398 + $0x250] sm:$0xff]
        %2463 = vrot.lane.b32.xlu0 %v2399, 48
        %v2464 = vpop.permute.xlu0 %2463
        %2465 = vrot.lane.b32.xlu0 %v2400, 48
        %v2466 = vpop.permute.xlu0 %2465
        %2467 = vrot.lane.b32.xlu0 %v2401, 48
        %v2468 = vpop.permute.xlu0 %2467
        %2469 = vrot.lane.b32.xlu0 %v2402, 48
        %v2470 = vpop.permute.xlu0 %2469
        %2471 = vrot.lane.b32.xlu0 %v2403, 48
        %v2472 = vpop.permute.xlu0 %2471
        %2473 = vrot.lane.b32.xlu0 %v2404, 48
        %v2474 = vpop.permute.xlu0 %2473
        %2475 = vrot.lane.b32.xlu0 %v2405, 48
        %v2476 = vpop.permute.xlu0 %2475
        %2477 = vrot.lane.b32.xlu0 %v2406, 48
        %v2478 = vpop.permute.xlu0 %2477
        %2479 = vrot.lane.b32.xlu0 %v2407, 48
        %v2480 = vpop.permute.xlu0 %2479
        %2481 = vrot.lane.b32.xlu0 %v2408, 48
        %v2482 = vpop.permute.xlu0 %2481
        %2483 = vrot.lane.b32.xlu0 %v2409, 48
        %v2484 = vpop.permute.xlu0 %2483
        %2485 = vrot.lane.b32.xlu0 %v2410, 48
        %v2486 = vpop.permute.xlu0 %2485
        %2487 = vrot.lane.b32.xlu0 %v2411, 48
        %v2488 = vpop.permute.xlu0 %2487
        %2489 = vrot.lane.b32.xlu0 %v2412, 48
        %v2490 = vpop.permute.xlu0 %2489
        %2491 = vrot.lane.b32.xlu0 %v2413, 48
        %v2492 = vpop.permute.xlu0 %2491
        %2493 = vrot.lane.b32.xlu0 %v2414, 48
        %v2494 = vpop.permute.xlu0 %2493
        %2495 = vrot.lane.b32.xlu0 %v2415, 48
        %v2496 = vpop.permute.xlu0 %2495
        %2497 = vrot.lane.b32.xlu0 %v2416, 48
        %v2498 = vpop.permute.xlu0 %2497
        %2499 = vrot.lane.b32.xlu0 %v2417, 48
        %v2500 = vpop.permute.xlu0 %2499
        %2501 = vrot.lane.b32.xlu0 %v2418, 48
        %v2502 = vpop.permute.xlu0 %2501
        %2503 = vrot.lane.b32.xlu0 %v2419, 48
        %v2504 = vpop.permute.xlu0 %2503
        %2505 = vrot.lane.b32.xlu0 %v2420, 48
        %v2506 = vpop.permute.xlu0 %2505
        %2507 = vrot.lane.b32.xlu0 %v2421, 48
        %v2508 = vpop.permute.xlu0 %2507
        %2509 = vrot.lane.b32.xlu0 %v2422, 48
        %v2510 = vpop.permute.xlu0 %2509
        %2511 = vrot.lane.b32.xlu0 %v2423, 48
        %v2512 = vpop.permute.xlu0 %2511
        %2513 = vrot.lane.b32.xlu0 %v2424, 48
        %v2514 = vpop.permute.xlu0 %2513
        %2515 = vrot.lane.b32.xlu0 %v2425, 48
        %v2516 = vpop.permute.xlu0 %2515
        %2517 = vrot.lane.b32.xlu0 %v2426, 48
        %v2518 = vpop.permute.xlu0 %2517
        %2519 = vrot.lane.b32.xlu0 %v2427, 48
        %v2520 = vpop.permute.xlu0 %2519
        %2521 = vrot.lane.b32.xlu0 %v2428, 48
        %v2522 = vpop.permute.xlu0 %2521
        %2523 = vrot.lane.b32.xlu0 %v2429, 48
        %v2524 = vpop.permute.xlu0 %2523
        %2525 = vrot.lane.b32.xlu0 %v2430, 48
        %v2526 = vpop.permute.xlu0 %2525
        %vm2559 = vcmask 425344
        %2560 = vst.msk [vmem:[#allocation2] sm:$0xff] %vm2559, %v2464
        %2561 = vst.msk [vmem:[#allocation2 + $0x8] sm:$0xff] %vm2559, %v2466
        %2562 = vst.msk [vmem:[#allocation2 + $0x10] sm:$0xff] %vm2559, %v2468
        %2563 = vst.msk [vmem:[#allocation2 + $0x18] sm:$0xff] %vm2559, %v2470
        %2564 = vst.msk [vmem:[#allocation2 + $0x20] sm:$0xff] %vm2559, %v2472
        %2565 = vst.msk [vmem:[#allocation2 + $0x28] sm:$0xff] %vm2559, %v2474
        %2566 = vst.msk [vmem:[#allocation2 + $0x30] sm:$0xff] %vm2559, %v2476
        %2567 = vst.msk [vmem:[#allocation2 + $0x38] sm:$0xff] %vm2559, %v2478
        %2568 = vst.msk [vmem:[#allocation2 + $0x40] sm:$0xff] %vm2559, %v2480
        %2569 = vst.msk [vmem:[#allocation2 + $0x48] sm:$0xff] %vm2559, %v2482
        %2570 = vst.msk [vmem:[#allocation2 + $0x50] sm:$0xff] %vm2559, %v2484
        %2571 = vst.msk [vmem:[#allocation2 + $0x58] sm:$0xff] %vm2559, %v2486
        %2572 = vst.msk [vmem:[#allocation2 + $0x60] sm:$0xff] %vm2559, %v2488
        %2573 = vst.msk [vmem:[#allocation2 + $0x68] sm:$0xff] %vm2559, %v2490
        %2574 = vst.msk [vmem:[#allocation2 + $0x70] sm:$0xff] %vm2559, %v2492
        %2575 = vst.msk [vmem:[#allocation2 + $0x78] sm:$0xff] %vm2559, %v2494
        %2576 = vst.msk [vmem:[#allocation2 + $0x80] sm:$0xff] %vm2559, %v2496
        %2577 = vst.msk [vmem:[#allocation2 + $0x88] sm:$0xff] %vm2559, %v2498
        %2578 = vst.msk [vmem:[#allocation2 + $0x90] sm:$0xff] %vm2559, %v2500
        %2579 = vst.msk [vmem:[#allocation2 + $0x98] sm:$0xff] %vm2559, %v2502
        %2580 = vst.msk [vmem:[#allocation2 + $0xa0] sm:$0xff] %vm2559, %v2504
        %2581 = vst.msk [vmem:[#allocation2 + $0xa8] sm:$0xff] %vm2559, %v2506
        %2582 = vst.msk [vmem:[#allocation2 + $0xb0] sm:$0xff] %vm2559, %v2508
        %2583 = vst.msk [vmem:[#allocation2 + $0xb8] sm:$0xff] %vm2559, %v2510
        %2584 = vst.msk [vmem:[#allocation2 + $0xc0] sm:$0xff] %vm2559, %v2512
        %2585 = vst.msk [vmem:[#allocation2 + $0xc8] sm:$0xff] %vm2559, %v2514
        %2586 = vst.msk [vmem:[#allocation2 + $0xd0] sm:$0xff] %vm2559, %v2516
        %2587 = vst.msk [vmem:[#allocation2 + $0xd8] sm:$0xff] %vm2559, %v2518
        %2588 = vst.msk [vmem:[#allocation2 + $0xe0] sm:$0xff] %vm2559, %v2520
        %2589 = vst.msk [vmem:[#allocation2 + $0xe8] sm:$0xff] %vm2559, %v2522
        %2590 = vst.msk [vmem:[#allocation2 + $0xf0] sm:$0xff] %vm2559, %v2524
        %2591 = vst.msk [vmem:[#allocation2 + $0xf8] sm:$0xff] %vm2559, %v2526
        %v2592 = vld [vmem:[%s2398 + $0x1] sm:$0xff]
        %v2593 = vld [vmem:[%s2398 + $0x11] sm:$0xff]
        %v2594 = vld [vmem:[%s2398 + $0x21] sm:$0xff]
        %v2595 = vld [vmem:[%s2398 + $0x31] sm:$0xff]
        %v2596 = vld [vmem:[%s2398 + $0x41] sm:$0xff]
        %v2597 = vld [vmem:[%s2398 + $0x51] sm:$0xff]
        %v2598 = vld [vmem:[%s2398 + $0x61] sm:$0xff]
        %v2599 = vld [vmem:[%s2398 + $0x71] sm:$0xff]
        %v2600 = vld [vmem:[%s2398 + $0xa1] sm:$0xff]
        %v2601 = vld [vmem:[%s2398 + $0xb1] sm:$0xff]
        %v2602 = vld [vmem:[%s2398 + $0xc1] sm:$0xff]
        %v2603 = vld [vmem:[%s2398 + $0xd1] sm:$0xff]
        %v2604 = vld [vmem:[%s2398 + $0xe1] sm:$0xff]
        %v2605 = vld [vmem:[%s2398 + $0xf1] sm:$0xff]
        %v2606 = vld [vmem:[%s2398 + $0x101] sm:$0xff]
        %v2607 = vld [vmem:[%s2398 + $0x111] sm:$0xff]
        %v2608 = vld [vmem:[%s2398 + $0x141] sm:$0xff]
        %v2609 = vld [vmem:[%s2398 + $0x151] sm:$0xff]
        %v2610 = vld [vmem:[%s2398 + $0x161] sm:$0xff]
        %v2611 = vld [vmem:[%s2398 + $0x171] sm:$0xff]
        %v2612 = vld [vmem:[%s2398 + $0x181] sm:$0xff]
        %v2613 = vld [vmem:[%s2398 + $0x191] sm:$0xff]
        %v2614 = vld [vmem:[%s2398 + $0x1a1] sm:$0xff]
        %v2615 = vld [vmem:[%s2398 + $0x1b1] sm:$0xff]
        %v2616 = vld [vmem:[%s2398 + $0x1e1] sm:$0xff]
        %v2617 = vld [vmem:[%s2398 + $0x1f1] sm:$0xff]
        %v2618 = vld [vmem:[%s2398 + $0x201] sm:$0xff]
        %v2619 = vld [vmem:[%s2398 + $0x211] sm:$0xff]
        %v2620 = vld [vmem:[%s2398 + $0x221] sm:$0xff]
        %v2621 = vld [vmem:[%s2398 + $0x231] sm:$0xff]
        %v2622 = vld [vmem:[%s2398 + $0x241] sm:$0xff]
        %v2623 = vld [vmem:[%s2398 + $0x251] sm:$0xff]
        %2656 = vrot.lane.b32.xlu0 %v2592, 52
        %v2657 = vpop.permute.xlu0 %2656
        %2658 = vrot.lane.b32.xlu0 %v2593, 52
        %v2659 = vpop.permute.xlu0 %2658
        %2660 = vrot.lane.b32.xlu0 %v2594, 52
        %v2661 = vpop.permute.xlu0 %2660
        %2662 = vrot.lane.b32.xlu0 %v2595, 52
        %v2663 = vpop.permute.xlu0 %2662
        %2664 = vrot.lane.b32.xlu0 %v2596, 52
        %v2665 = vpop.permute.xlu0 %2664
        %2666 = vrot.lane.b32.xlu0 %v2597, 52
        %v2667 = vpop.permute.xlu0 %2666
        %2668 = vrot.lane.b32.xlu0 %v2598, 52
        %v2669 = vpop.permute.xlu0 %2668
        %2670 = vrot.lane.b32.xlu0 %v2599, 52
        %v2671 = vpop.permute.xlu0 %2670
        %2672 = vrot.lane.b32.xlu0 %v2600, 52
        %v2673 = vpop.permute.xlu0 %2672
        %2674 = vrot.lane.b32.xlu0 %v2601, 52
        %v2675 = vpop.permute.xlu0 %2674
        %2676 = vrot.lane.b32.xlu0 %v2602, 52
        %v2677 = vpop.permute.xlu0 %2676
        %2678 = vrot.lane.b32.xlu0 %v2603, 52
        %v2679 = vpop.permute.xlu0 %2678
        %2680 = vrot.lane.b32.xlu0 %v2604, 52
        %v2681 = vpop.permute.xlu0 %2680
        %2682 = vrot.lane.b32.xlu0 %v2605, 52
        %v2683 = vpop.permute.xlu0 %2682
        %2684 = vrot.lane.b32.xlu0 %v2606, 52
        %v2685 = vpop.permute.xlu0 %2684
        %2686 = vrot.lane.b32.xlu0 %v2607, 52
        %v2687 = vpop.permute.xlu0 %2686
        %2688 = vrot.lane.b32.xlu0 %v2608, 52
        %v2689 = vpop.permute.xlu0 %2688
        %2690 = vrot.lane.b32.xlu0 %v2609, 52
        %v2691 = vpop.permute.xlu0 %2690
        %2692 = vrot.lane.b32.xlu0 %v2610, 52
        %v2693 = vpop.permute.xlu0 %2692
        %2694 = vrot.lane.b32.xlu0 %v2611, 52
        %v2695 = vpop.permute.xlu0 %2694
        %2696 = vrot.lane.b32.xlu0 %v2612, 52
        %v2697 = vpop.permute.xlu0 %2696
        %2698 = vrot.lane.b32.xlu0 %v2613, 52
        %v2699 = vpop.permute.xlu0 %2698
        %2700 = vrot.lane.b32.xlu0 %v2614, 52
        %v2701 = vpop.permute.xlu0 %2700
        %2702 = vrot.lane.b32.xlu0 %v2615, 52
        %v2703 = vpop.permute.xlu0 %2702
        %2704 = vrot.lane.b32.xlu0 %v2616, 52
        %v2705 = vpop.permute.xlu0 %2704
        %2706 = vrot.lane.b32.xlu0 %v2617, 52
        %v2707 = vpop.permute.xlu0 %2706
        %2708 = vrot.lane.b32.xlu0 %v2618, 52
        %v2709 = vpop.permute.xlu0 %2708
        %2710 = vrot.lane.b32.xlu0 %v2619, 52
        %v2711 = vpop.permute.xlu0 %2710
        %2712 = vrot.lane.b32.xlu0 %v2620, 52
        %v2713 = vpop.permute.xlu0 %2712
        %2714 = vrot.lane.b32.xlu0 %v2621, 52
        %v2715 = vpop.permute.xlu0 %2714
        %2716 = vrot.lane.b32.xlu0 %v2622, 52
        %v2717 = vpop.permute.xlu0 %2716
        %2718 = vrot.lane.b32.xlu0 %v2623, 52
        %v2719 = vpop.permute.xlu0 %2718
        %vm2752 = vcmask 458144
        %2753 = vst.msk [vmem:[#allocation2] sm:$0xff] %vm2752, %v2657
        %2754 = vst.msk [vmem:[#allocation2 + $0x8] sm:$0xff] %vm2752, %v2659
        %2755 = vst.msk [vmem:[#allocation2 + $0x10] sm:$0xff] %vm2752, %v2661
        %2756 = vst.msk [vmem:[#allocation2 + $0x18] sm:$0xff] %vm2752, %v2663
        %2757 = vst.msk [vmem:[#allocation2 + $0x20] sm:$0xff] %vm2752, %v2665
        %2758 = vst.msk [vmem:[#allocation2 + $0x28] sm:$0xff] %vm2752, %v2667
        %2759 = vst.msk [vmem:[#allocation2 + $0x30] sm:$0xff] %vm2752, %v2669
        %2760 = vst.msk [vmem:[#allocation2 + $0x38] sm:$0xff] %vm2752, %v2671
        %2761 = vst.msk [vmem:[#allocation2 + $0x40] sm:$0xff] %vm2752, %v2673
        %2762 = vst.msk [vmem:[#allocation2 + $0x48] sm:$0xff] %vm2752, %v2675
        %2763 = vst.msk [vmem:[#allocation2 + $0x50] sm:$0xff] %vm2752, %v2677
        %2764 = vst.msk [vmem:[#allocation2 + $0x58] sm:$0xff] %vm2752, %v2679
        %2765 = vst.msk [vmem:[#allocation2 + $0x60] sm:$0xff] %vm2752, %v2681
        %2766 = vst.msk [vmem:[#allocation2 + $0x68] sm:$0xff] %vm2752, %v2683
        %2767 = vst.msk [vmem:[#allocation2 + $0x70] sm:$0xff] %vm2752, %v2685
        %2768 = vst.msk [vmem:[#allocation2 + $0x78] sm:$0xff] %vm2752, %v2687
        %2769 = vst.msk [vmem:[#allocation2 + $0x80] sm:$0xff] %vm2752, %v2689
        %2770 = vst.msk [vmem:[#allocation2 + $0x88] sm:$0xff] %vm2752, %v2691
        %2771 = vst.msk [vmem:[#allocation2 + $0x90] sm:$0xff] %vm2752, %v2693
        %2772 = vst.msk [vmem:[#allocation2 + $0x98] sm:$0xff] %vm2752, %v2695
        %2773 = vst.msk [vmem:[#allocation2 + $0xa0] sm:$0xff] %vm2752, %v2697
        %2774 = vst.msk [vmem:[#allocation2 + $0xa8] sm:$0xff] %vm2752, %v2699
        %2775 = vst.msk [vmem:[#allocation2 + $0xb0] sm:$0xff] %vm2752, %v2701
        %2776 = vst.msk [vmem:[#allocation2 + $0xb8] sm:$0xff] %vm2752, %v2703
        %2777 = vst.msk [vmem:[#allocation2 + $0xc0] sm:$0xff] %vm2752, %v2705
        %2778 = vst.msk [vmem:[#allocation2 + $0xc8] sm:$0xff] %vm2752, %v2707
        %2779 = vst.msk [vmem:[#allocation2 + $0xd0] sm:$0xff] %vm2752, %v2709
        %2780 = vst.msk [vmem:[#allocation2 + $0xd8] sm:$0xff] %vm2752, %v2711
        %2781 = vst.msk [vmem:[#allocation2 + $0xe0] sm:$0xff] %vm2752, %v2713
        %2782 = vst.msk [vmem:[#allocation2 + $0xe8] sm:$0xff] %vm2752, %v2715
        %2783 = vst.msk [vmem:[#allocation2 + $0xf0] sm:$0xff] %vm2752, %v2717
        %2784 = vst.msk [vmem:[#allocation2 + $0xf8] sm:$0xff] %vm2752, %v2719
        %v2785 = vld [vmem:[%s2398 + $0x2] sm:$0xff]
        %v2786 = vld [vmem:[%s2398 + $0x12] sm:$0xff]
        %v2787 = vld [vmem:[%s2398 + $0x22] sm:$0xff]
        %v2788 = vld [vmem:[%s2398 + $0x32] sm:$0xff]
        %v2789 = vld [vmem:[%s2398 + $0x42] sm:$0xff]
        %v2790 = vld [vmem:[%s2398 + $0x52] sm:$0xff]
        %v2791 = vld [vmem:[%s2398 + $0x62] sm:$0xff]
        %v2792 = vld [vmem:[%s2398 + $0x72] sm:$0xff]
        %v2793 = vld [vmem:[%s2398 + $0xa2] sm:$0xff]
        %v2794 = vld [vmem:[%s2398 + $0xb2] sm:$0xff]
        %v2795 = vld [vmem:[%s2398 + $0xc2] sm:$0xff]
        %v2796 = vld [vmem:[%s2398 + $0xd2] sm:$0xff]
        %v2797 = vld [vmem:[%s2398 + $0xe2] sm:$0xff]
        %v2798 = vld [vmem:[%s2398 + $0xf2] sm:$0xff]
        %v2799 = vld [vmem:[%s2398 + $0x102] sm:$0xff]
        %v2800 = vld [vmem:[%s2398 + $0x112] sm:$0xff]
        %v2801 = vld [vmem:[%s2398 + $0x142] sm:$0xff]
        %v2802 = vld [vmem:[%s2398 + $0x152] sm:$0xff]
        %v2803 = vld [vmem:[%s2398 + $0x162] sm:$0xff]
        %v2804 = vld [vmem:[%s2398 + $0x172] sm:$0xff]
        %v2805 = vld [vmem:[%s2398 + $0x182] sm:$0xff]
        %v2806 = vld [vmem:[%s2398 + $0x192] sm:$0xff]
        %v2807 = vld [vmem:[%s2398 + $0x1a2] sm:$0xff]
        %v2808 = vld [vmem:[%s2398 + $0x1b2] sm:$0xff]
        %v2809 = vld [vmem:[%s2398 + $0x1e2] sm:$0xff]
        %v2810 = vld [vmem:[%s2398 + $0x1f2] sm:$0xff]
        %v2811 = vld [vmem:[%s2398 + $0x202] sm:$0xff]
        %v2812 = vld [vmem:[%s2398 + $0x212] sm:$0xff]
        %v2813 = vld [vmem:[%s2398 + $0x222] sm:$0xff]
        %v2814 = vld [vmem:[%s2398 + $0x232] sm:$0xff]
        %v2815 = vld [vmem:[%s2398 + $0x242] sm:$0xff]
        %v2816 = vld [vmem:[%s2398 + $0x252] sm:$0xff]
        %2849 = vrot.lane.b32.xlu0 %v2785, 56
        %v2850 = vpop.permute.xlu0 %2849
        %2851 = vrot.lane.b32.xlu0 %v2786, 56
        %v2852 = vpop.permute.xlu0 %2851
        %2853 = vrot.lane.b32.xlu0 %v2787, 56
        %v2854 = vpop.permute.xlu0 %2853
        %2855 = vrot.lane.b32.xlu0 %v2788, 56
        %v2856 = vpop.permute.xlu0 %2855
        %2857 = vrot.lane.b32.xlu0 %v2789, 56
        %v2858 = vpop.permute.xlu0 %2857
        %2859 = vrot.lane.b32.xlu0 %v2790, 56
        %v2860 = vpop.permute.xlu0 %2859
        %2861 = vrot.lane.b32.xlu0 %v2791, 56
        %v2862 = vpop.permute.xlu0 %2861
        %2863 = vrot.lane.b32.xlu0 %v2792, 56
        %v2864 = vpop.permute.xlu0 %2863
        %2865 = vrot.lane.b32.xlu0 %v2793, 56
        %v2866 = vpop.permute.xlu0 %2865
        %2867 = vrot.lane.b32.xlu0 %v2794, 56
        %v2868 = vpop.permute.xlu0 %2867
        %2869 = vrot.lane.b32.xlu0 %v2795, 56
        %v2870 = vpop.permute.xlu0 %2869
        %2871 = vrot.lane.b32.xlu0 %v2796, 56
        %v2872 = vpop.permute.xlu0 %2871
        %2873 = vrot.lane.b32.xlu0 %v2797, 56
        %v2874 = vpop.permute.xlu0 %2873
        %2875 = vrot.lane.b32.xlu0 %v2798, 56
        %v2876 = vpop.permute.xlu0 %2875
        %2877 = vrot.lane.b32.xlu0 %v2799, 56
        %v2878 = vpop.permute.xlu0 %2877
        %2879 = vrot.lane.b32.xlu0 %v2800, 56
        %v2880 = vpop.permute.xlu0 %2879
        %2881 = vrot.lane.b32.xlu0 %v2801, 56
        %v2882 = vpop.permute.xlu0 %2881
        %2883 = vrot.lane.b32.xlu0 %v2802, 56
        %v2884 = vpop.permute.xlu0 %2883
        %2885 = vrot.lane.b32.xlu0 %v2803, 56
        %v2886 = vpop.permute.xlu0 %2885
        %2887 = vrot.lane.b32.xlu0 %v2804, 56
        %v2888 = vpop.permute.xlu0 %2887
        %2889 = vrot.lane.b32.xlu0 %v2805, 56
        %v2890 = vpop.permute.xlu0 %2889
        %2891 = vrot.lane.b32.xlu0 %v2806, 56
        %v2892 = vpop.permute.xlu0 %2891
        %2893 = vrot.lane.b32.xlu0 %v2807, 56
        %v2894 = vpop.permute.xlu0 %2893
        %2895 = vrot.lane.b32.xlu0 %v2808, 56
        %v2896 = vpop.permute.xlu0 %2895
        %2897 = vrot.lane.b32.xlu0 %v2809, 56
        %v2898 = vpop.permute.xlu0 %2897
        %2899 = vrot.lane.b32.xlu0 %v2810, 56
        %v2900 = vpop.permute.xlu0 %2899
        %2901 = vrot.lane.b32.xlu0 %v2811, 56
        %v2902 = vpop.permute.xlu0 %2901
        %2903 = vrot.lane.b32.xlu0 %v2812, 56
        %v2904 = vpop.permute.xlu0 %2903
        %2905 = vrot.lane.b32.xlu0 %v2813, 56
        %v2906 = vpop.permute.xlu0 %2905
        %2907 = vrot.lane.b32.xlu0 %v2814, 56
        %v2908 = vpop.permute.xlu0 %2907
        %2909 = vrot.lane.b32.xlu0 %v2815, 56
        %v2910 = vpop.permute.xlu0 %2909
        %2911 = vrot.lane.b32.xlu0 %v2816, 56
        %v2912 = vpop.permute.xlu0 %2911
        %vm2945 = vcmask 490944
        %2946 = vst.msk [vmem:[#allocation2] sm:$0xff] %vm2945, %v2850
        %2947 = vst.msk [vmem:[#allocation2 + $0x8] sm:$0xff] %vm2945, %v2852
        %2948 = vst.msk [vmem:[#allocation2 + $0x10] sm:$0xff] %vm2945, %v2854
        %2949 = vst.msk [vmem:[#allocation2 + $0x18] sm:$0xff] %vm2945, %v2856
        %2950 = vst.msk [vmem:[#allocation2 + $0x20] sm:$0xff] %vm2945, %v2858
        %2951 = vst.msk [vmem:[#allocation2 + $0x28] sm:$0xff] %vm2945, %v2860
        %2952 = vst.msk [vmem:[#allocation2 + $0x30] sm:$0xff] %vm2945, %v2862
        %2953 = vst.msk [vmem:[#allocation2 + $0x38] sm:$0xff] %vm2945, %v2864
        %2954 = vst.msk [vmem:[#allocation2 + $0x40] sm:$0xff] %vm2945, %v2866
        %2955 = vst.msk [vmem:[#allocation2 + $0x48] sm:$0xff] %vm2945, %v2868
        %2956 = vst.msk [vmem:[#allocation2 + $0x50] sm:$0xff] %vm2945, %v2870
        %2957 = vst.msk [vmem:[#allocation2 + $0x58] sm:$0xff] %vm2945, %v2872
        %2958 = vst.msk [vmem:[#allocation2 + $0x60] sm:$0xff] %vm2945, %v2874
        %2959 = vst.msk [vmem:[#allocation2 + $0x68] sm:$0xff] %vm2945, %v2876
        %2960 = vst.msk [vmem:[#allocation2 + $0x70] sm:$0xff] %vm2945, %v2878
        %2961 = vst.msk [vmem:[#allocation2 + $0x78] sm:$0xff] %vm2945, %v2880
        %2962 = vst.msk [vmem:[#allocation2 + $0x80] sm:$0xff] %vm2945, %v2882
        %2963 = vst.msk [vmem:[#allocation2 + $0x88] sm:$0xff] %vm2945, %v2884
        %2964 = vst.msk [vmem:[#allocation2 + $0x90] sm:$0xff] %vm2945, %v2886
        %2965 = vst.msk [vmem:[#allocation2 + $0x98] sm:$0xff] %vm2945, %v2888
        %2966 = vst.msk [vmem:[#allocation2 + $0xa0] sm:$0xff] %vm2945, %v2890
        %2967 = vst.msk [vmem:[#allocation2 + $0xa8] sm:$0xff] %vm2945, %v2892
        %2968 = vst.msk [vmem:[#allocation2 + $0xb0] sm:$0xff] %vm2945, %v2894
        %2969 = vst.msk [vmem:[#allocation2 + $0xb8] sm:$0xff] %vm2945, %v2896
        %2970 = vst.msk [vmem:[#allocation2 + $0xc0] sm:$0xff] %vm2945, %v2898
        %2971 = vst.msk [vmem:[#allocation2 + $0xc8] sm:$0xff] %vm2945, %v2900
        %2972 = vst.msk [vmem:[#allocation2 + $0xd0] sm:$0xff] %vm2945, %v2902
        %2973 = vst.msk [vmem:[#allocation2 + $0xd8] sm:$0xff] %vm2945, %v2904
        %2974 = vst.msk [vmem:[#allocation2 + $0xe0] sm:$0xff] %vm2945, %v2906
        %2975 = vst.msk [vmem:[#allocation2 + $0xe8] sm:$0xff] %vm2945, %v2908
        %2976 = vst.msk [vmem:[#allocation2 + $0xf0] sm:$0xff] %vm2945, %v2910
        %2977 = vst.msk [vmem:[#allocation2 + $0xf8] sm:$0xff] %vm2945, %v2912
        %s2978 = sadd.s32 32, %s1816
        %s2979 = scalar_lea.vmem %s155, %s2978
        %v2980 = vld [vmem:[%s2979] sm:$0xff]
        %v2981 = vld [vmem:[%s2979 + $0x10] sm:$0xff]
        %v2982 = vld [vmem:[%s2979 + $0x20] sm:$0xff]
        %v2983 = vld [vmem:[%s2979 + $0x30] sm:$0xff]
        %v2984 = vld [vmem:[%s2979 + $0x40] sm:$0xff]
        %v2985 = vld [vmem:[%s2979 + $0x50] sm:$0xff]
        %v2986 = vld [vmem:[%s2979 + $0x60] sm:$0xff]
        %v2987 = vld [vmem:[%s2979 + $0x70] sm:$0xff]
        %v2988 = vld [vmem:[%s2979 + $0xa0] sm:$0xff]
        %v2989 = vld [vmem:[%s2979 + $0xb0] sm:$0xff]
        %v2990 = vld [vmem:[%s2979 + $0xc0] sm:$0xff]
        %v2991 = vld [vmem:[%s2979 + $0xd0] sm:$0xff]
        %v2992 = vld [vmem:[%s2979 + $0xe0] sm:$0xff]
        %v2993 = vld [vmem:[%s2979 + $0xf0] sm:$0xff]
        %v2994 = vld [vmem:[%s2979 + $0x100] sm:$0xff]
        %v2995 = vld [vmem:[%s2979 + $0x110] sm:$0xff]
        %v2996 = vld [vmem:[%s2979 + $0x140] sm:$0xff]
        %v2997 = vld [vmem:[%s2979 + $0x150] sm:$0xff]
        %v2998 = vld [vmem:[%s2979 + $0x160] sm:$0xff]
        %v2999 = vld [vmem:[%s2979 + $0x170] sm:$0xff]
        %v3000 = vld [vmem:[%s2979 + $0x180] sm:$0xff]
        %v3001 = vld [vmem:[%s2979 + $0x190] sm:$0xff]
        %v3002 = vld [vmem:[%s2979 + $0x1a0] sm:$0xff]
        %v3003 = vld [vmem:[%s2979 + $0x1b0] sm:$0xff]
        %v3004 = vld [vmem:[%s2979 + $0x1e0] sm:$0xff]
        %v3005 = vld [vmem:[%s2979 + $0x1f0] sm:$0xff]
        %v3006 = vld [vmem:[%s2979 + $0x200] sm:$0xff]
        %v3007 = vld [vmem:[%s2979 + $0x210] sm:$0xff]
        %v3008 = vld [vmem:[%s2979 + $0x220] sm:$0xff]
        %v3009 = vld [vmem:[%s2979 + $0x230] sm:$0xff]
        %v3010 = vld [vmem:[%s2979 + $0x240] sm:$0xff]
        %v3011 = vld [vmem:[%s2979 + $0x250] sm:$0xff]
        %3044 = vrot.lane.b32.xlu0 %v2980, 60
        %v3045 = vpop.permute.xlu0 %3044
        %3046 = vrot.lane.b32.xlu0 %v2981, 60
        %v3047 = vpop.permute.xlu0 %3046
        %3048 = vrot.lane.b32.xlu0 %v2982, 60
        %v3049 = vpop.permute.xlu0 %3048
        %3050 = vrot.lane.b32.xlu0 %v2983, 60
        %v3051 = vpop.permute.xlu0 %3050
        %3052 = vrot.lane.b32.xlu0 %v2984, 60
        %v3053 = vpop.permute.xlu0 %3052
        %3054 = vrot.lane.b32.xlu0 %v2985, 60
        %v3055 = vpop.permute.xlu0 %3054
        %3056 = vrot.lane.b32.xlu0 %v2986, 60
        %v3057 = vpop.permute.xlu0 %3056
        %3058 = vrot.lane.b32.xlu0 %v2987, 60
        %v3059 = vpop.permute.xlu0 %3058
        %3060 = vrot.lane.b32.xlu0 %v2988, 60
        %v3061 = vpop.permute.xlu0 %3060
        %3062 = vrot.lane.b32.xlu0 %v2989, 60
        %v3063 = vpop.permute.xlu0 %3062
        %3064 = vrot.lane.b32.xlu0 %v2990, 60
        %v3065 = vpop.permute.xlu0 %3064
        %3066 = vrot.lane.b32.xlu0 %v2991, 60
        %v3067 = vpop.permute.xlu0 %3066
        %3068 = vrot.lane.b32.xlu0 %v2992, 60
        %v3069 = vpop.permute.xlu0 %3068
        %3070 = vrot.lane.b32.xlu0 %v2993, 60
        %v3071 = vpop.permute.xlu0 %3070
        %3072 = vrot.lane.b32.xlu0 %v2994, 60
        %v3073 = vpop.permute.xlu0 %3072
        %3074 = vrot.lane.b32.xlu0 %v2995, 60
        %v3075 = vpop.permute.xlu0 %3074
        %3076 = vrot.lane.b32.xlu0 %v2996, 60
        %v3077 = vpop.permute.xlu0 %3076
        %3078 = vrot.lane.b32.xlu0 %v2997, 60
        %v3079 = vpop.permute.xlu0 %3078
        %3080 = vrot.lane.b32.xlu0 %v2998, 60
        %v3081 = vpop.permute.xlu0 %3080
        %3082 = vrot.lane.b32.xlu0 %v2999, 60
        %v3083 = vpop.permute.xlu0 %3082
        %3084 = vrot.lane.b32.xlu0 %v3000, 60
        %v3085 = vpop.permute.xlu0 %3084
        %3086 = vrot.lane.b32.xlu0 %v3001, 60
        %v3087 = vpop.permute.xlu0 %3086
        %3088 = vrot.lane.b32.xlu0 %v3002, 60
        %v3089 = vpop.permute.xlu0 %3088
        %3090 = vrot.lane.b32.xlu0 %v3003, 60
        %v3091 = vpop.permute.xlu0 %3090
        %3092 = vrot.lane.b32.xlu0 %v3004, 60
        %v3093 = vpop.permute.xlu0 %3092
        %3094 = vrot.lane.b32.xlu0 %v3005, 60
        %v3095 = vpop.permute.xlu0 %3094
        %3096 = vrot.lane.b32.xlu0 %v3006, 60
        %v3097 = vpop.permute.xlu0 %3096
        %3098 = vrot.lane.b32.xlu0 %v3007, 60
        %v3099 = vpop.permute.xlu0 %3098
        %3100 = vrot.lane.b32.xlu0 %v3008, 60
        %v3101 = vpop.permute.xlu0 %3100
        %3102 = vrot.lane.b32.xlu0 %v3009, 60
        %v3103 = vpop.permute.xlu0 %3102
        %3104 = vrot.lane.b32.xlu0 %v3010, 60
        %v3105 = vpop.permute.xlu0 %3104
        %3106 = vrot.lane.b32.xlu0 %v3011, 60
        %v3107 = vpop.permute.xlu0 %3106
        %vm3140 = vcmask 523744
        %3141 = vst.msk [vmem:[#allocation2] sm:$0xff] %vm3140, %v3045
        %3142 = vst.msk [vmem:[#allocation2 + $0x8] sm:$0xff] %vm3140, %v3047
        %3143 = vst.msk [vmem:[#allocation2 + $0x10] sm:$0xff] %vm3140, %v3049
        %3144 = vst.msk [vmem:[#allocation2 + $0x18] sm:$0xff] %vm3140, %v3051
        %3145 = vst.msk [vmem:[#allocation2 + $0x20] sm:$0xff] %vm3140, %v3053
        %3146 = vst.msk [vmem:[#allocation2 + $0x28] sm:$0xff] %vm3140, %v3055
        %3147 = vst.msk [vmem:[#allocation2 + $0x30] sm:$0xff] %vm3140, %v3057
        %3148 = vst.msk [vmem:[#allocation2 + $0x38] sm:$0xff] %vm3140, %v3059
        %3149 = vst.msk [vmem:[#allocation2 + $0x40] sm:$0xff] %vm3140, %v3061
        %3150 = vst.msk [vmem:[#allocation2 + $0x48] sm:$0xff] %vm3140, %v3063
        %3151 = vst.msk [vmem:[#allocation2 + $0x50] sm:$0xff] %vm3140, %v3065
        %3152 = vst.msk [vmem:[#allocation2 + $0x58] sm:$0xff] %vm3140, %v3067
        %3153 = vst.msk [vmem:[#allocation2 + $0x60] sm:$0xff] %vm3140, %v3069
        %3154 = vst.msk [vmem:[#allocation2 + $0x68] sm:$0xff] %vm3140, %v3071
        %3155 = vst.msk [vmem:[#allocation2 + $0x70] sm:$0xff] %vm3140, %v3073
        %3156 = vst.msk [vmem:[#allocation2 + $0x78] sm:$0xff] %vm3140, %v3075
        %3157 = vst.msk [vmem:[#allocation2 + $0x80] sm:$0xff] %vm3140, %v3077
        %3158 = vst.msk [vmem:[#allocation2 + $0x88] sm:$0xff] %vm3140, %v3079
        %3159 = vst.msk [vmem:[#allocation2 + $0x90] sm:$0xff] %vm3140, %v3081
        %3160 = vst.msk [vmem:[#allocation2 + $0x98] sm:$0xff] %vm3140, %v3083
        %3161 = vst.msk [vmem:[#allocation2 + $0xa0] sm:$0xff] %vm3140, %v3085
        %3162 = vst.msk [vmem:[#allocation2 + $0xa8] sm:$0xff] %vm3140, %v3087
        %3163 = vst.msk [vmem:[#allocation2 + $0xb0] sm:$0xff] %vm3140, %v3089
        %3164 = vst.msk [vmem:[#allocation2 + $0xb8] sm:$0xff] %vm3140, %v3091
        %3165 = vst.msk [vmem:[#allocation2 + $0xc0] sm:$0xff] %vm3140, %v3093
        %3166 = vst.msk [vmem:[#allocation2 + $0xc8] sm:$0xff] %vm3140, %v3095
        %3167 = vst.msk [vmem:[#allocation2 + $0xd0] sm:$0xff] %vm3140, %v3097
        %3168 = vst.msk [vmem:[#allocation2 + $0xd8] sm:$0xff] %vm3140, %v3099
        %3169 = vst.msk [vmem:[#allocation2 + $0xe0] sm:$0xff] %vm3140, %v3101
        %3170 = vst.msk [vmem:[#allocation2 + $0xe8] sm:$0xff] %vm3140, %v3103
        %3171 = vst.msk [vmem:[#allocation2 + $0xf0] sm:$0xff] %vm3140, %v3105
        %3172 = vst.msk [vmem:[#allocation2 + $0xf8] sm:$0xff] %vm3140, %v3107
        %v3173 = vld [vmem:[%s2979 + $0x1] sm:$0xff]
        %v3174 = vld [vmem:[%s2979 + $0x11] sm:$0xff]
        %v3175 = vld [vmem:[%s2979 + $0x21] sm:$0xff]
        %v3176 = vld [vmem:[%s2979 + $0x31] sm:$0xff]
        %v3177 = vld [vmem:[%s2979 + $0x41] sm:$0xff]
        %v3178 = vld [vmem:[%s2979 + $0x51] sm:$0xff]
        %v3179 = vld [vmem:[%s2979 + $0x61] sm:$0xff]
        %v3180 = vld [vmem:[%s2979 + $0x71] sm:$0xff]
        %v3181 = vld [vmem:[%s2979 + $0xa1] sm:$0xff]
        %v3182 = vld [vmem:[%s2979 + $0xb1] sm:$0xff]
        %v3183 = vld [vmem:[%s2979 + $0xc1] sm:$0xff]
        %v3184 = vld [vmem:[%s2979 + $0xd1] sm:$0xff]
        %v3185 = vld [vmem:[%s2979 + $0xe1] sm:$0xff]
        %v3186 = vld [vmem:[%s2979 + $0xf1] sm:$0xff]
        %v3187 = vld [vmem:[%s2979 + $0x101] sm:$0xff]
        %v3188 = vld [vmem:[%s2979 + $0x111] sm:$0xff]
        %v3189 = vld [vmem:[%s2979 + $0x141] sm:$0xff]
        %v3190 = vld [vmem:[%s2979 + $0x151] sm:$0xff]
        %v3191 = vld [vmem:[%s2979 + $0x161] sm:$0xff]
        %v3192 = vld [vmem:[%s2979 + $0x171] sm:$0xff]
        %v3193 = vld [vmem:[%s2979 + $0x181] sm:$0xff]
        %v3194 = vld [vmem:[%s2979 + $0x191] sm:$0xff]
        %v3195 = vld [vmem:[%s2979 + $0x1a1] sm:$0xff]
        %v3196 = vld [vmem:[%s2979 + $0x1b1] sm:$0xff]
        %v3197 = vld [vmem:[%s2979 + $0x1e1] sm:$0xff]
        %v3198 = vld [vmem:[%s2979 + $0x1f1] sm:$0xff]
        %v3199 = vld [vmem:[%s2979 + $0x201] sm:$0xff]
        %v3200 = vld [vmem:[%s2979 + $0x211] sm:$0xff]
        %v3201 = vld [vmem:[%s2979 + $0x221] sm:$0xff]
        %v3202 = vld [vmem:[%s2979 + $0x231] sm:$0xff]
        %v3203 = vld [vmem:[%s2979 + $0x241] sm:$0xff]
        %v3204 = vld [vmem:[%s2979 + $0x251] sm:$0xff]
        %3237 = vrot.lane.b32.xlu0 %v3173, 64
        %v3238 = vpop.permute.xlu0 %3237
        %3239 = vrot.lane.b32.xlu0 %v3174, 64
        %v3240 = vpop.permute.xlu0 %3239
        %3241 = vrot.lane.b32.xlu0 %v3175, 64
        %v3242 = vpop.permute.xlu0 %3241
        %3243 = vrot.lane.b32.xlu0 %v3176, 64
        %v3244 = vpop.permute.xlu0 %3243
        %3245 = vrot.lane.b32.xlu0 %v3177, 64
        %v3246 = vpop.permute.xlu0 %3245
        %3247 = vrot.lane.b32.xlu0 %v3178, 64
        %v3248 = vpop.permute.xlu0 %3247
        %3249 = vrot.lane.b32.xlu0 %v3179, 64
        %v3250 = vpop.permute.xlu0 %3249
        %3251 = vrot.lane.b32.xlu0 %v3180, 64
        %v3252 = vpop.permute.xlu0 %3251
        %3253 = vrot.lane.b32.xlu0 %v3181, 64
        %v3254 = vpop.permute.xlu0 %3253
        %3255 = vrot.lane.b32.xlu0 %v3182, 64
        %v3256 = vpop.permute.xlu0 %3255
        %3257 = vrot.lane.b32.xlu0 %v3183, 64
        %v3258 = vpop.permute.xlu0 %3257
        %3259 = vrot.lane.b32.xlu0 %v3184, 64
        %v3260 = vpop.permute.xlu0 %3259
        %3261 = vrot.lane.b32.xlu0 %v3185, 64
        %v3262 = vpop.permute.xlu0 %3261
        %3263 = vrot.lane.b32.xlu0 %v3186, 64
        %v3264 = vpop.permute.xlu0 %3263
        %3265 = vrot.lane.b32.xlu0 %v3187, 64
        %v3266 = vpop.permute.xlu0 %3265
        %3267 = vrot.lane.b32.xlu0 %v3188, 64
        %v3268 = vpop.permute.xlu0 %3267
        %3269 = vrot.lane.b32.xlu0 %v3189, 64
        %v3270 = vpop.permute.xlu0 %3269
        %3271 = vrot.lane.b32.xlu0 %v3190, 64
        %v3272 = vpop.permute.xlu0 %3271
        %3273 = vrot.lane.b32.xlu0 %v3191, 64
        %v3274 = vpop.permute.xlu0 %3273
        %3275 = vrot.lane.b32.xlu0 %v3192, 64
        %v3276 = vpop.permute.xlu0 %3275
        %3277 = vrot.lane.b32.xlu0 %v3193, 64
        %v3278 = vpop.permute.xlu0 %3277
        %3279 = vrot.lane.b32.xlu0 %v3194, 64
        %v3280 = vpop.permute.xlu0 %3279
        %3281 = vrot.lane.b32.xlu0 %v3195, 64
        %v3282 = vpop.permute.xlu0 %3281
        %3283 = vrot.lane.b32.xlu0 %v3196, 64
        %v3284 = vpop.permute.xlu0 %3283
        %3285 = vrot.lane.b32.xlu0 %v3197, 64
        %v3286 = vpop.permute.xlu0 %3285
        %3287 = vrot.lane.b32.xlu0 %v3198, 64
        %v3288 = vpop.permute.xlu0 %3287
        %3289 = vrot.lane.b32.xlu0 %v3199, 64
        %v3290 = vpop.permute.xlu0 %3289
        %3291 = vrot.lane.b32.xlu0 %v3200, 64
        %v3292 = vpop.permute.xlu0 %3291
        %3293 = vrot.lane.b32.xlu0 %v3201, 64
        %v3294 = vpop.permute.xlu0 %3293
        %3295 = vrot.lane.b32.xlu0 %v3202, 64
        %v3296 = vpop.permute.xlu0 %3295
        %3297 = vrot.lane.b32.xlu0 %v3203, 64
        %v3298 = vpop.permute.xlu0 %3297
        %3299 = vrot.lane.b32.xlu0 %v3204, 64
        %v3300 = vpop.permute.xlu0 %3299
        %vm3333 = vcmask 556544
        %3334 = vst.msk [vmem:[#allocation2] sm:$0xff] %vm3333, %v3238
        %3335 = vst.msk [vmem:[#allocation2 + $0x8] sm:$0xff] %vm3333, %v3240
        %3336 = vst.msk [vmem:[#allocation2 + $0x10] sm:$0xff] %vm3333, %v3242
        %3337 = vst.msk [vmem:[#allocation2 + $0x18] sm:$0xff] %vm3333, %v3244
        %3338 = vst.msk [vmem:[#allocation2 + $0x20] sm:$0xff] %vm3333, %v3246
        %3339 = vst.msk [vmem:[#allocation2 + $0x28] sm:$0xff] %vm3333, %v3248
        %3340 = vst.msk [vmem:[#allocation2 + $0x30] sm:$0xff] %vm3333, %v3250
        %3341 = vst.msk [vmem:[#allocation2 + $0x38] sm:$0xff] %vm3333, %v3252
        %3342 = vst.msk [vmem:[#allocation2 + $0x40] sm:$0xff] %vm3333, %v3254
        %3343 = vst.msk [vmem:[#allocation2 + $0x48] sm:$0xff] %vm3333, %v3256
        %3344 = vst.msk [vmem:[#allocation2 + $0x50] sm:$0xff] %vm3333, %v3258
        %3345 = vst.msk [vmem:[#allocation2 + $0x58] sm:$0xff] %vm3333, %v3260
        %3346 = vst.msk [vmem:[#allocation2 + $0x60] sm:$0xff] %vm3333, %v3262
        %3347 = vst.msk [vmem:[#allocation2 + $0x68] sm:$0xff] %vm3333, %v3264
        %3348 = vst.msk [vmem:[#allocation2 + $0x70] sm:$0xff] %vm3333, %v3266
        %3349 = vst.msk [vmem:[#allocation2 + $0x78] sm:$0xff] %vm3333, %v3268
        %3350 = vst.msk [vmem:[#allocation2 + $0x80] sm:$0xff] %vm3333, %v3270
        %3351 = vst.msk [vmem:[#allocation2 + $0x88] sm:$0xff] %vm3333, %v3272
        %3352 = vst.msk [vmem:[#allocation2 + $0x90] sm:$0xff] %vm3333, %v3274
        %3353 = vst.msk [vmem:[#allocation2 + $0x98] sm:$0xff] %vm3333, %v3276
        %3354 = vst.msk [vmem:[#allocation2 + $0xa0] sm:$0xff] %vm3333, %v3278
        %3355 = vst.msk [vmem:[#allocation2 + $0xa8] sm:$0xff] %vm3333, %v3280
        %3356 = vst.msk [vmem:[#allocation2 + $0xb0] sm:$0xff] %vm3333, %v3282
        %3357 = vst.msk [vmem:[#allocation2 + $0xb8] sm:$0xff] %vm3333, %v3284
        %3358 = vst.msk [vmem:[#allocation2 + $0xc0] sm:$0xff] %vm3333, %v3286
        %3359 = vst.msk [vmem:[#allocation2 + $0xc8] sm:$0xff] %vm3333, %v3288
        %3360 = vst.msk [vmem:[#allocation2 + $0xd0] sm:$0xff] %vm3333, %v3290
        %3361 = vst.msk [vmem:[#allocation2 + $0xd8] sm:$0xff] %vm3333, %v3292
        %3362 = vst.msk [vmem:[#allocation2 + $0xe0] sm:$0xff] %vm3333, %v3294
        %3363 = vst.msk [vmem:[#allocation2 + $0xe8] sm:$0xff] %vm3333, %v3296
        %3364 = vst.msk [vmem:[#allocation2 + $0xf0] sm:$0xff] %vm3333, %v3298
        %3365 = vst.msk [vmem:[#allocation2 + $0xf8] sm:$0xff] %vm3333, %v3300
        %v3366 = vld [vmem:[%s2979 + $0x2] sm:$0xff]
        %v3367 = vld [vmem:[%s2979 + $0x12] sm:$0xff]
        %v3368 = vld [vmem:[%s2979 + $0x22] sm:$0xff]
        %v3369 = vld [vmem:[%s2979 + $0x32] sm:$0xff]
        %v3370 = vld [vmem:[%s2979 + $0x42] sm:$0xff]
        %v3371 = vld [vmem:[%s2979 + $0x52] sm:$0xff]
        %v3372 = vld [vmem:[%s2979 + $0x62] sm:$0xff]
        %v3373 = vld [vmem:[%s2979 + $0x72] sm:$0xff]
        %v3374 = vld [vmem:[%s2979 + $0xa2] sm:$0xff]
        %v3375 = vld [vmem:[%s2979 + $0xb2] sm:$0xff]
        %v3376 = vld [vmem:[%s2979 + $0xc2] sm:$0xff]
        %v3377 = vld [vmem:[%s2979 + $0xd2] sm:$0xff]
        %v3378 = vld [vmem:[%s2979 + $0xe2] sm:$0xff]
        %v3379 = vld [vmem:[%s2979 + $0xf2] sm:$0xff]
        %v3380 = vld [vmem:[%s2979 + $0x102] sm:$0xff]
        %v3381 = vld [vmem:[%s2979 + $0x112] sm:$0xff]
        %v3382 = vld [vmem:[%s2979 + $0x142] sm:$0xff]
        %v3383 = vld [vmem:[%s2979 + $0x152] sm:$0xff]
        %v3384 = vld [vmem:[%s2979 + $0x162] sm:$0xff]
        %v3385 = vld [vmem:[%s2979 + $0x172] sm:$0xff]
        %v3386 = vld [vmem:[%s2979 + $0x182] sm:$0xff]
        %v3387 = vld [vmem:[%s2979 + $0x192] sm:$0xff]
        %v3388 = vld [vmem:[%s2979 + $0x1a2] sm:$0xff]
        %v3389 = vld [vmem:[%s2979 + $0x1b2] sm:$0xff]
        %v3390 = vld [vmem:[%s2979 + $0x1e2] sm:$0xff]
        %v3391 = vld [vmem:[%s2979 + $0x1f2] sm:$0xff]
        %v3392 = vld [vmem:[%s2979 + $0x202] sm:$0xff]
        %v3393 = vld [vmem:[%s2979 + $0x212] sm:$0xff]
        %v3394 = vld [vmem:[%s2979 + $0x222] sm:$0xff]
        %v3395 = vld [vmem:[%s2979 + $0x232] sm:$0xff]
        %v3396 = vld [vmem:[%s2979 + $0x242] sm:$0xff]
        %v3397 = vld [vmem:[%s2979 + $0x252] sm:$0xff]
        %3430 = vrot.lane.b32.xlu0 %v3366, 68
        %v3431 = vpop.permute.xlu0 %3430
        %3432 = vrot.lane.b32.xlu0 %v3367, 68
        %v3433 = vpop.permute.xlu0 %3432
        %3434 = vrot.lane.b32.xlu0 %v3368, 68
        %v3435 = vpop.permute.xlu0 %3434
        %3436 = vrot.lane.b32.xlu0 %v3369, 68
        %v3437 = vpop.permute.xlu0 %3436
        %3438 = vrot.lane.b32.xlu0 %v3370, 68
        %v3439 = vpop.permute.xlu0 %3438
        %3440 = vrot.lane.b32.xlu0 %v3371, 68
        %v3441 = vpop.permute.xlu0 %3440
        %3442 = vrot.lane.b32.xlu0 %v3372, 68
        %v3443 = vpop.permute.xlu0 %3442
        %3444 = vrot.lane.b32.xlu0 %v3373, 68
        %v3445 = vpop.permute.xlu0 %3444
        %3446 = vrot.lane.b32.xlu0 %v3374, 68
        %v3447 = vpop.permute.xlu0 %3446
        %3448 = vrot.lane.b32.xlu0 %v3375, 68
        %v3449 = vpop.permute.xlu0 %3448
        %3450 = vrot.lane.b32.xlu0 %v3376, 68
        %v3451 = vpop.permute.xlu0 %3450
        %3452 = vrot.lane.b32.xlu0 %v3377, 68
        %v3453 = vpop.permute.xlu0 %3452
        %3454 = vrot.lane.b32.xlu0 %v3378, 68
        %v3455 = vpop.permute.xlu0 %3454
        %3456 = vrot.lane.b32.xlu0 %v3379, 68
        %v3457 = vpop.permute.xlu0 %3456
        %3458 = vrot.lane.b32.xlu0 %v3380, 68
        %v3459 = vpop.permute.xlu0 %3458
        %3460 = vrot.lane.b32.xlu0 %v3381, 68
        %v3461 = vpop.permute.xlu0 %3460
        %3462 = vrot.lane.b32.xlu0 %v3382, 68
        %v3463 = vpop.permute.xlu0 %3462
        %3464 = vrot.lane.b32.xlu0 %v3383, 68
        %v3465 = vpop.permute.xlu0 %3464
        %3466 = vrot.lane.b32.xlu0 %v3384, 68
        %v3467 = vpop.permute.xlu0 %3466
        %3468 = vrot.lane.b32.xlu0 %v3385, 68
        %v3469 = vpop.permute.xlu0 %3468
        %3470 = vrot.lane.b32.xlu0 %v3386, 68
        %v3471 = vpop.permute.xlu0 %3470
        %3472 = vrot.lane.b32.xlu0 %v3387, 68
        %v3473 = vpop.permute.xlu0 %3472
        %3474 = vrot.lane.b32.xlu0 %v3388, 68
        %v3475 = vpop.permute.xlu0 %3474
        %3476 = vrot.lane.b32.xlu0 %v3389, 68
        %v3477 = vpop.permute.xlu0 %3476
        %3478 = vrot.lane.b32.xlu0 %v3390, 68
        %v3479 = vpop.permute.xlu0 %3478
        %3480 = vrot.lane.b32.xlu0 %v3391, 68
        %v3481 = vpop.permute.xlu0 %3480
        %3482 = vrot.lane.b32.xlu0 %v3392, 68
        %v3483 = vpop.permute.xlu0 %3482
        %3484 = vrot.lane.b32.xlu0 %v3393, 68
        %v3485 = vpop.permute.xlu0 %3484
        %3486 = vrot.lane.b32.xlu0 %v3394, 68
        %v3487 = vpop.permute.xlu0 %3486
        %3488 = vrot.lane.b32.xlu0 %v3395, 68
        %v3489 = vpop.permute.xlu0 %3488
        %3490 = vrot.lane.b32.xlu0 %v3396, 68
        %v3491 = vpop.permute.xlu0 %3490
        %3492 = vrot.lane.b32.xlu0 %v3397, 68
        %v3493 = vpop.permute.xlu0 %3492
        %vm3526 = vcmask 589344
        %3527 = vst.msk [vmem:[#allocation2] sm:$0xff] %vm3526, %v3431
        %3528 = vst.msk [vmem:[#allocation2 + $0x8] sm:$0xff] %vm3526, %v3433
        %3529 = vst.msk [vmem:[#allocation2 + $0x10] sm:$0xff] %vm3526, %v3435
        %3530 = vst.msk [vmem:[#allocation2 + $0x18] sm:$0xff] %vm3526, %v3437
        %3531 = vst.msk [vmem:[#allocation2 + $0x20] sm:$0xff] %vm3526, %v3439
        %3532 = vst.msk [vmem:[#allocation2 + $0x28] sm:$0xff] %vm3526, %v3441
        %3533 = vst.msk [vmem:[#allocation2 + $0x30] sm:$0xff] %vm3526, %v3443
        %3534 = vst.msk [vmem:[#allocation2 + $0x38] sm:$0xff] %vm3526, %v3445
        %3535 = vst.msk [vmem:[#allocation2 + $0x40] sm:$0xff] %vm3526, %v3447
        %3536 = vst.msk [vmem:[#allocation2 + $0x48] sm:$0xff] %vm3526, %v3449
        %3537 = vst.msk [vmem:[#allocation2 + $0x50] sm:$0xff] %vm3526, %v3451
        %3538 = vst.msk [vmem:[#allocation2 + $0x58] sm:$0xff] %vm3526, %v3453
        %3539 = vst.msk [vmem:[#allocation2 + $0x60] sm:$0xff] %vm3526, %v3455
        %3540 = vst.msk [vmem:[#allocation2 + $0x68] sm:$0xff] %vm3526, %v3457
        %3541 = vst.msk [vmem:[#allocation2 + $0x70] sm:$0xff] %vm3526, %v3459
        %3542 = vst.msk [vmem:[#allocation2 + $0x78] sm:$0xff] %vm3526, %v3461
        %3543 = vst.msk [vmem:[#allocation2 + $0x80] sm:$0xff] %vm3526, %v3463
        %3544 = vst.msk [vmem:[#allocation2 + $0x88] sm:$0xff] %vm3526, %v3465
        %3545 = vst.msk [vmem:[#allocation2 + $0x90] sm:$0xff] %vm3526, %v3467
        %3546 = vst.msk [vmem:[#allocation2 + $0x98] sm:$0xff] %vm3526, %v3469
        %3547 = vst.msk [vmem:[#allocation2 + $0xa0] sm:$0xff] %vm3526, %v3471
        %3548 = vst.msk [vmem:[#allocation2 + $0xa8] sm:$0xff] %vm3526, %v3473
        %3549 = vst.msk [vmem:[#allocation2 + $0xb0] sm:$0xff] %vm3526, %v3475
        %3550 = vst.msk [vmem:[#allocation2 + $0xb8] sm:$0xff] %vm3526, %v3477
        %3551 = vst.msk [vmem:[#allocation2 + $0xc0] sm:$0xff] %vm3526, %v3479
        %3552 = vst.msk [vmem:[#allocation2 + $0xc8] sm:$0xff] %vm3526, %v3481
        %3553 = vst.msk [vmem:[#allocation2 + $0xd0] sm:$0xff] %vm3526, %v3483
        %3554 = vst.msk [vmem:[#allocation2 + $0xd8] sm:$0xff] %vm3526, %v3485
        %3555 = vst.msk [vmem:[#allocation2 + $0xe0] sm:$0xff] %vm3526, %v3487
        %3556 = vst.msk [vmem:[#allocation2 + $0xe8] sm:$0xff] %vm3526, %v3489
        %3557 = vst.msk [vmem:[#allocation2 + $0xf0] sm:$0xff] %vm3526, %v3491
        %3558 = vst.msk [vmem:[#allocation2 + $0xf8] sm:$0xff] %vm3526, %v3493
        %s3559 = sadd.s32 %s157, 2
        %s3560 = smul.u32 %s3559, 160
        %s3561 = scalar_lea.vmem %s155, %s3560
        %v3562 = vld [vmem:[%s3561] sm:$0xff]
        %v3563 = vld [vmem:[%s3561 + $0x10] sm:$0xff]
        %v3564 = vld [vmem:[%s3561 + $0x20] sm:$0xff]
        %v3565 = vld [vmem:[%s3561 + $0x30] sm:$0xff]
        %v3566 = vld [vmem:[%s3561 + $0x40] sm:$0xff]
        %v3567 = vld [vmem:[%s3561 + $0x50] sm:$0xff]
        %v3568 = vld [vmem:[%s3561 + $0x60] sm:$0xff]
        %v3569 = vld [vmem:[%s3561 + $0x70] sm:$0xff]
        %v3570 = vld [vmem:[%s3561 + $0xa0] sm:$0xff]
        %v3571 = vld [vmem:[%s3561 + $0xb0] sm:$0xff]
        %v3572 = vld [vmem:[%s3561 + $0xc0] sm:$0xff]
        %v3573 = vld [vmem:[%s3561 + $0xd0] sm:$0xff]
        %v3574 = vld [vmem:[%s3561 + $0xe0] sm:$0xff]
        %v3575 = vld [vmem:[%s3561 + $0xf0] sm:$0xff]
        %v3576 = vld [vmem:[%s3561 + $0x100] sm:$0xff]
        %v3577 = vld [vmem:[%s3561 + $0x110] sm:$0xff]
        %v3578 = vld [vmem:[%s3561 + $0x140] sm:$0xff]
        %v3579 = vld [vmem:[%s3561 + $0x150] sm:$0xff]
        %v3580 = vld [vmem:[%s3561 + $0x160] sm:$0xff]
        %v3581 = vld [vmem:[%s3561 + $0x170] sm:$0xff]
        %v3582 = vld [vmem:[%s3561 + $0x180] sm:$0xff]
        %v3583 = vld [vmem:[%s3561 + $0x190] sm:$0xff]
        %v3584 = vld [vmem:[%s3561 + $0x1a0] sm:$0xff]
        %v3585 = vld [vmem:[%s3561 + $0x1b0] sm:$0xff]
        %v3586 = vld [vmem:[%s3561 + $0x1e0] sm:$0xff]
        %v3587 = vld [vmem:[%s3561 + $0x1f0] sm:$0xff]
        %v3588 = vld [vmem:[%s3561 + $0x200] sm:$0xff]
        %v3589 = vld [vmem:[%s3561 + $0x210] sm:$0xff]
        %v3590 = vld [vmem:[%s3561 + $0x220] sm:$0xff]
        %v3591 = vld [vmem:[%s3561 + $0x230] sm:$0xff]
        %v3592 = vld [vmem:[%s3561 + $0x240] sm:$0xff]
        %v3593 = vld [vmem:[%s3561 + $0x250] sm:$0xff]
        %3626 = vrot.lane.b32.xlu0 %v3562, 72
        %v3627 = vpop.permute.xlu0 %3626
        %3628 = vrot.lane.b32.xlu0 %v3563, 72
        %v3629 = vpop.permute.xlu0 %3628
        %3630 = vrot.lane.b32.xlu0 %v3564, 72
        %v3631 = vpop.permute.xlu0 %3630
        %3632 = vrot.lane.b32.xlu0 %v3565, 72
        %v3633 = vpop.permute.xlu0 %3632
        %3634 = vrot.lane.b32.xlu0 %v3566, 72
        %v3635 = vpop.permute.xlu0 %3634
        %3636 = vrot.lane.b32.xlu0 %v3567, 72
        %v3637 = vpop.permute.xlu0 %3636
        %3638 = vrot.lane.b32.xlu0 %v3568, 72
        %v3639 = vpop.permute.xlu0 %3638
        %3640 = vrot.lane.b32.xlu0 %v3569, 72
        %v3641 = vpop.permute.xlu0 %3640
        %3642 = vrot.lane.b32.xlu0 %v3570, 72
        %v3643 = vpop.permute.xlu0 %3642
        %3644 = vrot.lane.b32.xlu0 %v3571, 72
        %v3645 = vpop.permute.xlu0 %3644
        %3646 = vrot.lane.b32.xlu0 %v3572, 72
        %v3647 = vpop.permute.xlu0 %3646
        %3648 = vrot.lane.b32.xlu0 %v3573, 72
        %v3649 = vpop.permute.xlu0 %3648
        %3650 = vrot.lane.b32.xlu0 %v3574, 72
        %v3651 = vpop.permute.xlu0 %3650
        %3652 = vrot.lane.b32.xlu0 %v3575, 72
        %v3653 = vpop.permute.xlu0 %3652
        %3654 = vrot.lane.b32.xlu0 %v3576, 72
        %v3655 = vpop.permute.xlu0 %3654
        %3656 = vrot.lane.b32.xlu0 %v3577, 72
        %v3657 = vpop.permute.xlu0 %3656
        %3658 = vrot.lane.b32.xlu0 %v3578, 72
        %v3659 = vpop.permute.xlu0 %3658
        %3660 = vrot.lane.b32.xlu0 %v3579, 72
        %v3661 = vpop.permute.xlu0 %3660
        %3662 = vrot.lane.b32.xlu0 %v3580, 72
        %v3663 = vpop.permute.xlu0 %3662
        %3664 = vrot.lane.b32.xlu0 %v3581, 72
        %v3665 = vpop.permute.xlu0 %3664
        %3666 = vrot.lane.b32.xlu0 %v3582, 72
        %v3667 = vpop.permute.xlu0 %3666
        %3668 = vrot.lane.b32.xlu0 %v3583, 72
        %v3669 = vpop.permute.xlu0 %3668
        %3670 = vrot.lane.b32.xlu0 %v3584, 72
        %v3671 = vpop.permute.xlu0 %3670
        %3672 = vrot.lane.b32.xlu0 %v3585, 72
        %v3673 = vpop.permute.xlu0 %3672
        %3674 = vrot.lane.b32.xlu0 %v3586, 72
        %v3675 = vpop.permute.xlu0 %3674
        %3676 = vrot.lane.b32.xlu0 %v3587, 72
        %v3677 = vpop.permute.xlu0 %3676
        %3678 = vrot.lane.b32.xlu0 %v3588, 72
        %v3679 = vpop.permute.xlu0 %3678
        %3680 = vrot.lane.b32.xlu0 %v3589, 72
        %v3681 = vpop.permute.xlu0 %3680
        %3682 = vrot.lane.b32.xlu0 %v3590, 72
        %v3683 = vpop.permute.xlu0 %3682
        %3684 = vrot.lane.b32.xlu0 %v3591, 72
        %v3685 = vpop.permute.xlu0 %3684
        %3686 = vrot.lane.b32.xlu0 %v3592, 72
        %v3687 = vpop.permute.xlu0 %3686
        %3688 = vrot.lane.b32.xlu0 %v3593, 72
        %v3689 = vpop.permute.xlu0 %3688
        %vm3722 = vcmask 622144
        %3723 = vst.msk [vmem:[#allocation2] sm:$0xff] %vm3722, %v3627
        %3724 = vst.msk [vmem:[#allocation2 + $0x8] sm:$0xff] %vm3722, %v3629
        %3725 = vst.msk [vmem:[#allocation2 + $0x10] sm:$0xff] %vm3722, %v3631
        %3726 = vst.msk [vmem:[#allocation2 + $0x18] sm:$0xff] %vm3722, %v3633
        %3727 = vst.msk [vmem:[#allocation2 + $0x20] sm:$0xff] %vm3722, %v3635
        %3728 = vst.msk [vmem:[#allocation2 + $0x28] sm:$0xff] %vm3722, %v3637
        %3729 = vst.msk [vmem:[#allocation2 + $0x30] sm:$0xff] %vm3722, %v3639
        %3730 = vst.msk [vmem:[#allocation2 + $0x38] sm:$0xff] %vm3722, %v3641
        %3731 = vst.msk [vmem:[#allocation2 + $0x40] sm:$0xff] %vm3722, %v3643
        %3732 = vst.msk [vmem:[#allocation2 + $0x48] sm:$0xff] %vm3722, %v3645
        %3733 = vst.msk [vmem:[#allocation2 + $0x50] sm:$0xff] %vm3722, %v3647
        %3734 = vst.msk [vmem:[#allocation2 + $0x58] sm:$0xff] %vm3722, %v3649
        %3735 = vst.msk [vmem:[#allocation2 + $0x60] sm:$0xff] %vm3722, %v3651
        %3736 = vst.msk [vmem:[#allocation2 + $0x68] sm:$0xff] %vm3722, %v3653
        %3737 = vst.msk [vmem:[#allocation2 + $0x70] sm:$0xff] %vm3722, %v3655
        %3738 = vst.msk [vmem:[#allocation2 + $0x78] sm:$0xff] %vm3722, %v3657
        %3739 = vst.msk [vmem:[#allocation2 + $0x80] sm:$0xff] %vm3722, %v3659
        %3740 = vst.msk [vmem:[#allocation2 + $0x88] sm:$0xff] %vm3722, %v3661
        %3741 = vst.msk [vmem:[#allocation2 + $0x90] sm:$0xff] %vm3722, %v3663
        %3742 = vst.msk [vmem:[#allocation2 + $0x98] sm:$0xff] %vm3722, %v3665
        %3743 = vst.msk [vmem:[#allocation2 + $0xa0] sm:$0xff] %vm3722, %v3667
        %3744 = vst.msk [vmem:[#allocation2 + $0xa8] sm:$0xff] %vm3722, %v3669
        %3745 = vst.msk [vmem:[#allocation2 + $0xb0] sm:$0xff] %vm3722, %v3671
        %3746 = vst.msk [vmem:[#allocation2 + $0xb8] sm:$0xff] %vm3722, %v3673
        %3747 = vst.msk [vmem:[#allocation2 + $0xc0] sm:$0xff] %vm3722, %v3675
        %3748 = vst.msk [vmem:[#allocation2 + $0xc8] sm:$0xff] %vm3722, %v3677
        %3749 = vst.msk [vmem:[#allocation2 + $0xd0] sm:$0xff] %vm3722, %v3679
        %3750 = vst.msk [vmem:[#allocation2 + $0xd8] sm:$0xff] %vm3722, %v3681
        %3751 = vst.msk [vmem:[#allocation2 + $0xe0] sm:$0xff] %vm3722, %v3683
        %3752 = vst.msk [vmem:[#allocation2 + $0xe8] sm:$0xff] %vm3722, %v3685
        %3753 = vst.msk [vmem:[#allocation2 + $0xf0] sm:$0xff] %vm3722, %v3687
        %3754 = vst.msk [vmem:[#allocation2 + $0xf8] sm:$0xff] %vm3722, %v3689
        %v3755 = vld [vmem:[%s3561 + $0x1] sm:$0xff]
        %v3756 = vld [vmem:[%s3561 + $0x11] sm:$0xff]
        %v3757 = vld [vmem:[%s3561 + $0x21] sm:$0xff]
        %v3758 = vld [vmem:[%s3561 + $0x31] sm:$0xff]
        %v3759 = vld [vmem:[%s3561 + $0x41] sm:$0xff]
        %v3760 = vld [vmem:[%s3561 + $0x51] sm:$0xff]
        %v3761 = vld [vmem:[%s3561 + $0x61] sm:$0xff]
        %v3762 = vld [vmem:[%s3561 + $0x71] sm:$0xff]
        %v3763 = vld [vmem:[%s3561 + $0xa1] sm:$0xff]
        %v3764 = vld [vmem:[%s3561 + $0xb1] sm:$0xff]
        %v3765 = vld [vmem:[%s3561 + $0xc1] sm:$0xff]
        %v3766 = vld [vmem:[%s3561 + $0xd1] sm:$0xff]
        %v3767 = vld [vmem:[%s3561 + $0xe1] sm:$0xff]
        %v3768 = vld [vmem:[%s3561 + $0xf1] sm:$0xff]
        %v3769 = vld [vmem:[%s3561 + $0x101] sm:$0xff]
        %v3770 = vld [vmem:[%s3561 + $0x111] sm:$0xff]
        %v3771 = vld [vmem:[%s3561 + $0x141] sm:$0xff]
        %v3772 = vld [vmem:[%s3561 + $0x151] sm:$0xff]
        %v3773 = vld [vmem:[%s3561 + $0x161] sm:$0xff]
        %v3774 = vld [vmem:[%s3561 + $0x171] sm:$0xff]
        %v3775 = vld [vmem:[%s3561 + $0x181] sm:$0xff]
        %v3776 = vld [vmem:[%s3561 + $0x191] sm:$0xff]
        %v3777 = vld [vmem:[%s3561 + $0x1a1] sm:$0xff]
        %v3778 = vld [vmem:[%s3561 + $0x1b1] sm:$0xff]
        %v3779 = vld [vmem:[%s3561 + $0x1e1] sm:$0xff]
        %v3780 = vld [vmem:[%s3561 + $0x1f1] sm:$0xff]
        %v3781 = vld [vmem:[%s3561 + $0x201] sm:$0xff]
        %v3782 = vld [vmem:[%s3561 + $0x211] sm:$0xff]
        %v3783 = vld [vmem:[%s3561 + $0x221] sm:$0xff]
        %v3784 = vld [vmem:[%s3561 + $0x231] sm:$0xff]
        %v3785 = vld [vmem:[%s3561 + $0x241] sm:$0xff]
        %v3786 = vld [vmem:[%s3561 + $0x251] sm:$0xff]
        %3819 = vrot.lane.b32.xlu0 %v3755, 76
        %v3820 = vpop.permute.xlu0 %3819
        %3821 = vrot.lane.b32.xlu0 %v3756, 76
        %v3822 = vpop.permute.xlu0 %3821
        %3823 = vrot.lane.b32.xlu0 %v3757, 76
        %v3824 = vpop.permute.xlu0 %3823
        %3825 = vrot.lane.b32.xlu0 %v3758, 76
        %v3826 = vpop.permute.xlu0 %3825
        %3827 = vrot.lane.b32.xlu0 %v3759, 76
        %v3828 = vpop.permute.xlu0 %3827
        %3829 = vrot.lane.b32.xlu0 %v3760, 76
        %v3830 = vpop.permute.xlu0 %3829
        %3831 = vrot.lane.b32.xlu0 %v3761, 76
        %v3832 = vpop.permute.xlu0 %3831
        %3833 = vrot.lane.b32.xlu0 %v3762, 76
        %v3834 = vpop.permute.xlu0 %3833
        %3835 = vrot.lane.b32.xlu0 %v3763, 76
        %v3836 = vpop.permute.xlu0 %3835
        %3837 = vrot.lane.b32.xlu0 %v3764, 76
        %v3838 = vpop.permute.xlu0 %3837
        %3839 = vrot.lane.b32.xlu0 %v3765, 76
        %v3840 = vpop.permute.xlu0 %3839
        %3841 = vrot.lane.b32.xlu0 %v3766, 76
        %v3842 = vpop.permute.xlu0 %3841
        %3843 = vrot.lane.b32.xlu0 %v3767, 76
        %v3844 = vpop.permute.xlu0 %3843
        %3845 = vrot.lane.b32.xlu0 %v3768, 76
        %v3846 = vpop.permute.xlu0 %3845
        %3847 = vrot.lane.b32.xlu0 %v3769, 76
        %v3848 = vpop.permute.xlu0 %3847
        %3849 = vrot.lane.b32.xlu0 %v3770, 76
        %v3850 = vpop.permute.xlu0 %3849
        %3851 = vrot.lane.b32.xlu0 %v3771, 76
        %v3852 = vpop.permute.xlu0 %3851
        %3853 = vrot.lane.b32.xlu0 %v3772, 76
        %v3854 = vpop.permute.xlu0 %3853
        %3855 = vrot.lane.b32.xlu0 %v3773, 76
        %v3856 = vpop.permute.xlu0 %3855
        %3857 = vrot.lane.b32.xlu0 %v3774, 76
        %v3858 = vpop.permute.xlu0 %3857
        %3859 = vrot.lane.b32.xlu0 %v3775, 76
        %v3860 = vpop.permute.xlu0 %3859
        %3861 = vrot.lane.b32.xlu0 %v3776, 76
        %v3862 = vpop.permute.xlu0 %3861
        %3863 = vrot.lane.b32.xlu0 %v3777, 76
        %v3864 = vpop.permute.xlu0 %3863
        %3865 = vrot.lane.b32.xlu0 %v3778, 76
        %v3866 = vpop.permute.xlu0 %3865
        %3867 = vrot.lane.b32.xlu0 %v3779, 76
        %v3868 = vpop.permute.xlu0 %3867
        %3869 = vrot.lane.b32.xlu0 %v3780, 76
        %v3870 = vpop.permute.xlu0 %3869
        %3871 = vrot.lane.b32.xlu0 %v3781, 76
        %v3872 = vpop.permute.xlu0 %3871
        %3873 = vrot.lane.b32.xlu0 %v3782, 76
        %v3874 = vpop.permute.xlu0 %3873
        %3875 = vrot.lane.b32.xlu0 %v3783, 76
        %v3876 = vpop.permute.xlu0 %3875
        %3877 = vrot.lane.b32.xlu0 %v3784, 76
        %v3878 = vpop.permute.xlu0 %3877
        %3879 = vrot.lane.b32.xlu0 %v3785, 76
        %v3880 = vpop.permute.xlu0 %3879
        %3881 = vrot.lane.b32.xlu0 %v3786, 76
        %v3882 = vpop.permute.xlu0 %3881
        %vm3915 = vcmask 654944
        %3916 = vst.msk [vmem:[#allocation2] sm:$0xff] %vm3915, %v3820
        %3917 = vst.msk [vmem:[#allocation2 + $0x8] sm:$0xff] %vm3915, %v3822
        %3918 = vst.msk [vmem:[#allocation2 + $0x10] sm:$0xff] %vm3915, %v3824
        %3919 = vst.msk [vmem:[#allocation2 + $0x18] sm:$0xff] %vm3915, %v3826
        %3920 = vst.msk [vmem:[#allocation2 + $0x20] sm:$0xff] %vm3915, %v3828
        %3921 = vst.msk [vmem:[#allocation2 + $0x28] sm:$0xff] %vm3915, %v3830
        %3922 = vst.msk [vmem:[#allocation2 + $0x30] sm:$0xff] %vm3915, %v3832
        %3923 = vst.msk [vmem:[#allocation2 + $0x38] sm:$0xff] %vm3915, %v3834
        %3924 = vst.msk [vmem:[#allocation2 + $0x40] sm:$0xff] %vm3915, %v3836
        %3925 = vst.msk [vmem:[#allocation2 + $0x48] sm:$0xff] %vm3915, %v3838
        %3926 = vst.msk [vmem:[#allocation2 + $0x50] sm:$0xff] %vm3915, %v3840
        %3927 = vst.msk [vmem:[#allocation2 + $0x58] sm:$0xff] %vm3915, %v3842
        %3928 = vst.msk [vmem:[#allocation2 + $0x60] sm:$0xff] %vm3915, %v3844
        %3929 = vst.msk [vmem:[#allocation2 + $0x68] sm:$0xff] %vm3915, %v3846
        %3930 = vst.msk [vmem:[#allocation2 + $0x70] sm:$0xff] %vm3915, %v3848
        %3931 = vst.msk [vmem:[#allocation2 + $0x78] sm:$0xff] %vm3915, %v3850
        %3932 = vst.msk [vmem:[#allocation2 + $0x80] sm:$0xff] %vm3915, %v3852
        %3933 = vst.msk [vmem:[#allocation2 + $0x88] sm:$0xff] %vm3915, %v3854
        %3934 = vst.msk [vmem:[#allocation2 + $0x90] sm:$0xff] %vm3915, %v3856
        %3935 = vst.msk [vmem:[#allocation2 + $0x98] sm:$0xff] %vm3915, %v3858
        %3936 = vst.msk [vmem:[#allocation2 + $0xa0] sm:$0xff] %vm3915, %v3860
        %3937 = vst.msk [vmem:[#allocation2 + $0xa8] sm:$0xff] %vm3915, %v3862
        %3938 = vst.msk [vmem:[#allocation2 + $0xb0] sm:$0xff] %vm3915, %v3864
        %3939 = vst.msk [vmem:[#allocation2 + $0xb8] sm:$0xff] %vm3915, %v3866
        %3940 = vst.msk [vmem:[#allocation2 + $0xc0] sm:$0xff] %vm3915, %v3868
        %3941 = vst.msk [vmem:[#allocation2 + $0xc8] sm:$0xff] %vm3915, %v3870
        %3942 = vst.msk [vmem:[#allocation2 + $0xd0] sm:$0xff] %vm3915, %v3872
        %3943 = vst.msk [vmem:[#allocation2 + $0xd8] sm:$0xff] %vm3915, %v3874
        %3944 = vst.msk [vmem:[#allocation2 + $0xe0] sm:$0xff] %vm3915, %v3876
        %3945 = vst.msk [vmem:[#allocation2 + $0xe8] sm:$0xff] %vm3915, %v3878
        %3946 = vst.msk [vmem:[#allocation2 + $0xf0] sm:$0xff] %vm3915, %v3880
        %3947 = vst.msk [vmem:[#allocation2 + $0xf8] sm:$0xff] %vm3915, %v3882
        %v3948 = vld [vmem:[%s3561 + $0x2] sm:$0xff]
        %v3949 = vld [vmem:[%s3561 + $0x12] sm:$0xff]
        %v3950 = vld [vmem:[%s3561 + $0x22] sm:$0xff]
        %v3951 = vld [vmem:[%s3561 + $0x32] sm:$0xff]
        %v3952 = vld [vmem:[%s3561 + $0x42] sm:$0xff]
        %v3953 = vld [vmem:[%s3561 + $0x52] sm:$0xff]
        %v3954 = vld [vmem:[%s3561 + $0x62] sm:$0xff]
        %v3955 = vld [vmem:[%s3561 + $0x72] sm:$0xff]
        %v3956 = vld [vmem:[%s3561 + $0xa2] sm:$0xff]
        %v3957 = vld [vmem:[%s3561 + $0xb2] sm:$0xff]
        %v3958 = vld [vmem:[%s3561 + $0xc2] sm:$0xff]
        %v3959 = vld [vmem:[%s3561 + $0xd2] sm:$0xff]
        %v3960 = vld [vmem:[%s3561 + $0xe2] sm:$0xff]
        %v3961 = vld [vmem:[%s3561 + $0xf2] sm:$0xff]
        %v3962 = vld [vmem:[%s3561 + $0x102] sm:$0xff]
        %v3963 = vld [vmem:[%s3561 + $0x112] sm:$0xff]
        %v3964 = vld [vmem:[%s3561 + $0x142] sm:$0xff]
        %v3965 = vld [vmem:[%s3561 + $0x152] sm:$0xff]
        %v3966 = vld [vmem:[%s3561 + $0x162] sm:$0xff]
        %v3967 = vld [vmem:[%s3561 + $0x172] sm:$0xff]
        %v3968 = vld [vmem:[%s3561 + $0x182] sm:$0xff]
        %v3969 = vld [vmem:[%s3561 + $0x192] sm:$0xff]
        %v3970 = vld [vmem:[%s3561 + $0x1a2] sm:$0xff]
        %v3971 = vld [vmem:[%s3561 + $0x1b2] sm:$0xff]
        %v3972 = vld [vmem:[%s3561 + $0x1e2] sm:$0xff]
        %v3973 = vld [vmem:[%s3561 + $0x1f2] sm:$0xff]
        %v3974 = vld [vmem:[%s3561 + $0x202] sm:$0xff]
        %v3975 = vld [vmem:[%s3561 + $0x212] sm:$0xff]
        %v3976 = vld [vmem:[%s3561 + $0x222] sm:$0xff]
        %v3977 = vld [vmem:[%s3561 + $0x232] sm:$0xff]
        %v3978 = vld [vmem:[%s3561 + $0x242] sm:$0xff]
        %v3979 = vld [vmem:[%s3561 + $0x252] sm:$0xff]
        %4012 = vrot.lane.b32.xlu0 %v3948, 80
        %v4013 = vpop.permute.xlu0 %4012
        %4014 = vrot.lane.b32.xlu0 %v3949, 80
        %v4015 = vpop.permute.xlu0 %4014
        %4016 = vrot.lane.b32.xlu0 %v3950, 80
        %v4017 = vpop.permute.xlu0 %4016
        %4018 = vrot.lane.b32.xlu0 %v3951, 80
        %v4019 = vpop.permute.xlu0 %4018
        %4020 = vrot.lane.b32.xlu0 %v3952, 80
        %v4021 = vpop.permute.xlu0 %4020
        %4022 = vrot.lane.b32.xlu0 %v3953, 80
        %v4023 = vpop.permute.xlu0 %4022
        %4024 = vrot.lane.b32.xlu0 %v3954, 80
        %v4025 = vpop.permute.xlu0 %4024
        %4026 = vrot.lane.b32.xlu0 %v3955, 80
        %v4027 = vpop.permute.xlu0 %4026
        %4028 = vrot.lane.b32.xlu0 %v3956, 80
        %v4029 = vpop.permute.xlu0 %4028
        %4030 = vrot.lane.b32.xlu0 %v3957, 80
        %v4031 = vpop.permute.xlu0 %4030
        %4032 = vrot.lane.b32.xlu0 %v3958, 80
        %v4033 = vpop.permute.xlu0 %4032
        %4034 = vrot.lane.b32.xlu0 %v3959, 80
        %v4035 = vpop.permute.xlu0 %4034
        %4036 = vrot.lane.b32.xlu0 %v3960, 80
        %v4037 = vpop.permute.xlu0 %4036
        %4038 = vrot.lane.b32.xlu0 %v3961, 80
        %v4039 = vpop.permute.xlu0 %4038
        %4040 = vrot.lane.b32.xlu0 %v3962, 80
        %v4041 = vpop.permute.xlu0 %4040
        %4042 = vrot.lane.b32.xlu0 %v3963, 80
        %v4043 = vpop.permute.xlu0 %4042
        %4044 = vrot.lane.b32.xlu0 %v3964, 80
        %v4045 = vpop.permute.xlu0 %4044
        %4046 = vrot.lane.b32.xlu0 %v3965, 80
        %v4047 = vpop.permute.xlu0 %4046
        %4048 = vrot.lane.b32.xlu0 %v3966, 80
        %v4049 = vpop.permute.xlu0 %4048
        %4050 = vrot.lane.b32.xlu0 %v3967, 80
        %v4051 = vpop.permute.xlu0 %4050
        %4052 = vrot.lane.b32.xlu0 %v3968, 80
        %v4053 = vpop.permute.xlu0 %4052
        %4054 = vrot.lane.b32.xlu0 %v3969, 80
        %v4055 = vpop.permute.xlu0 %4054
        %4056 = vrot.lane.b32.xlu0 %v3970, 80
        %v4057 = vpop.permute.xlu0 %4056
        %4058 = vrot.lane.b32.xlu0 %v3971, 80
        %v4059 = vpop.permute.xlu0 %4058
        %4060 = vrot.lane.b32.xlu0 %v3972, 80
        %v4061 = vpop.permute.xlu0 %4060
        %4062 = vrot.lane.b32.xlu0 %v3973, 80
        %v4063 = vpop.permute.xlu0 %4062
        %4064 = vrot.lane.b32.xlu0 %v3974, 80
        %v4065 = vpop.permute.xlu0 %4064
        %4066 = vrot.lane.b32.xlu0 %v3975, 80
        %v4067 = vpop.permute.xlu0 %4066
        %4068 = vrot.lane.b32.xlu0 %v3976, 80
        %v4069 = vpop.permute.xlu0 %4068
        %4070 = vrot.lane.b32.xlu0 %v3977, 80
        %v4071 = vpop.permute.xlu0 %4070
        %4072 = vrot.lane.b32.xlu0 %v3978, 80
        %v4073 = vpop.permute.xlu0 %4072
        %4074 = vrot.lane.b32.xlu0 %v3979, 80
        %v4075 = vpop.permute.xlu0 %4074
        %vm4108 = vcmask 687744
        %4109 = vst.msk [vmem:[#allocation2] sm:$0xff] %vm4108, %v4013
        %4110 = vst.msk [vmem:[#allocation2 + $0x8] sm:$0xff] %vm4108, %v4015
        %4111 = vst.msk [vmem:[#allocation2 + $0x10] sm:$0xff] %vm4108, %v4017
        %4112 = vst.msk [vmem:[#allocation2 + $0x18] sm:$0xff] %vm4108, %v4019
        %4113 = vst.msk [vmem:[#allocation2 + $0x20] sm:$0xff] %vm4108, %v4021
        %4114 = vst.msk [vmem:[#allocation2 + $0x28] sm:$0xff] %vm4108, %v4023
        %4115 = vst.msk [vmem:[#allocation2 + $0x30] sm:$0xff] %vm4108, %v4025
        %4116 = vst.msk [vmem:[#allocation2 + $0x38] sm:$0xff] %vm4108, %v4027
        %4117 = vst.msk [vmem:[#allocation2 + $0x40] sm:$0xff] %vm4108, %v4029
        %4118 = vst.msk [vmem:[#allocation2 + $0x48] sm:$0xff] %vm4108, %v4031
        %4119 = vst.msk [vmem:[#allocation2 + $0x50] sm:$0xff] %vm4108, %v4033
        %4120 = vst.msk [vmem:[#allocation2 + $0x58] sm:$0xff] %vm4108, %v4035
        %4121 = vst.msk [vmem:[#allocation2 + $0x60] sm:$0xff] %vm4108, %v4037
        %4122 = vst.msk [vmem:[#allocation2 + $0x68] sm:$0xff] %vm4108, %v4039
        %4123 = vst.msk [vmem:[#allocation2 + $0x70] sm:$0xff] %vm4108, %v4041
        %4124 = vst.msk [vmem:[#allocation2 + $0x78] sm:$0xff] %vm4108, %v4043
        %4125 = vst.msk [vmem:[#allocation2 + $0x80] sm:$0xff] %vm4108, %v4045
        %4126 = vst.msk [vmem:[#allocation2 + $0x88] sm:$0xff] %vm4108, %v4047
        %4127 = vst.msk [vmem:[#allocation2 + $0x90] sm:$0xff] %vm4108, %v4049
        %4128 = vst.msk [vmem:[#allocation2 + $0x98] sm:$0xff] %vm4108, %v4051
        %4129 = vst.msk [vmem:[#allocation2 + $0xa0] sm:$0xff] %vm4108, %v4053
        %4130 = vst.msk [vmem:[#allocation2 + $0xa8] sm:$0xff] %vm4108, %v4055
        %4131 = vst.msk [vmem:[#allocation2 + $0xb0] sm:$0xff] %vm4108, %v4057
        %4132 = vst.msk [vmem:[#allocation2 + $0xb8] sm:$0xff] %vm4108, %v4059
        %4133 = vst.msk [vmem:[#allocation2 + $0xc0] sm:$0xff] %vm4108, %v4061
        %4134 = vst.msk [vmem:[#allocation2 + $0xc8] sm:$0xff] %vm4108, %v4063
        %4135 = vst.msk [vmem:[#allocation2 + $0xd0] sm:$0xff] %vm4108, %v4065
        %4136 = vst.msk [vmem:[#allocation2 + $0xd8] sm:$0xff] %vm4108, %v4067
        %4137 = vst.msk [vmem:[#allocation2 + $0xe0] sm:$0xff] %vm4108, %v4069
        %4138 = vst.msk [vmem:[#allocation2 + $0xe8] sm:$0xff] %vm4108, %v4071
        %4139 = vst.msk [vmem:[#allocation2 + $0xf0] sm:$0xff] %vm4108, %v4073
        %4140 = vst.msk [vmem:[#allocation2 + $0xf8] sm:$0xff] %vm4108, %v4075
        %s4141 = sadd.s32 16, %s3560
        %s4142 = scalar_lea.vmem %s155, %s4141
        %v4143 = vld [vmem:[%s4142] sm:$0xff]
        %v4144 = vld [vmem:[%s4142 + $0x10] sm:$0xff]
        %v4145 = vld [vmem:[%s4142 + $0x20] sm:$0xff]
        %v4146 = vld [vmem:[%s4142 + $0x30] sm:$0xff]
        %v4147 = vld [vmem:[%s4142 + $0x40] sm:$0xff]
        %v4148 = vld [vmem:[%s4142 + $0x50] sm:$0xff]
        %v4149 = vld [vmem:[%s4142 + $0x60] sm:$0xff]
        %v4150 = vld [vmem:[%s4142 + $0x70] sm:$0xff]
        %v4151 = vld [vmem:[%s4142 + $0xa0] sm:$0xff]
        %v4152 = vld [vmem:[%s4142 + $0xb0] sm:$0xff]
        %v4153 = vld [vmem:[%s4142 + $0xc0] sm:$0xff]
        %v4154 = vld [vmem:[%s4142 + $0xd0] sm:$0xff]
        %v4155 = vld [vmem:[%s4142 + $0xe0] sm:$0xff]
        %v4156 = vld [vmem:[%s4142 + $0xf0] sm:$0xff]
        %v4157 = vld [vmem:[%s4142 + $0x100] sm:$0xff]
        %v4158 = vld [vmem:[%s4142 + $0x110] sm:$0xff]
        %v4159 = vld [vmem:[%s4142 + $0x140] sm:$0xff]
        %v4160 = vld [vmem:[%s4142 + $0x150] sm:$0xff]
        %v4161 = vld [vmem:[%s4142 + $0x160] sm:$0xff]
        %v4162 = vld [vmem:[%s4142 + $0x170] sm:$0xff]
        %v4163 = vld [vmem:[%s4142 + $0x180] sm:$0xff]
        %v4164 = vld [vmem:[%s4142 + $0x190] sm:$0xff]
        %v4165 = vld [vmem:[%s4142 + $0x1a0] sm:$0xff]
        %v4166 = vld [vmem:[%s4142 + $0x1b0] sm:$0xff]
        %v4167 = vld [vmem:[%s4142 + $0x1e0] sm:$0xff]
        %v4168 = vld [vmem:[%s4142 + $0x1f0] sm:$0xff]
        %v4169 = vld [vmem:[%s4142 + $0x200] sm:$0xff]
        %v4170 = vld [vmem:[%s4142 + $0x210] sm:$0xff]
        %v4171 = vld [vmem:[%s4142 + $0x220] sm:$0xff]
        %v4172 = vld [vmem:[%s4142 + $0x230] sm:$0xff]
        %v4173 = vld [vmem:[%s4142 + $0x240] sm:$0xff]
        %v4174 = vld [vmem:[%s4142 + $0x250] sm:$0xff]
        %4207 = vrot.lane.b32.xlu0 %v4143, 84
        %v4208 = vpop.permute.xlu0 %4207
        %4209 = vrot.lane.b32.xlu0 %v4144, 84
        %v4210 = vpop.permute.xlu0 %4209
        %4211 = vrot.lane.b32.xlu0 %v4145, 84
        %v4212 = vpop.permute.xlu0 %4211
        %4213 = vrot.lane.b32.xlu0 %v4146, 84
        %v4214 = vpop.permute.xlu0 %4213
        %4215 = vrot.lane.b32.xlu0 %v4147, 84
        %v4216 = vpop.permute.xlu0 %4215
        %4217 = vrot.lane.b32.xlu0 %v4148, 84
        %v4218 = vpop.permute.xlu0 %4217
        %4219 = vrot.lane.b32.xlu0 %v4149, 84
        %v4220 = vpop.permute.xlu0 %4219
        %4221 = vrot.lane.b32.xlu0 %v4150, 84
        %v4222 = vpop.permute.xlu0 %4221
        %4223 = vrot.lane.b32.xlu0 %v4151, 84
        %v4224 = vpop.permute.xlu0 %4223
        %4225 = vrot.lane.b32.xlu0 %v4152, 84
        %v4226 = vpop.permute.xlu0 %4225
        %4227 = vrot.lane.b32.xlu0 %v4153, 84
        %v4228 = vpop.permute.xlu0 %4227
        %4229 = vrot.lane.b32.xlu0 %v4154, 84
        %v4230 = vpop.permute.xlu0 %4229
        %4231 = vrot.lane.b32.xlu0 %v4155, 84
        %v4232 = vpop.permute.xlu0 %4231
        %4233 = vrot.lane.b32.xlu0 %v4156, 84
        %v4234 = vpop.permute.xlu0 %4233
        %4235 = vrot.lane.b32.xlu0 %v4157, 84
        %v4236 = vpop.permute.xlu0 %4235
        %4237 = vrot.lane.b32.xlu0 %v4158, 84
        %v4238 = vpop.permute.xlu0 %4237
        %4239 = vrot.lane.b32.xlu0 %v4159, 84
        %v4240 = vpop.permute.xlu0 %4239
        %4241 = vrot.lane.b32.xlu0 %v4160, 84
        %v4242 = vpop.permute.xlu0 %4241
        %4243 = vrot.lane.b32.xlu0 %v4161, 84
        %v4244 = vpop.permute.xlu0 %4243
        %4245 = vrot.lane.b32.xlu0 %v4162, 84
        %v4246 = vpop.permute.xlu0 %4245
        %4247 = vrot.lane.b32.xlu0 %v4163, 84
        %v4248 = vpop.permute.xlu0 %4247
        %4249 = vrot.lane.b32.xlu0 %v4164, 84
        %v4250 = vpop.permute.xlu0 %4249
        %4251 = vrot.lane.b32.xlu0 %v4165, 84
        %v4252 = vpop.permute.xlu0 %4251
        %4253 = vrot.lane.b32.xlu0 %v4166, 84
        %v4254 = vpop.permute.xlu0 %4253
        %4255 = vrot.lane.b32.xlu0 %v4167, 84
        %v4256 = vpop.permute.xlu0 %4255
        %4257 = vrot.lane.b32.xlu0 %v4168, 84
        %v4258 = vpop.permute.xlu0 %4257
        %4259 = vrot.lane.b32.xlu0 %v4169, 84
        %v4260 = vpop.permute.xlu0 %4259
        %4261 = vrot.lane.b32.xlu0 %v4170, 84
        %v4262 = vpop.permute.xlu0 %4261
        %4263 = vrot.lane.b32.xlu0 %v4171, 84
        %v4264 = vpop.permute.xlu0 %4263
        %4265 = vrot.lane.b32.xlu0 %v4172, 84
        %v4266 = vpop.permute.xlu0 %4265
        %4267 = vrot.lane.b32.xlu0 %v4173, 84
        %v4268 = vpop.permute.xlu0 %4267
        %4269 = vrot.lane.b32.xlu0 %v4174, 84
        %v4270 = vpop.permute.xlu0 %4269
        %vm4303 = vcmask 720544
        %4304 = vst.msk [vmem:[#allocation2] sm:$0xff] %vm4303, %v4208
        %4305 = vst.msk [vmem:[#allocation2 + $0x8] sm:$0xff] %vm4303, %v4210
        %4306 = vst.msk [vmem:[#allocation2 + $0x10] sm:$0xff] %vm4303, %v4212
        %4307 = vst.msk [vmem:[#allocation2 + $0x18] sm:$0xff] %vm4303, %v4214
        %4308 = vst.msk [vmem:[#allocation2 + $0x20] sm:$0xff] %vm4303, %v4216
        %4309 = vst.msk [vmem:[#allocation2 + $0x28] sm:$0xff] %vm4303, %v4218
        %4310 = vst.msk [vmem:[#allocation2 + $0x30] sm:$0xff] %vm4303, %v4220
        %4311 = vst.msk [vmem:[#allocation2 + $0x38] sm:$0xff] %vm4303, %v4222
        %4312 = vst.msk [vmem:[#allocation2 + $0x40] sm:$0xff] %vm4303, %v4224
        %4313 = vst.msk [vmem:[#allocation2 + $0x48] sm:$0xff] %vm4303, %v4226
        %4314 = vst.msk [vmem:[#allocation2 + $0x50] sm:$0xff] %vm4303, %v4228
        %4315 = vst.msk [vmem:[#allocation2 + $0x58] sm:$0xff] %vm4303, %v4230
        %4316 = vst.msk [vmem:[#allocation2 + $0x60] sm:$0xff] %vm4303, %v4232
        %4317 = vst.msk [vmem:[#allocation2 + $0x68] sm:$0xff] %vm4303, %v4234
        %4318 = vst.msk [vmem:[#allocation2 + $0x70] sm:$0xff] %vm4303, %v4236
        %4319 = vst.msk [vmem:[#allocation2 + $0x78] sm:$0xff] %vm4303, %v4238
        %4320 = vst.msk [vmem:[#allocation2 + $0x80] sm:$0xff] %vm4303, %v4240
        %4321 = vst.msk [vmem:[#allocation2 + $0x88] sm:$0xff] %vm4303, %v4242
        %4322 = vst.msk [vmem:[#allocation2 + $0x90] sm:$0xff] %vm4303, %v4244
        %4323 = vst.msk [vmem:[#allocation2 + $0x98] sm:$0xff] %vm4303, %v4246
        %4324 = vst.msk [vmem:[#allocation2 + $0xa0] sm:$0xff] %vm4303, %v4248
        %4325 = vst.msk [vmem:[#allocation2 + $0xa8] sm:$0xff] %vm4303, %v4250
        %4326 = vst.msk [vmem:[#allocation2 + $0xb0] sm:$0xff] %vm4303, %v4252
        %4327 = vst.msk [vmem:[#allocation2 + $0xb8] sm:$0xff] %vm4303, %v4254
        %4328 = vst.msk [vmem:[#allocation2 + $0xc0] sm:$0xff] %vm4303, %v4256
        %4329 = vst.msk [vmem:[#allocation2 + $0xc8] sm:$0xff] %vm4303, %v4258
        %4330 = vst.msk [vmem:[#allocation2 + $0xd0] sm:$0xff] %vm4303, %v4260
        %4331 = vst.msk [vmem:[#allocation2 + $0xd8] sm:$0xff] %vm4303, %v4262
        %4332 = vst.msk [vmem:[#allocation2 + $0xe0] sm:$0xff] %vm4303, %v4264
        %4333 = vst.msk [vmem:[#allocation2 + $0xe8] sm:$0xff] %vm4303, %v4266
        %4334 = vst.msk [vmem:[#allocation2 + $0xf0] sm:$0xff] %vm4303, %v4268
        %4335 = vst.msk [vmem:[#allocation2 + $0xf8] sm:$0xff] %vm4303, %v4270
        %v4336 = vld [vmem:[%s4142 + $0x1] sm:$0xff]
        %v4337 = vld [vmem:[%s4142 + $0x11] sm:$0xff]
        %v4338 = vld [vmem:[%s4142 + $0x21] sm:$0xff]
        %v4339 = vld [vmem:[%s4142 + $0x31] sm:$0xff]
        %v4340 = vld [vmem:[%s4142 + $0x41] sm:$0xff]
        %v4341 = vld [vmem:[%s4142 + $0x51] sm:$0xff]
        %v4342 = vld [vmem:[%s4142 + $0x61] sm:$0xff]
        %v4343 = vld [vmem:[%s4142 + $0x71] sm:$0xff]
        %v4344 = vld [vmem:[%s4142 + $0xa1] sm:$0xff]
        %v4345 = vld [vmem:[%s4142 + $0xb1] sm:$0xff]
        %v4346 = vld [vmem:[%s4142 + $0xc1] sm:$0xff]
        %v4347 = vld [vmem:[%s4142 + $0xd1] sm:$0xff]
        %v4348 = vld [vmem:[%s4142 + $0xe1] sm:$0xff]
        %v4349 = vld [vmem:[%s4142 + $0xf1] sm:$0xff]
        %v4350 = vld [vmem:[%s4142 + $0x101] sm:$0xff]
        %v4351 = vld [vmem:[%s4142 + $0x111] sm:$0xff]
        %v4352 = vld [vmem:[%s4142 + $0x141] sm:$0xff]
        %v4353 = vld [vmem:[%s4142 + $0x151] sm:$0xff]
        %v4354 = vld [vmem:[%s4142 + $0x161] sm:$0xff]
        %v4355 = vld [vmem:[%s4142 + $0x171] sm:$0xff]
        %v4356 = vld [vmem:[%s4142 + $0x181] sm:$0xff]
        %v4357 = vld [vmem:[%s4142 + $0x191] sm:$0xff]
        %v4358 = vld [vmem:[%s4142 + $0x1a1] sm:$0xff]
        %v4359 = vld [vmem:[%s4142 + $0x1b1] sm:$0xff]
        %v4360 = vld [vmem:[%s4142 + $0x1e1] sm:$0xff]
        %v4361 = vld [vmem:[%s4142 + $0x1f1] sm:$0xff]
        %v4362 = vld [vmem:[%s4142 + $0x201] sm:$0xff]
        %v4363 = vld [vmem:[%s4142 + $0x211] sm:$0xff]
        %v4364 = vld [vmem:[%s4142 + $0x221] sm:$0xff]
        %v4365 = vld [vmem:[%s4142 + $0x231] sm:$0xff]
        %v4366 = vld [vmem:[%s4142 + $0x241] sm:$0xff]
        %v4367 = vld [vmem:[%s4142 + $0x251] sm:$0xff]
        %4400 = vrot.lane.b32.xlu0 %v4336, 88
        %v4401 = vpop.permute.xlu0 %4400
        %4402 = vrot.lane.b32.xlu0 %v4337, 88
        %v4403 = vpop.permute.xlu0 %4402
        %4404 = vrot.lane.b32.xlu0 %v4338, 88
        %v4405 = vpop.permute.xlu0 %4404
        %4406 = vrot.lane.b32.xlu0 %v4339, 88
        %v4407 = vpop.permute.xlu0 %4406
        %4408 = vrot.lane.b32.xlu0 %v4340, 88
        %v4409 = vpop.permute.xlu0 %4408
        %4410 = vrot.lane.b32.xlu0 %v4341, 88
        %v4411 = vpop.permute.xlu0 %4410
        %4412 = vrot.lane.b32.xlu0 %v4342, 88
        %v4413 = vpop.permute.xlu0 %4412
        %4414 = vrot.lane.b32.xlu0 %v4343, 88
        %v4415 = vpop.permute.xlu0 %4414
        %4416 = vrot.lane.b32.xlu0 %v4344, 88
        %v4417 = vpop.permute.xlu0 %4416
        %4418 = vrot.lane.b32.xlu0 %v4345, 88
        %v4419 = vpop.permute.xlu0 %4418
        %4420 = vrot.lane.b32.xlu0 %v4346, 88
        %v4421 = vpop.permute.xlu0 %4420
        %4422 = vrot.lane.b32.xlu0 %v4347, 88
        %v4423 = vpop.permute.xlu0 %4422
        %4424 = vrot.lane.b32.xlu0 %v4348, 88
        %v4425 = vpop.permute.xlu0 %4424
        %4426 = vrot.lane.b32.xlu0 %v4349, 88
        %v4427 = vpop.permute.xlu0 %4426
        %4428 = vrot.lane.b32.xlu0 %v4350, 88
        %v4429 = vpop.permute.xlu0 %4428
        %4430 = vrot.lane.b32.xlu0 %v4351, 88
        %v4431 = vpop.permute.xlu0 %4430
        %4432 = vrot.lane.b32.xlu0 %v4352, 88
        %v4433 = vpop.permute.xlu0 %4432
        %4434 = vrot.lane.b32.xlu0 %v4353, 88
        %v4435 = vpop.permute.xlu0 %4434
        %4436 = vrot.lane.b32.xlu0 %v4354, 88
        %v4437 = vpop.permute.xlu0 %4436
        %4438 = vrot.lane.b32.xlu0 %v4355, 88
        %v4439 = vpop.permute.xlu0 %4438
        %4440 = vrot.lane.b32.xlu0 %v4356, 88
        %v4441 = vpop.permute.xlu0 %4440
        %4442 = vrot.lane.b32.xlu0 %v4357, 88
        %v4443 = vpop.permute.xlu0 %4442
        %4444 = vrot.lane.b32.xlu0 %v4358, 88
        %v4445 = vpop.permute.xlu0 %4444
        %4446 = vrot.lane.b32.xlu0 %v4359, 88
        %v4447 = vpop.permute.xlu0 %4446
        %4448 = vrot.lane.b32.xlu0 %v4360, 88
        %v4449 = vpop.permute.xlu0 %4448
        %4450 = vrot.lane.b32.xlu0 %v4361, 88
        %v4451 = vpop.permute.xlu0 %4450
        %4452 = vrot.lane.b32.xlu0 %v4362, 88
        %v4453 = vpop.permute.xlu0 %4452
        %4454 = vrot.lane.b32.xlu0 %v4363, 88
        %v4455 = vpop.permute.xlu0 %4454
        %4456 = vrot.lane.b32.xlu0 %v4364, 88
        %v4457 = vpop.permute.xlu0 %4456
        %4458 = vrot.lane.b32.xlu0 %v4365, 88
        %v4459 = vpop.permute.xlu0 %4458
        %4460 = vrot.lane.b32.xlu0 %v4366, 88
        %v4461 = vpop.permute.xlu0 %4460
        %4462 = vrot.lane.b32.xlu0 %v4367, 88
        %v4463 = vpop.permute.xlu0 %4462
        %vm4496 = vcmask 753344
        %4497 = vst.msk [vmem:[#allocation2] sm:$0xff] %vm4496, %v4401
        %4498 = vst.msk [vmem:[#allocation2 + $0x8] sm:$0xff] %vm4496, %v4403
        %4499 = vst.msk [vmem:[#allocation2 + $0x10] sm:$0xff] %vm4496, %v4405
        %4500 = vst.msk [vmem:[#allocation2 + $0x18] sm:$0xff] %vm4496, %v4407
        %4501 = vst.msk [vmem:[#allocation2 + $0x20] sm:$0xff] %vm4496, %v4409
        %4502 = vst.msk [vmem:[#allocation2 + $0x28] sm:$0xff] %vm4496, %v4411
        %4503 = vst.msk [vmem:[#allocation2 + $0x30] sm:$0xff] %vm4496, %v4413
        %4504 = vst.msk [vmem:[#allocation2 + $0x38] sm:$0xff] %vm4496, %v4415
        %4505 = vst.msk [vmem:[#allocation2 + $0x40] sm:$0xff] %vm4496, %v4417
        %4506 = vst.msk [vmem:[#allocation2 + $0x48] sm:$0xff] %vm4496, %v4419
        %4507 = vst.msk [vmem:[#allocation2 + $0x50] sm:$0xff] %vm4496, %v4421
        %4508 = vst.msk [vmem:[#allocation2 + $0x58] sm:$0xff] %vm4496, %v4423
        %4509 = vst.msk [vmem:[#allocation2 + $0x60] sm:$0xff] %vm4496, %v4425
        %4510 = vst.msk [vmem:[#allocation2 + $0x68] sm:$0xff] %vm4496, %v4427
        %4511 = vst.msk [vmem:[#allocation2 + $0x70] sm:$0xff] %vm4496, %v4429
        %4512 = vst.msk [vmem:[#allocation2 + $0x78] sm:$0xff] %vm4496, %v4431
        %4513 = vst.msk [vmem:[#allocation2 + $0x80] sm:$0xff] %vm4496, %v4433
        %4514 = vst.msk [vmem:[#allocation2 + $0x88] sm:$0xff] %vm4496, %v4435
        %4515 = vst.msk [vmem:[#allocation2 + $0x90] sm:$0xff] %vm4496, %v4437
        %4516 = vst.msk [vmem:[#allocation2 + $0x98] sm:$0xff] %vm4496, %v4439
        %4517 = vst.msk [vmem:[#allocation2 + $0xa0] sm:$0xff] %vm4496, %v4441
        %4518 = vst.msk [vmem:[#allocation2 + $0xa8] sm:$0xff] %vm4496, %v4443
        %4519 = vst.msk [vmem:[#allocation2 + $0xb0] sm:$0xff] %vm4496, %v4445
        %4520 = vst.msk [vmem:[#allocation2 + $0xb8] sm:$0xff] %vm4496, %v4447
        %4521 = vst.msk [vmem:[#allocation2 + $0xc0] sm:$0xff] %vm4496, %v4449
        %4522 = vst.msk [vmem:[#allocation2 + $0xc8] sm:$0xff] %vm4496, %v4451
        %4523 = vst.msk [vmem:[#allocation2 + $0xd0] sm:$0xff] %vm4496, %v4453
        %4524 = vst.msk [vmem:[#allocation2 + $0xd8] sm:$0xff] %vm4496, %v4455
        %4525 = vst.msk [vmem:[#allocation2 + $0xe0] sm:$0xff] %vm4496, %v4457
        %4526 = vst.msk [vmem:[#allocation2 + $0xe8] sm:$0xff] %vm4496, %v4459
        %4527 = vst.msk [vmem:[#allocation2 + $0xf0] sm:$0xff] %vm4496, %v4461
        %4528 = vst.msk [vmem:[#allocation2 + $0xf8] sm:$0xff] %vm4496, %v4463
        %v4529 = vld [vmem:[%s4142 + $0x2] sm:$0xff]
        %v4530 = vld [vmem:[%s4142 + $0x12] sm:$0xff]
        %v4531 = vld [vmem:[%s4142 + $0x22] sm:$0xff]
        %v4532 = vld [vmem:[%s4142 + $0x32] sm:$0xff]
        %v4533 = vld [vmem:[%s4142 + $0x42] sm:$0xff]
        %v4534 = vld [vmem:[%s4142 + $0x52] sm:$0xff]
        %v4535 = vld [vmem:[%s4142 + $0x62] sm:$0xff]
        %v4536 = vld [vmem:[%s4142 + $0x72] sm:$0xff]
        %v4537 = vld [vmem:[%s4142 + $0xa2] sm:$0xff]
        %v4538 = vld [vmem:[%s4142 + $0xb2] sm:$0xff]
        %v4539 = vld [vmem:[%s4142 + $0xc2] sm:$0xff]
        %v4540 = vld [vmem:[%s4142 + $0xd2] sm:$0xff]
        %v4541 = vld [vmem:[%s4142 + $0xe2] sm:$0xff]
        %v4542 = vld [vmem:[%s4142 + $0xf2] sm:$0xff]
        %v4543 = vld [vmem:[%s4142 + $0x102] sm:$0xff]
        %v4544 = vld [vmem:[%s4142 + $0x112] sm:$0xff]
        %v4545 = vld [vmem:[%s4142 + $0x142] sm:$0xff]
        %v4546 = vld [vmem:[%s4142 + $0x152] sm:$0xff]
        %v4547 = vld [vmem:[%s4142 + $0x162] sm:$0xff]
        %v4548 = vld [vmem:[%s4142 + $0x172] sm:$0xff]
        %v4549 = vld [vmem:[%s4142 + $0x182] sm:$0xff]
        %v4550 = vld [vmem:[%s4142 + $0x192] sm:$0xff]
        %v4551 = vld [vmem:[%s4142 + $0x1a2] sm:$0xff]
        %v4552 = vld [vmem:[%s4142 + $0x1b2] sm:$0xff]
        %v4553 = vld [vmem:[%s4142 + $0x1e2] sm:$0xff]
        %v4554 = vld [vmem:[%s4142 + $0x1f2] sm:$0xff]
        %v4555 = vld [vmem:[%s4142 + $0x202] sm:$0xff]
        %v4556 = vld [vmem:[%s4142 + $0x212] sm:$0xff]
        %v4557 = vld [vmem:[%s4142 + $0x222] sm:$0xff]
        %v4558 = vld [vmem:[%s4142 + $0x232] sm:$0xff]
        %v4559 = vld [vmem:[%s4142 + $0x242] sm:$0xff]
        %v4560 = vld [vmem:[%s4142 + $0x252] sm:$0xff]
        %4593 = vrot.lane.b32.xlu0 %v4529, 92
        %v4594 = vpop.permute.xlu0 %4593
        %4595 = vrot.lane.b32.xlu0 %v4530, 92
        %v4596 = vpop.permute.xlu0 %4595
        %4597 = vrot.lane.b32.xlu0 %v4531, 92
        %v4598 = vpop.permute.xlu0 %4597
        %4599 = vrot.lane.b32.xlu0 %v4532, 92
        %v4600 = vpop.permute.xlu0 %4599
        %4601 = vrot.lane.b32.xlu0 %v4533, 92
        %v4602 = vpop.permute.xlu0 %4601
        %4603 = vrot.lane.b32.xlu0 %v4534, 92
        %v4604 = vpop.permute.xlu0 %4603
        %4605 = vrot.lane.b32.xlu0 %v4535, 92
        %v4606 = vpop.permute.xlu0 %4605
        %4607 = vrot.lane.b32.xlu0 %v4536, 92
        %v4608 = vpop.permute.xlu0 %4607
        %4609 = vrot.lane.b32.xlu0 %v4537, 92
        %v4610 = vpop.permute.xlu0 %4609
        %4611 = vrot.lane.b32.xlu0 %v4538, 92
        %v4612 = vpop.permute.xlu0 %4611
        %4613 = vrot.lane.b32.xlu0 %v4539, 92
        %v4614 = vpop.permute.xlu0 %4613
        %4615 = vrot.lane.b32.xlu0 %v4540, 92
        %v4616 = vpop.permute.xlu0 %4615
        %4617 = vrot.lane.b32.xlu0 %v4541, 92
        %v4618 = vpop.permute.xlu0 %4617
        %4619 = vrot.lane.b32.xlu0 %v4542, 92
        %v4620 = vpop.permute.xlu0 %4619
        %4621 = vrot.lane.b32.xlu0 %v4543, 92
        %v4622 = vpop.permute.xlu0 %4621
        %4623 = vrot.lane.b32.xlu0 %v4544, 92
        %v4624 = vpop.permute.xlu0 %4623
        %4625 = vrot.lane.b32.xlu0 %v4545, 92
        %v4626 = vpop.permute.xlu0 %4625
        %4627 = vrot.lane.b32.xlu0 %v4546, 92
        %v4628 = vpop.permute.xlu0 %4627
        %4629 = vrot.lane.b32.xlu0 %v4547, 92
        %v4630 = vpop.permute.xlu0 %4629
        %4631 = vrot.lane.b32.xlu0 %v4548, 92
        %v4632 = vpop.permute.xlu0 %4631
        %4633 = vrot.lane.b32.xlu0 %v4549, 92
        %v4634 = vpop.permute.xlu0 %4633
        %4635 = vrot.lane.b32.xlu0 %v4550, 92
        %v4636 = vpop.permute.xlu0 %4635
        %4637 = vrot.lane.b32.xlu0 %v4551, 92
        %v4638 = vpop.permute.xlu0 %4637
        %4639 = vrot.lane.b32.xlu0 %v4552, 92
        %v4640 = vpop.permute.xlu0 %4639
        %4641 = vrot.lane.b32.xlu0 %v4553, 92
        %v4642 = vpop.permute.xlu0 %4641
        %4643 = vrot.lane.b32.xlu0 %v4554, 92
        %v4644 = vpop.permute.xlu0 %4643
        %4645 = vrot.lane.b32.xlu0 %v4555, 92
        %v4646 = vpop.permute.xlu0 %4645
        %4647 = vrot.lane.b32.xlu0 %v4556, 92
        %v4648 = vpop.permute.xlu0 %4647
        %4649 = vrot.lane.b32.xlu0 %v4557, 92
        %v4650 = vpop.permute.xlu0 %4649
        %4651 = vrot.lane.b32.xlu0 %v4558, 92
        %v4652 = vpop.permute.xlu0 %4651
        %4653 = vrot.lane.b32.xlu0 %v4559, 92
        %v4654 = vpop.permute.xlu0 %4653
        %4655 = vrot.lane.b32.xlu0 %v4560, 92
        %v4656 = vpop.permute.xlu0 %4655
        %vm4689 = vcmask 786144
        %4690 = vst.msk [vmem:[#allocation2] sm:$0xff] %vm4689, %v4594
        %4691 = vst.msk [vmem:[#allocation2 + $0x8] sm:$0xff] %vm4689, %v4596
        %4692 = vst.msk [vmem:[#allocation2 + $0x10] sm:$0xff] %vm4689, %v4598
        %4693 = vst.msk [vmem:[#allocation2 + $0x18] sm:$0xff] %vm4689, %v4600
        %4694 = vst.msk [vmem:[#allocation2 + $0x20] sm:$0xff] %vm4689, %v4602
        %4695 = vst.msk [vmem:[#allocation2 + $0x28] sm:$0xff] %vm4689, %v4604
        %4696 = vst.msk [vmem:[#allocation2 + $0x30] sm:$0xff] %vm4689, %v4606
        %4697 = vst.msk [vmem:[#allocation2 + $0x38] sm:$0xff] %vm4689, %v4608
        %4698 = vst.msk [vmem:[#allocation2 + $0x40] sm:$0xff] %vm4689, %v4610
        %4699 = vst.msk [vmem:[#allocation2 + $0x48] sm:$0xff] %vm4689, %v4612
        %4700 = vst.msk [vmem:[#allocation2 + $0x50] sm:$0xff] %vm4689, %v4614
        %4701 = vst.msk [vmem:[#allocation2 + $0x58] sm:$0xff] %vm4689, %v4616
        %4702 = vst.msk [vmem:[#allocation2 + $0x60] sm:$0xff] %vm4689, %v4618
        %4703 = vst.msk [vmem:[#allocation2 + $0x68] sm:$0xff] %vm4689, %v4620
        %4704 = vst.msk [vmem:[#allocation2 + $0x70] sm:$0xff] %vm4689, %v4622
        %4705 = vst.msk [vmem:[#allocation2 + $0x78] sm:$0xff] %vm4689, %v4624
        %4706 = vst.msk [vmem:[#allocation2 + $0x80] sm:$0xff] %vm4689, %v4626
        %4707 = vst.msk [vmem:[#allocation2 + $0x88] sm:$0xff] %vm4689, %v4628
        %4708 = vst.msk [vmem:[#allocation2 + $0x90] sm:$0xff] %vm4689, %v4630
        %4709 = vst.msk [vmem:[#allocation2 + $0x98] sm:$0xff] %vm4689, %v4632
        %4710 = vst.msk [vmem:[#allocation2 + $0xa0] sm:$0xff] %vm4689, %v4634
        %4711 = vst.msk [vmem:[#allocation2 + $0xa8] sm:$0xff] %vm4689, %v4636
        %4712 = vst.msk [vmem:[#allocation2 + $0xb0] sm:$0xff] %vm4689, %v4638
        %4713 = vst.msk [vmem:[#allocation2 + $0xb8] sm:$0xff] %vm4689, %v4640
        %4714 = vst.msk [vmem:[#allocation2 + $0xc0] sm:$0xff] %vm4689, %v4642
        %4715 = vst.msk [vmem:[#allocation2 + $0xc8] sm:$0xff] %vm4689, %v4644
        %4716 = vst.msk [vmem:[#allocation2 + $0xd0] sm:$0xff] %vm4689, %v4646
        %4717 = vst.msk [vmem:[#allocation2 + $0xd8] sm:$0xff] %vm4689, %v4648
        %4718 = vst.msk [vmem:[#allocation2 + $0xe0] sm:$0xff] %vm4689, %v4650
        %4719 = vst.msk [vmem:[#allocation2 + $0xe8] sm:$0xff] %vm4689, %v4652
        %4720 = vst.msk [vmem:[#allocation2 + $0xf0] sm:$0xff] %vm4689, %v4654
        %4721 = vst.msk [vmem:[#allocation2 + $0xf8] sm:$0xff] %vm4689, %v4656
        %s4722 = sadd.s32 32, %s3560
        %s4723 = scalar_lea.vmem %s155, %s4722
        %v4724 = vld [vmem:[%s4723] sm:$0xff]
        %v4725 = vld [vmem:[%s4723 + $0x10] sm:$0xff]
        %v4726 = vld [vmem:[%s4723 + $0x20] sm:$0xff]
        %v4727 = vld [vmem:[%s4723 + $0x30] sm:$0xff]
        %v4728 = vld [vmem:[%s4723 + $0x40] sm:$0xff]
        %v4729 = vld [vmem:[%s4723 + $0x50] sm:$0xff]
        %v4730 = vld [vmem:[%s4723 + $0x60] sm:$0xff]
        %v4731 = vld [vmem:[%s4723 + $0x70] sm:$0xff]
        %v4732 = vld [vmem:[%s4723 + $0xa0] sm:$0xff]
        %v4733 = vld [vmem:[%s4723 + $0xb0] sm:$0xff]
        %v4734 = vld [vmem:[%s4723 + $0xc0] sm:$0xff]
        %v4735 = vld [vmem:[%s4723 + $0xd0] sm:$0xff]
        %v4736 = vld [vmem:[%s4723 + $0xe0] sm:$0xff]
        %v4737 = vld [vmem:[%s4723 + $0xf0] sm:$0xff]
        %v4738 = vld [vmem:[%s4723 + $0x100] sm:$0xff]
        %v4739 = vld [vmem:[%s4723 + $0x110] sm:$0xff]
        %v4740 = vld [vmem:[%s4723 + $0x140] sm:$0xff]
        %v4741 = vld [vmem:[%s4723 + $0x150] sm:$0xff]
        %v4742 = vld [vmem:[%s4723 + $0x160] sm:$0xff]
        %v4743 = vld [vmem:[%s4723 + $0x170] sm:$0xff]
        %v4744 = vld [vmem:[%s4723 + $0x180] sm:$0xff]
        %v4745 = vld [vmem:[%s4723 + $0x190] sm:$0xff]
        %v4746 = vld [vmem:[%s4723 + $0x1a0] sm:$0xff]
        %v4747 = vld [vmem:[%s4723 + $0x1b0] sm:$0xff]
        %v4748 = vld [vmem:[%s4723 + $0x1e0] sm:$0xff]
        %v4749 = vld [vmem:[%s4723 + $0x1f0] sm:$0xff]
        %v4750 = vld [vmem:[%s4723 + $0x200] sm:$0xff]
        %v4751 = vld [vmem:[%s4723 + $0x210] sm:$0xff]
        %v4752 = vld [vmem:[%s4723 + $0x220] sm:$0xff]
        %v4753 = vld [vmem:[%s4723 + $0x230] sm:$0xff]
        %v4754 = vld [vmem:[%s4723 + $0x240] sm:$0xff]
        %v4755 = vld [vmem:[%s4723 + $0x250] sm:$0xff]
        %4788 = vrot.lane.b32.xlu0 %v4724, 96
        %v4789 = vpop.permute.xlu0 %4788
        %4790 = vrot.lane.b32.xlu0 %v4725, 96
        %v4791 = vpop.permute.xlu0 %4790
        %4792 = vrot.lane.b32.xlu0 %v4726, 96
        %v4793 = vpop.permute.xlu0 %4792
        %4794 = vrot.lane.b32.xlu0 %v4727, 96
        %v4795 = vpop.permute.xlu0 %4794
        %4796 = vrot.lane.b32.xlu0 %v4728, 96
        %v4797 = vpop.permute.xlu0 %4796
        %4798 = vrot.lane.b32.xlu0 %v4729, 96
        %v4799 = vpop.permute.xlu0 %4798
        %4800 = vrot.lane.b32.xlu0 %v4730, 96
        %v4801 = vpop.permute.xlu0 %4800
        %4802 = vrot.lane.b32.xlu0 %v4731, 96
        %v4803 = vpop.permute.xlu0 %4802
        %4804 = vrot.lane.b32.xlu0 %v4732, 96
        %v4805 = vpop.permute.xlu0 %4804
        %4806 = vrot.lane.b32.xlu0 %v4733, 96
        %v4807 = vpop.permute.xlu0 %4806
        %4808 = vrot.lane.b32.xlu0 %v4734, 96
        %v4809 = vpop.permute.xlu0 %4808
        %4810 = vrot.lane.b32.xlu0 %v4735, 96
        %v4811 = vpop.permute.xlu0 %4810
        %4812 = vrot.lane.b32.xlu0 %v4736, 96
        %v4813 = vpop.permute.xlu0 %4812
        %4814 = vrot.lane.b32.xlu0 %v4737, 96
        %v4815 = vpop.permute.xlu0 %4814
        %4816 = vrot.lane.b32.xlu0 %v4738, 96
        %v4817 = vpop.permute.xlu0 %4816
        %4818 = vrot.lane.b32.xlu0 %v4739, 96
        %v4819 = vpop.permute.xlu0 %4818
        %4820 = vrot.lane.b32.xlu0 %v4740, 96
        %v4821 = vpop.permute.xlu0 %4820
        %4822 = vrot.lane.b32.xlu0 %v4741, 96
        %v4823 = vpop.permute.xlu0 %4822
        %4824 = vrot.lane.b32.xlu0 %v4742, 96
        %v4825 = vpop.permute.xlu0 %4824
        %4826 = vrot.lane.b32.xlu0 %v4743, 96
        %v4827 = vpop.permute.xlu0 %4826
        %4828 = vrot.lane.b32.xlu0 %v4744, 96
        %v4829 = vpop.permute.xlu0 %4828
        %4830 = vrot.lane.b32.xlu0 %v4745, 96
        %v4831 = vpop.permute.xlu0 %4830
        %4832 = vrot.lane.b32.xlu0 %v4746, 96
        %v4833 = vpop.permute.xlu0 %4832
        %4834 = vrot.lane.b32.xlu0 %v4747, 96
        %v4835 = vpop.permute.xlu0 %4834
        %4836 = vrot.lane.b32.xlu0 %v4748, 96
        %v4837 = vpop.permute.xlu0 %4836
        %4838 = vrot.lane.b32.xlu0 %v4749, 96
        %v4839 = vpop.permute.xlu0 %4838
        %4840 = vrot.lane.b32.xlu0 %v4750, 96
        %v4841 = vpop.permute.xlu0 %4840
        %4842 = vrot.lane.b32.xlu0 %v4751, 96
        %v4843 = vpop.permute.xlu0 %4842
        %4844 = vrot.lane.b32.xlu0 %v4752, 96
        %v4845 = vpop.permute.xlu0 %4844
        %4846 = vrot.lane.b32.xlu0 %v4753, 96
        %v4847 = vpop.permute.xlu0 %4846
        %4848 = vrot.lane.b32.xlu0 %v4754, 96
        %v4849 = vpop.permute.xlu0 %4848
        %4850 = vrot.lane.b32.xlu0 %v4755, 96
        %v4851 = vpop.permute.xlu0 %4850
        %vm4884 = vcmask 818944
        %4885 = vst.msk [vmem:[#allocation2] sm:$0xff] %vm4884, %v4789
        %4886 = vst.msk [vmem:[#allocation2 + $0x8] sm:$0xff] %vm4884, %v4791
        %4887 = vst.msk [vmem:[#allocation2 + $0x10] sm:$0xff] %vm4884, %v4793
        %4888 = vst.msk [vmem:[#allocation2 + $0x18] sm:$0xff] %vm4884, %v4795
        %4889 = vst.msk [vmem:[#allocation2 + $0x20] sm:$0xff] %vm4884, %v4797
        %4890 = vst.msk [vmem:[#allocation2 + $0x28] sm:$0xff] %vm4884, %v4799
        %4891 = vst.msk [vmem:[#allocation2 + $0x30] sm:$0xff] %vm4884, %v4801
        %4892 = vst.msk [vmem:[#allocation2 + $0x38] sm:$0xff] %vm4884, %v4803
        %4893 = vst.msk [vmem:[#allocation2 + $0x40] sm:$0xff] %vm4884, %v4805
        %4894 = vst.msk [vmem:[#allocation2 + $0x48] sm:$0xff] %vm4884, %v4807
        %4895 = vst.msk [vmem:[#allocation2 + $0x50] sm:$0xff] %vm4884, %v4809
        %4896 = vst.msk [vmem:[#allocation2 + $0x58] sm:$0xff] %vm4884, %v4811
        %4897 = vst.msk [vmem:[#allocation2 + $0x60] sm:$0xff] %vm4884, %v4813
        %4898 = vst.msk [vmem:[#allocation2 + $0x68] sm:$0xff] %vm4884, %v4815
        %4899 = vst.msk [vmem:[#allocation2 + $0x70] sm:$0xff] %vm4884, %v4817
        %4900 = vst.msk [vmem:[#allocation2 + $0x78] sm:$0xff] %vm4884, %v4819
        %4901 = vst.msk [vmem:[#allocation2 + $0x80] sm:$0xff] %vm4884, %v4821
        %4902 = vst.msk [vmem:[#allocation2 + $0x88] sm:$0xff] %vm4884, %v4823
        %4903 = vst.msk [vmem:[#allocation2 + $0x90] sm:$0xff] %vm4884, %v4825
        %4904 = vst.msk [vmem:[#allocation2 + $0x98] sm:$0xff] %vm4884, %v4827
        %4905 = vst.msk [vmem:[#allocation2 + $0xa0] sm:$0xff] %vm4884, %v4829
        %4906 = vst.msk [vmem:[#allocation2 + $0xa8] sm:$0xff] %vm4884, %v4831
        %4907 = vst.msk [vmem:[#allocation2 + $0xb0] sm:$0xff] %vm4884, %v4833
        %4908 = vst.msk [vmem:[#allocation2 + $0xb8] sm:$0xff] %vm4884, %v4835
        %4909 = vst.msk [vmem:[#allocation2 + $0xc0] sm:$0xff] %vm4884, %v4837
        %4910 = vst.msk [vmem:[#allocation2 + $0xc8] sm:$0xff] %vm4884, %v4839
        %4911 = vst.msk [vmem:[#allocation2 + $0xd0] sm:$0xff] %vm4884, %v4841
        %4912 = vst.msk [vmem:[#allocation2 + $0xd8] sm:$0xff] %vm4884, %v4843
        %4913 = vst.msk [vmem:[#allocation2 + $0xe0] sm:$0xff] %vm4884, %v4845
        %4914 = vst.msk [vmem:[#allocation2 + $0xe8] sm:$0xff] %vm4884, %v4847
        %4915 = vst.msk [vmem:[#allocation2 + $0xf0] sm:$0xff] %vm4884, %v4849
        %4916 = vst.msk [vmem:[#allocation2 + $0xf8] sm:$0xff] %vm4884, %v4851
        %v4917 = vld [vmem:[%s4723 + $0x1] sm:$0xff]
        %v4918 = vld [vmem:[%s4723 + $0x11] sm:$0xff]
        %v4919 = vld [vmem:[%s4723 + $0x21] sm:$0xff]
        %v4920 = vld [vmem:[%s4723 + $0x31] sm:$0xff]
        %v4921 = vld [vmem:[%s4723 + $0x41] sm:$0xff]
        %v4922 = vld [vmem:[%s4723 + $0x51] sm:$0xff]
        %v4923 = vld [vmem:[%s4723 + $0x61] sm:$0xff]
        %v4924 = vld [vmem:[%s4723 + $0x71] sm:$0xff]
        %v4925 = vld [vmem:[%s4723 + $0xa1] sm:$0xff]
        %v4926 = vld [vmem:[%s4723 + $0xb1] sm:$0xff]
        %v4927 = vld [vmem:[%s4723 + $0xc1] sm:$0xff]
        %v4928 = vld [vmem:[%s4723 + $0xd1] sm:$0xff]
        %v4929 = vld [vmem:[%s4723 + $0xe1] sm:$0xff]
        %v4930 = vld [vmem:[%s4723 + $0xf1] sm:$0xff]
        %v4931 = vld [vmem:[%s4723 + $0x101] sm:$0xff]
        %v4932 = vld [vmem:[%s4723 + $0x111] sm:$0xff]
        %v4933 = vld [vmem:[%s4723 + $0x141] sm:$0xff]
        %v4934 = vld [vmem:[%s4723 + $0x151] sm:$0xff]
        %v4935 = vld [vmem:[%s4723 + $0x161] sm:$0xff]
        %v4936 = vld [vmem:[%s4723 + $0x171] sm:$0xff]
        %v4937 = vld [vmem:[%s4723 + $0x181] sm:$0xff]
        %v4938 = vld [vmem:[%s4723 + $0x191] sm:$0xff]
        %v4939 = vld [vmem:[%s4723 + $0x1a1] sm:$0xff]
        %v4940 = vld [vmem:[%s4723 + $0x1b1] sm:$0xff]
        %v4941 = vld [vmem:[%s4723 + $0x1e1] sm:$0xff]
        %v4942 = vld [vmem:[%s4723 + $0x1f1] sm:$0xff]
        %v4943 = vld [vmem:[%s4723 + $0x201] sm:$0xff]
        %v4944 = vld [vmem:[%s4723 + $0x211] sm:$0xff]
        %v4945 = vld [vmem:[%s4723 + $0x221] sm:$0xff]
        %v4946 = vld [vmem:[%s4723 + $0x231] sm:$0xff]
        %v4947 = vld [vmem:[%s4723 + $0x241] sm:$0xff]
        %v4948 = vld [vmem:[%s4723 + $0x251] sm:$0xff]
        %4981 = vrot.lane.b32.xlu0 %v4917, 100
        %v4982 = vpop.permute.xlu0 %4981
        %4983 = vrot.lane.b32.xlu0 %v4918, 100
        %v4984 = vpop.permute.xlu0 %4983
        %4985 = vrot.lane.b32.xlu0 %v4919, 100
        %v4986 = vpop.permute.xlu0 %4985
        %4987 = vrot.lane.b32.xlu0 %v4920, 100
        %v4988 = vpop.permute.xlu0 %4987
        %4989 = vrot.lane.b32.xlu0 %v4921, 100
        %v4990 = vpop.permute.xlu0 %4989
        %4991 = vrot.lane.b32.xlu0 %v4922, 100
        %v4992 = vpop.permute.xlu0 %4991
        %4993 = vrot.lane.b32.xlu0 %v4923, 100
        %v4994 = vpop.permute.xlu0 %4993
        %4995 = vrot.lane.b32.xlu0 %v4924, 100
        %v4996 = vpop.permute.xlu0 %4995
        %4997 = vrot.lane.b32.xlu0 %v4925, 100
        %v4998 = vpop.permute.xlu0 %4997
        %4999 = vrot.lane.b32.xlu0 %v4926, 100
        %v5000 = vpop.permute.xlu0 %4999
        %5001 = vrot.lane.b32.xlu0 %v4927, 100
        %v5002 = vpop.permute.xlu0 %5001
        %5003 = vrot.lane.b32.xlu0 %v4928, 100
        %v5004 = vpop.permute.xlu0 %5003
        %5005 = vrot.lane.b32.xlu0 %v4929, 100
        %v5006 = vpop.permute.xlu0 %5005
        %5007 = vrot.lane.b32.xlu0 %v4930, 100
        %v5008 = vpop.permute.xlu0 %5007
        %5009 = vrot.lane.b32.xlu0 %v4931, 100
        %v5010 = vpop.permute.xlu0 %5009
        %5011 = vrot.lane.b32.xlu0 %v4932, 100
        %v5012 = vpop.permute.xlu0 %5011
        %5013 = vrot.lane.b32.xlu0 %v4933, 100
        %v5014 = vpop.permute.xlu0 %5013
        %5015 = vrot.lane.b32.xlu0 %v4934, 100
        %v5016 = vpop.permute.xlu0 %5015
        %5017 = vrot.lane.b32.xlu0 %v4935, 100
        %v5018 = vpop.permute.xlu0 %5017
        %5019 = vrot.lane.b32.xlu0 %v4936, 100
        %v5020 = vpop.permute.xlu0 %5019
        %5021 = vrot.lane.b32.xlu0 %v4937, 100
        %v5022 = vpop.permute.xlu0 %5021
        %5023 = vrot.lane.b32.xlu0 %v4938, 100
        %v5024 = vpop.permute.xlu0 %5023
        %5025 = vrot.lane.b32.xlu0 %v4939, 100
        %v5026 = vpop.permute.xlu0 %5025
        %5027 = vrot.lane.b32.xlu0 %v4940, 100
        %v5028 = vpop.permute.xlu0 %5027
        %5029 = vrot.lane.b32.xlu0 %v4941, 100
        %v5030 = vpop.permute.xlu0 %5029
        %5031 = vrot.lane.b32.xlu0 %v4942, 100
        %v5032 = vpop.permute.xlu0 %5031
        %5033 = vrot.lane.b32.xlu0 %v4943, 100
        %v5034 = vpop.permute.xlu0 %5033
        %5035 = vrot.lane.b32.xlu0 %v4944, 100
        %v5036 = vpop.permute.xlu0 %5035
        %5037 = vrot.lane.b32.xlu0 %v4945, 100
        %v5038 = vpop.permute.xlu0 %5037
        %5039 = vrot.lane.b32.xlu0 %v4946, 100
        %v5040 = vpop.permute.xlu0 %5039
        %5041 = vrot.lane.b32.xlu0 %v4947, 100
        %v5042 = vpop.permute.xlu0 %5041
        %5043 = vrot.lane.b32.xlu0 %v4948, 100
        %v5044 = vpop.permute.xlu0 %5043
        %vm5077 = vcmask 851744
        %5078 = vst.msk [vmem:[#allocation2] sm:$0xff] %vm5077, %v4982
        %5079 = vst.msk [vmem:[#allocation2 + $0x8] sm:$0xff] %vm5077, %v4984
        %5080 = vst.msk [vmem:[#allocation2 + $0x10] sm:$0xff] %vm5077, %v4986
        %5081 = vst.msk [vmem:[#allocation2 + $0x18] sm:$0xff] %vm5077, %v4988
        %5082 = vst.msk [vmem:[#allocation2 + $0x20] sm:$0xff] %vm5077, %v4990
        %5083 = vst.msk [vmem:[#allocation2 + $0x28] sm:$0xff] %vm5077, %v4992
        %5084 = vst.msk [vmem:[#allocation2 + $0x30] sm:$0xff] %vm5077, %v4994
        %5085 = vst.msk [vmem:[#allocation2 + $0x38] sm:$0xff] %vm5077, %v4996
        %5086 = vst.msk [vmem:[#allocation2 + $0x40] sm:$0xff] %vm5077, %v4998
        %5087 = vst.msk [vmem:[#allocation2 + $0x48] sm:$0xff] %vm5077, %v5000
        %5088 = vst.msk [vmem:[#allocation2 + $0x50] sm:$0xff] %vm5077, %v5002
        %5089 = vst.msk [vmem:[#allocation2 + $0x58] sm:$0xff] %vm5077, %v5004
        %5090 = vst.msk [vmem:[#allocation2 + $0x60] sm:$0xff] %vm5077, %v5006
        %5091 = vst.msk [vmem:[#allocation2 + $0x68] sm:$0xff] %vm5077, %v5008
        %5092 = vst.msk [vmem:[#allocation2 + $0x70] sm:$0xff] %vm5077, %v5010
        %5093 = vst.msk [vmem:[#allocation2 + $0x78] sm:$0xff] %vm5077, %v5012
        %5094 = vst.msk [vmem:[#allocation2 + $0x80] sm:$0xff] %vm5077, %v5014
        %5095 = vst.msk [vmem:[#allocation2 + $0x88] sm:$0xff] %vm5077, %v5016
        %5096 = vst.msk [vmem:[#allocation2 + $0x90] sm:$0xff] %vm5077, %v5018
        %5097 = vst.msk [vmem:[#allocation2 + $0x98] sm:$0xff] %vm5077, %v5020
        %5098 = vst.msk [vmem:[#allocation2 + $0xa0] sm:$0xff] %vm5077, %v5022
        %5099 = vst.msk [vmem:[#allocation2 + $0xa8] sm:$0xff] %vm5077, %v5024
        %5100 = vst.msk [vmem:[#allocation2 + $0xb0] sm:$0xff] %vm5077, %v5026
        %5101 = vst.msk [vmem:[#allocation2 + $0xb8] sm:$0xff] %vm5077, %v5028
        %5102 = vst.msk [vmem:[#allocation2 + $0xc0] sm:$0xff] %vm5077, %v5030
        %5103 = vst.msk [vmem:[#allocation2 + $0xc8] sm:$0xff] %vm5077, %v5032
        %5104 = vst.msk [vmem:[#allocation2 + $0xd0] sm:$0xff] %vm5077, %v5034
        %5105 = vst.msk [vmem:[#allocation2 + $0xd8] sm:$0xff] %vm5077, %v5036
        %5106 = vst.msk [vmem:[#allocation2 + $0xe0] sm:$0xff] %vm5077, %v5038
        %5107 = vst.msk [vmem:[#allocation2 + $0xe8] sm:$0xff] %vm5077, %v5040
        %5108 = vst.msk [vmem:[#allocation2 + $0xf0] sm:$0xff] %vm5077, %v5042
        %5109 = vst.msk [vmem:[#allocation2 + $0xf8] sm:$0xff] %vm5077, %v5044
        %v5110 = vld [vmem:[%s4723 + $0x2] sm:$0xff]
        %v5111 = vld [vmem:[%s4723 + $0x12] sm:$0xff]
        %v5112 = vld [vmem:[%s4723 + $0x22] sm:$0xff]
        %v5113 = vld [vmem:[%s4723 + $0x32] sm:$0xff]
        %v5114 = vld [vmem:[%s4723 + $0x42] sm:$0xff]
        %v5115 = vld [vmem:[%s4723 + $0x52] sm:$0xff]
        %v5116 = vld [vmem:[%s4723 + $0x62] sm:$0xff]
        %v5117 = vld [vmem:[%s4723 + $0x72] sm:$0xff]
        %v5118 = vld [vmem:[%s4723 + $0xa2] sm:$0xff]
        %v5119 = vld [vmem:[%s4723 + $0xb2] sm:$0xff]
        %v5120 = vld [vmem:[%s4723 + $0xc2] sm:$0xff]
        %v5121 = vld [vmem:[%s4723 + $0xd2] sm:$0xff]
        %v5122 = vld [vmem:[%s4723 + $0xe2] sm:$0xff]
        %v5123 = vld [vmem:[%s4723 + $0xf2] sm:$0xff]
        %v5124 = vld [vmem:[%s4723 + $0x102] sm:$0xff]
        %v5125 = vld [vmem:[%s4723 + $0x112] sm:$0xff]
        %v5126 = vld [vmem:[%s4723 + $0x142] sm:$0xff]
        %v5127 = vld [vmem:[%s4723 + $0x152] sm:$0xff]
        %v5128 = vld [vmem:[%s4723 + $0x162] sm:$0xff]
        %v5129 = vld [vmem:[%s4723 + $0x172] sm:$0xff]
        %v5130 = vld [vmem:[%s4723 + $0x182] sm:$0xff]
        %v5131 = vld [vmem:[%s4723 + $0x192] sm:$0xff]
        %v5132 = vld [vmem:[%s4723 + $0x1a2] sm:$0xff]
        %v5133 = vld [vmem:[%s4723 + $0x1b2] sm:$0xff]
        %v5134 = vld [vmem:[%s4723 + $0x1e2] sm:$0xff]
        %v5135 = vld [vmem:[%s4723 + $0x1f2] sm:$0xff]
        %v5136 = vld [vmem:[%s4723 + $0x202] sm:$0xff]
        %v5137 = vld [vmem:[%s4723 + $0x212] sm:$0xff]
        %v5138 = vld [vmem:[%s4723 + $0x222] sm:$0xff]
        %v5139 = vld [vmem:[%s4723 + $0x232] sm:$0xff]
        %v5140 = vld [vmem:[%s4723 + $0x242] sm:$0xff]
        %v5141 = vld [vmem:[%s4723 + $0x252] sm:$0xff]
        %5174 = vrot.lane.b32.xlu0 %v5110, 104
        %v5175 = vpop.permute.xlu0 %5174
        %5176 = vrot.lane.b32.xlu0 %v5111, 104
        %v5177 = vpop.permute.xlu0 %5176
        %5178 = vrot.lane.b32.xlu0 %v5112, 104
        %v5179 = vpop.permute.xlu0 %5178
        %5180 = vrot.lane.b32.xlu0 %v5113, 104
        %v5181 = vpop.permute.xlu0 %5180
        %5182 = vrot.lane.b32.xlu0 %v5114, 104
        %v5183 = vpop.permute.xlu0 %5182
        %5184 = vrot.lane.b32.xlu0 %v5115, 104
        %v5185 = vpop.permute.xlu0 %5184
        %5186 = vrot.lane.b32.xlu0 %v5116, 104
        %v5187 = vpop.permute.xlu0 %5186
        %5188 = vrot.lane.b32.xlu0 %v5117, 104
        %v5189 = vpop.permute.xlu0 %5188
        %5190 = vrot.lane.b32.xlu0 %v5118, 104
        %v5191 = vpop.permute.xlu0 %5190
        %5192 = vrot.lane.b32.xlu0 %v5119, 104
        %v5193 = vpop.permute.xlu0 %5192
        %5194 = vrot.lane.b32.xlu0 %v5120, 104
        %v5195 = vpop.permute.xlu0 %5194
        %5196 = vrot.lane.b32.xlu0 %v5121, 104
        %v5197 = vpop.permute.xlu0 %5196
        %5198 = vrot.lane.b32.xlu0 %v5122, 104
        %v5199 = vpop.permute.xlu0 %5198
        %5200 = vrot.lane.b32.xlu0 %v5123, 104
        %v5201 = vpop.permute.xlu0 %5200
        %5202 = vrot.lane.b32.xlu0 %v5124, 104
        %v5203 = vpop.permute.xlu0 %5202
        %5204 = vrot.lane.b32.xlu0 %v5125, 104
        %v5205 = vpop.permute.xlu0 %5204
        %5206 = vrot.lane.b32.xlu0 %v5126, 104
        %v5207 = vpop.permute.xlu0 %5206
        %5208 = vrot.lane.b32.xlu0 %v5127, 104
        %v5209 = vpop.permute.xlu0 %5208
        %5210 = vrot.lane.b32.xlu0 %v5128, 104
        %v5211 = vpop.permute.xlu0 %5210
        %5212 = vrot.lane.b32.xlu0 %v5129, 104
        %v5213 = vpop.permute.xlu0 %5212
        %5214 = vrot.lane.b32.xlu0 %v5130, 104
        %v5215 = vpop.permute.xlu0 %5214
        %5216 = vrot.lane.b32.xlu0 %v5131, 104
        %v5217 = vpop.permute.xlu0 %5216
        %5218 = vrot.lane.b32.xlu0 %v5132, 104
        %v5219 = vpop.permute.xlu0 %5218
        %5220 = vrot.lane.b32.xlu0 %v5133, 104
        %v5221 = vpop.permute.xlu0 %5220
        %5222 = vrot.lane.b32.xlu0 %v5134, 104
        %v5223 = vpop.permute.xlu0 %5222
        %5224 = vrot.lane.b32.xlu0 %v5135, 104
        %v5225 = vpop.permute.xlu0 %5224
        %5226 = vrot.lane.b32.xlu0 %v5136, 104
        %v5227 = vpop.permute.xlu0 %5226
        %5228 = vrot.lane.b32.xlu0 %v5137, 104
        %v5229 = vpop.permute.xlu0 %5228
        %5230 = vrot.lane.b32.xlu0 %v5138, 104
        %v5231 = vpop.permute.xlu0 %5230
        %5232 = vrot.lane.b32.xlu0 %v5139, 104
        %v5233 = vpop.permute.xlu0 %5232
        %5234 = vrot.lane.b32.xlu0 %v5140, 104
        %v5235 = vpop.permute.xlu0 %5234
        %5236 = vrot.lane.b32.xlu0 %v5141, 104
        %v5237 = vpop.permute.xlu0 %5236
        %vm5270 = vcmask 884544
        %5271 = vst.msk [vmem:[#allocation2] sm:$0xff] %vm5270, %v5175
        %5272 = vst.msk [vmem:[#allocation2 + $0x8] sm:$0xff] %vm5270, %v5177
        %5273 = vst.msk [vmem:[#allocation2 + $0x10] sm:$0xff] %vm5270, %v5179
        %5274 = vst.msk [vmem:[#allocation2 + $0x18] sm:$0xff] %vm5270, %v5181
        %5275 = vst.msk [vmem:[#allocation2 + $0x20] sm:$0xff] %vm5270, %v5183
        %5276 = vst.msk [vmem:[#allocation2 + $0x28] sm:$0xff] %vm5270, %v5185
        %5277 = vst.msk [vmem:[#allocation2 + $0x30] sm:$0xff] %vm5270, %v5187
        %5278 = vst.msk [vmem:[#allocation2 + $0x38] sm:$0xff] %vm5270, %v5189
        %5279 = vst.msk [vmem:[#allocation2 + $0x40] sm:$0xff] %vm5270, %v5191
        %5280 = vst.msk [vmem:[#allocation2 + $0x48] sm:$0xff] %vm5270, %v5193
        %5281 = vst.msk [vmem:[#allocation2 + $0x50] sm:$0xff] %vm5270, %v5195
        %5282 = vst.msk [vmem:[#allocation2 + $0x58] sm:$0xff] %vm5270, %v5197
        %5283 = vst.msk [vmem:[#allocation2 + $0x60] sm:$0xff] %vm5270, %v5199
        %5284 = vst.msk [vmem:[#allocation2 + $0x68] sm:$0xff] %vm5270, %v5201
        %5285 = vst.msk [vmem:[#allocation2 + $0x70] sm:$0xff] %vm5270, %v5203
        %5286 = vst.msk [vmem:[#allocation2 + $0x78] sm:$0xff] %vm5270, %v5205
        %5287 = vst.msk [vmem:[#allocation2 + $0x80] sm:$0xff] %vm5270, %v5207
        %5288 = vst.msk [vmem:[#allocation2 + $0x88] sm:$0xff] %vm5270, %v5209
        %5289 = vst.msk [vmem:[#allocation2 + $0x90] sm:$0xff] %vm5270, %v5211
        %5290 = vst.msk [vmem:[#allocation2 + $0x98] sm:$0xff] %vm5270, %v5213
        %5291 = vst.msk [vmem:[#allocation2 + $0xa0] sm:$0xff] %vm5270, %v5215
        %5292 = vst.msk [vmem:[#allocation2 + $0xa8] sm:$0xff] %vm5270, %v5217
        %5293 = vst.msk [vmem:[#allocation2 + $0xb0] sm:$0xff] %vm5270, %v5219
        %5294 = vst.msk [vmem:[#allocation2 + $0xb8] sm:$0xff] %vm5270, %v5221
        %5295 = vst.msk [vmem:[#allocation2 + $0xc0] sm:$0xff] %vm5270, %v5223
        %5296 = vst.msk [vmem:[#allocation2 + $0xc8] sm:$0xff] %vm5270, %v5225
        %5297 = vst.msk [vmem:[#allocation2 + $0xd0] sm:$0xff] %vm5270, %v5227
        %5298 = vst.msk [vmem:[#allocation2 + $0xd8] sm:$0xff] %vm5270, %v5229
        %5299 = vst.msk [vmem:[#allocation2 + $0xe0] sm:$0xff] %vm5270, %v5231
        %5300 = vst.msk [vmem:[#allocation2 + $0xe8] sm:$0xff] %vm5270, %v5233
        %5301 = vst.msk [vmem:[#allocation2 + $0xf0] sm:$0xff] %vm5270, %v5235
        %5302 = vst.msk [vmem:[#allocation2 + $0xf8] sm:$0xff] %vm5270, %v5237
        %v5303 = vld [vmem:[#allocation2] sm:$0xff]
        %v5304 = vld [vmem:[#allocation2 + $0x8] sm:$0xff]
        %v5305 = vld [vmem:[#allocation2 + $0x10] sm:$0xff]
        %v5306 = vld [vmem:[#allocation2 + $0x18] sm:$0xff]
        %v5307 = vld [vmem:[#allocation2 + $0x20] sm:$0xff]
        %v5308 = vld [vmem:[#allocation2 + $0x28] sm:$0xff]
        %v5309 = vld [vmem:[#allocation2 + $0x30] sm:$0xff]
        %v5310 = vld [vmem:[#allocation2 + $0x38] sm:$0xff]
        %v5311 = vld [vmem:[#allocation2 + $0x40] sm:$0xff]
        %v5312 = vld [vmem:[#allocation2 + $0x48] sm:$0xff]
        %v5313 = vld [vmem:[#allocation2 + $0x50] sm:$0xff]
        %v5314 = vld [vmem:[#allocation2 + $0x58] sm:$0xff]
        %v5315 = vld [vmem:[#allocation2 + $0x60] sm:$0xff]
        %v5316 = vld [vmem:[#allocation2 + $0x68] sm:$0xff]
        %v5317 = vld [vmem:[#allocation2 + $0x70] sm:$0xff]
        %v5318 = vld [vmem:[#allocation2 + $0x78] sm:$0xff]
        %v5319 = vld [vmem:[#allocation2 + $0x80] sm:$0xff]
        %v5320 = vld [vmem:[#allocation2 + $0x88] sm:$0xff]
        %v5321 = vld [vmem:[#allocation2 + $0x90] sm:$0xff]
        %v5322 = vld [vmem:[#allocation2 + $0x98] sm:$0xff]
        %v5323 = vld [vmem:[#allocation2 + $0xa0] sm:$0xff]
        %v5324 = vld [vmem:[#allocation2 + $0xa8] sm:$0xff]
        %v5325 = vld [vmem:[#allocation2 + $0xb0] sm:$0xff]
        %v5326 = vld [vmem:[#allocation2 + $0xb8] sm:$0xff]
        %v5327 = vld [vmem:[#allocation2 + $0xc0] sm:$0xff]
        %v5328 = vld [vmem:[#allocation2 + $0xc8] sm:$0xff]
        %v5329 = vld [vmem:[#allocation2 + $0xd0] sm:$0xff]
        %v5330 = vld [vmem:[#allocation2 + $0xd8] sm:$0xff]
        %v5331 = vld [vmem:[#allocation2 + $0xe0] sm:$0xff]
        %v5332 = vld [vmem:[#allocation2 + $0xe8] sm:$0xff]
        %v5333 = vld [vmem:[#allocation2 + $0xf0] sm:$0xff]
        %v5334 = vld [vmem:[#allocation2 + $0xf8] sm:$0xff]
        %v5335 = vld [vmem:[%s1] sm:$0xff]
        %v5336 = vld [vmem:[%s1 + $0x8] sm:$0xff]
        %v5337 = vld [vmem:[%s1 + $0x10] sm:$0xff]
        %v5338 = vld [vmem:[%s1 + $0x18] sm:$0xff]
        %v5339 = vld [vmem:[%s1 + $0x20] sm:$0xff]
        %v5340 = vld [vmem:[%s1 + $0x28] sm:$0xff]
        %v5341 = vld [vmem:[%s1 + $0x30] sm:$0xff]
        %v5342 = vld [vmem:[%s1 + $0x38] sm:$0xff]
        %v5343 = vld [vmem:[%s1 + $0x40] sm:$0xff]
        %v5344 = vld [vmem:[%s1 + $0x48] sm:$0xff]
        %v5345 = vld [vmem:[%s1 + $0x50] sm:$0xff]
        %v5346 = vld [vmem:[%s1 + $0x58] sm:$0xff]
        %v5347 = vld [vmem:[%s1 + $0x60] sm:$0xff]
        %v5348 = vld [vmem:[%s1 + $0x68] sm:$0xff]
        %v5349 = vld [vmem:[%s1 + $0x70] sm:$0xff]
        %v5350 = vld [vmem:[%s1 + $0x78] sm:$0xff]
        %5351 = vmatpush.msra.mxu0 %v5350
        %5352 = vmatpush.msra.mxu0 %v5349
        %5353 = vmatpush.msra.mxu0 %v5348
        %5354 = vmatpush.msra.mxu0 %v5347
        %5355 = vmatpush.msra.mxu0 %v5346
        %5356 = vmatpush.msra.mxu0 %v5345
        %5357 = vmatpush.msra.mxu0 %v5344
        %5358 = vmatpush.msra.mxu0 %v5343
        %5359 = vmatpush.msra.mxu0 %v5342
        %5360 = vmatpush.msra.mxu0 %v5341
        %5361 = vmatpush.msra.mxu0 %v5340
        %5362 = vmatpush.msra.mxu0 %v5339
        %5363 = vmatpush.msra.mxu0 %v5338
        %5364 = vmatpush.msra.mxu0 %v5337
        %5365 = vmatpush.msra.mxu0 %v5336
        %5366 = vmatpush.msra.mxu0 %v5335
        %5367 = vmatmul.f32.gmra.mxu0 %v5303
        %v5368 = vpop.f32.mrf.mxu0
        %v5369 = vadd.f32 0.0, %v5368
        %5370 = vmatmul.f32.gmra.mxu0 %v5304
        %v5371 = vpop.f32.mrf.mxu0
        %v5372 = vadd.f32 0.0, %v5371
        %5373 = vmatmul.f32.gmra.mxu0 %v5305
        %v5374 = vpop.f32.mrf.mxu0
        %v5375 = vadd.f32 0.0, %v5374
        %5376 = vmatmul.f32.gmra.mxu0 %v5306
        %v5377 = vpop.f32.mrf.mxu0
        %v5378 = vadd.f32 0.0, %v5377
        %5379 = vmatmul.f32.gmra.mxu0 %v5307
        %v5380 = vpop.f32.mrf.mxu0
        %v5381 = vadd.f32 0.0, %v5380
        %5382 = vmatmul.f32.gmra.mxu0 %v5308
        %v5383 = vpop.f32.mrf.mxu0
        %v5384 = vadd.f32 0.0, %v5383
        %5385 = vmatmul.f32.gmra.mxu0 %v5309
        %v5386 = vpop.f32.mrf.mxu0
        %v5387 = vadd.f32 0.0, %v5386
        %5388 = vmatmul.f32.gmra.mxu0 %v5310
        %v5389 = vpop.f32.mrf.mxu0
        %v5390 = vadd.f32 0.0, %v5389
        %5391 = vmatmul.f32.gmra.mxu0 %v5311
        %v5392 = vpop.f32.mrf.mxu0
        %v5393 = vadd.f32 0.0, %v5392
        %5394 = vmatmul.f32.gmra.mxu0 %v5312
        %v5395 = vpop.f32.mrf.mxu0
        %v5396 = vadd.f32 0.0, %v5395
        %5397 = vmatmul.f32.gmra.mxu0 %v5313
        %v5398 = vpop.f32.mrf.mxu0
        %v5399 = vadd.f32 0.0, %v5398
        %5400 = vmatmul.f32.gmra.mxu0 %v5314
        %v5401 = vpop.f32.mrf.mxu0
        %v5402 = vadd.f32 0.0, %v5401
        %5403 = vmatmul.f32.gmra.mxu0 %v5315
        %v5404 = vpop.f32.mrf.mxu0
        %v5405 = vadd.f32 0.0, %v5404
        %5406 = vmatmul.f32.gmra.mxu0 %v5316
        %v5407 = vpop.f32.mrf.mxu0
        %v5408 = vadd.f32 0.0, %v5407
        %5409 = vmatmul.f32.gmra.mxu0 %v5317
        %v5410 = vpop.f32.mrf.mxu0
        %v5411 = vadd.f32 0.0, %v5410
        %5412 = vmatmul.f32.gmra.mxu0 %v5318
        %v5413 = vpop.f32.mrf.mxu0
        %v5414 = vadd.f32 0.0, %v5413
        %5415 = vmatmul.f32.gmra.mxu0 %v5319
        %v5416 = vpop.f32.mrf.mxu0
        %v5417 = vadd.f32 0.0, %v5416
        %5418 = vmatmul.f32.gmra.mxu0 %v5320
        %v5419 = vpop.f32.mrf.mxu0
        %v5420 = vadd.f32 0.0, %v5419
        %5421 = vmatmul.f32.gmra.mxu0 %v5321
        %v5422 = vpop.f32.mrf.mxu0
        %v5423 = vadd.f32 0.0, %v5422
        %5424 = vmatmul.f32.gmra.mxu0 %v5322
        %v5425 = vpop.f32.mrf.mxu0
        %v5426 = vadd.f32 0.0, %v5425
        %5427 = vmatmul.f32.gmra.mxu0 %v5323
        %v5428 = vpop.f32.mrf.mxu0
        %v5429 = vadd.f32 0.0, %v5428
        %5430 = vmatmul.f32.gmra.mxu0 %v5324
        %v5431 = vpop.f32.mrf.mxu0
        %v5432 = vadd.f32 0.0, %v5431
        %5433 = vmatmul.f32.gmra.mxu0 %v5325
        %v5434 = vpop.f32.mrf.mxu0
        %v5435 = vadd.f32 0.0, %v5434
        %5436 = vmatmul.f32.gmra.mxu0 %v5326
        %v5437 = vpop.f32.mrf.mxu0
        %v5438 = vadd.f32 0.0, %v5437
        %5439 = vmatmul.f32.gmra.mxu0 %v5327
        %v5440 = vpop.f32.mrf.mxu0
        %v5441 = vadd.f32 0.0, %v5440
        %5442 = vmatmul.f32.gmra.mxu0 %v5328
        %v5443 = vpop.f32.mrf.mxu0
        %v5444 = vadd.f32 0.0, %v5443
        %5445 = vmatmul.f32.gmra.mxu0 %v5329
        %v5446 = vpop.f32.mrf.mxu0
        %v5447 = vadd.f32 0.0, %v5446
        %5448 = vmatmul.f32.gmra.mxu0 %v5330
        %v5449 = vpop.f32.mrf.mxu0
        %v5450 = vadd.f32 0.0, %v5449
        %5451 = vmatmul.f32.gmra.mxu0 %v5331
        %v5452 = vpop.f32.mrf.mxu0
        %v5453 = vadd.f32 0.0, %v5452
        %5454 = vmatmul.f32.gmra.mxu0 %v5332
        %v5455 = vpop.f32.mrf.mxu0
        %v5456 = vadd.f32 0.0, %v5455
        %5457 = vmatmul.f32.gmra.mxu0 %v5333
        %v5458 = vpop.f32.mrf.mxu0
        %v5459 = vadd.f32 0.0, %v5458
        %5460 = vmatmul.f32.gmra.mxu0 %v5334
        %v5461 = vpop.f32.mrf.mxu0
        %v5462 = vadd.f32 0.0, %v5461
        %5463 = vdwg.mxu0
        %5464 = vst [vmem:[%s150] sm:$0xff] %v5369
        %5465 = vst [vmem:[%s150 + $0x8] sm:$0xff] %v5372
        %5466 = vst [vmem:[%s150 + $0x10] sm:$0xff] %v5375
        %5467 = vst [vmem:[%s150 + $0x18] sm:$0xff] %v5378
        %5468 = vst [vmem:[%s150 + $0x20] sm:$0xff] %v5381
        %5469 = vst [vmem:[%s150 + $0x28] sm:$0xff] %v5384
        %5470 = vst [vmem:[%s150 + $0x30] sm:$0xff] %v5387
        %5471 = vst [vmem:[%s150 + $0x38] sm:$0xff] %v5390
        %5472 = vst [vmem:[%s150 + $0x40] sm:$0xff] %v5393
        %5473 = vst [vmem:[%s150 + $0x48] sm:$0xff] %v5396
        %5474 = vst [vmem:[%s150 + $0x50] sm:$0xff] %v5399
        %5475 = vst [vmem:[%s150 + $0x58] sm:$0xff] %v5402
        %5476 = vst [vmem:[%s150 + $0x60] sm:$0xff] %v5405
        %5477 = vst [vmem:[%s150 + $0x68] sm:$0xff] %v5408
        %5478 = vst [vmem:[%s150 + $0x70] sm:$0xff] %v5411
        %5479 = vst [vmem:[%s150 + $0x78] sm:$0xff] %v5414
        %5480 = vst [vmem:[%s150 + $0x80] sm:$0xff] %v5417
        %5481 = vst [vmem:[%s150 + $0x88] sm:$0xff] %v5420
        %5482 = vst [vmem:[%s150 + $0x90] sm:$0xff] %v5423
        %5483 = vst [vmem:[%s150 + $0x98] sm:$0xff] %v5426
        %5484 = vst [vmem:[%s150 + $0xa0] sm:$0xff] %v5429
        %5485 = vst [vmem:[%s150 + $0xa8] sm:$0xff] %v5432
        %5486 = vst [vmem:[%s150 + $0xb0] sm:$0xff] %v5435
        %5487 = vst [vmem:[%s150 + $0xb8] sm:$0xff] %v5438
        %5488 = vst [vmem:[%s150 + $0xc0] sm:$0xff] %v5441
        %5489 = vst [vmem:[%s150 + $0xc8] sm:$0xff] %v5444
        %5490 = vst [vmem:[%s150 + $0xd0] sm:$0xff] %v5447
        %5491 = vst [vmem:[%s150 + $0xd8] sm:$0xff] %v5450
        %5492 = vst [vmem:[%s150 + $0xe0] sm:$0xff] %v5453
        %5493 = vst [vmem:[%s150 + $0xe8] sm:$0xff] %v5456
        %5494 = vst [vmem:[%s150 + $0xf0] sm:$0xff] %v5459
        %5495 = vst [vmem:[%s150 + $0xf8] sm:$0xff] %v5462
        %s5496 = sand.u32 %s85, 1
        %s5497 = scalar_lea.sflag [#allocation4], %s5496
        %s5498 = sand.u32 %s85, 1
        %s5499 = smul.addr %s5498, 256
        %s5500 = scalar_lea.vmem [#allocation3], %s5499
        // Predicated region
        $region29: #{tpu_custom_call.1} parent=27 // pred_check
          %p5501 = pneg %p95
        $region30: #{tpu_custom_call.1} parent=27 // pred_check_branch
          %5503 = sbr.rel (%p5501) target = $region32
        $region31: #{tpu_custom_call.1} parent=27 // pred_region
          %s5504 = smul.u32 32, %s21
          %5506 = vsyncadd %s5497, 0
          %s5507 = smul.addr %s20, 64
          %s5508 = sadd.s32 %s5504, %s5507
          %s5509 = smul.addr %s5508, 8
          %s5510 = scalar_lea.hbm %s2, %s5509
          %s5511 = sshll.u32 %s5500, 4
          %s5512 = int_to_ptr.vmem [resolvable:$true] %s5511
          %s5513 = sshll.u32 %s5510, 4
          %s5514 = int_to_ptr.hbm [resolvable:$true] %s5513
          %5519 = dma.vmem_to_hbm [thread:$0]  %s5512, 4096, %s5514, %s5497, 128, 128, 8
        $region32: #{tpu_custom_call.1} parent=27 // pred_fallthru
          _
      $region28: #{tpu_custom_call.1} parent=5 // pred_fallthru
        _
      %p5520 = scmp.le.s32.totalorder 2, %s11
      // Predicated region
      $region33: #{tpu_custom_call.1} parent=5 // pred_check
        %p5521 = pneg %p5520
      $region34: #{tpu_custom_call.1} parent=5 // pred_check_branch
        %5523 = sbr.rel (%p5521) target = $region36
      $region35: #{tpu_custom_call.1} parent=5 // pred_region
        %s5524 = ssub.s32 %s11, 2
        // Predicated region
        $region37: #{tpu_custom_call.1} parent=35 // pred_check
          %p5525 = pneg %p101
        $region38: #{tpu_custom_call.1} parent=35 // pred_check_branch
          %5527 = sbr.rel (%p5525) target = $region40
        $region39: #{tpu_custom_call.1} parent=35 // pred_region
          %s5528 = sand.u32 %s86, 1
          %s5529 = scalar_lea.sflag [#allocation4], %s5528
          %s5530 = sand.u32 %s86, 1
          %s5531 = smul.addr %s5530, 256
          %s5532 = scalar_lea.vmem [#allocation3], %s5531
          %5534 = dma.done %s5529, 4096
        $region40: #{tpu_custom_call.1} parent=35 // pred_fallthru
          _
      $region36: #{tpu_custom_call.1} parent=5 // pred_fallthru
        _
    $region6: #{tpu_custom_call.1} parent=1 // loop_footer
      %s15 = sadd.s32 1, %s11
    $region7: #{tpu_custom_call.1} parent=1 // loop_footer_branch
      %10 = sbr.rel target = $region3
    $region8: #{tpu_custom_call.1} parent=1 // loop_exit
      _
    %5535 = vsyncpa [#allocation4], 1
    %s5536 = scalar_lea.sflag [#allocation4], 1
    %5537 = vsyncpa %s5536, 1

</llo_original>
